<compile_context>
chip_gen: v6e
topology: v6e:2x2x1
jax: 0.10.0
libtpu: 0.0.40
codegen_flags: <defaults>
</compile_context>

<pallas_src>
import functools

import jax
import jax.numpy as jnp
from jax.experimental import pallas as pl
from jax.experimental.pallas import tpu as pltpu

LANE = 128


def _round_up(n, m):
    return ((n + m - 1) // m) * m


def _pad_last(x, target):
    pad = target - x.shape[-1]
    if pad == 0:
        return x
    cfg = [(0, 0)] * (x.ndim - 1) + [(0, pad)]
    return jnp.pad(x, cfg)


def _pad_axis(x, axis, target):
    pad = target - x.shape[axis]
    if pad == 0:
        return x
    cfg = [(0, 0)] * x.ndim
    cfg[axis] = (0, pad)
    return jnp.pad(x, cfg)


# ----------------------------------------------------------------------------
# Single fused kernel: one grid step == one batch sample.
# ----------------------------------------------------------------------------
def _bottleneck_kernel(
    x_ref, xs_ref,                       # halo-padded input, stride-subsampled input (bf16)
    w1_ref, b1_ref,                      # conv1_1 weight (BN1 scale folded) + BN1 bias
    aw_ref,                              # attention 1x1 conv weight
    ccw_ref, b2_ref,                     # CondConv experts (BN2 scale folded) + BN2 bias
    w2wr_ref, bo_ref,                    # stacked [conv1_2 ; conv_res] weights + (b3 + b_res)
    o_ref,                               # output (P, CO)
    ypad_ref, wmix_ref,                  # scratch: halo-padded y1 (f32), mixed tap weights (bf16)
    *, n_spatial, H, W, Ho, Wo, stride, K):
    f32 = jnp.float32
    bf16 = jnp.bfloat16
    HP, WPAD, CM = ypad_ref.shape

    # ---- conv1_1: 1x1 conv (BN1 scale pre-folded) + bias + ReLU on the halo grid ----
    y1 = jnp.dot(x_ref[...], w1_ref[...], preferred_element_type=f32)
    y1 = jnp.maximum(y1 + b1_ref[...], 0.0)
    y13 = y1.reshape(HP, WPAD, CM)

    # ---- in-kernel halo mask (zero the pad ring + width-alignment columns) ----
    hidx = jax.lax.broadcasted_iota(jnp.int32, (HP, WPAD, CM), 0)
    widx = jax.lax.broadcasted_iota(jnp.int32, (HP, WPAD, CM), 1)
    inside = (hidx >= 1) & (hidx <= H) & (widx >= 1) & (widx <= W)
    y13 = jnp.where(inside, y13, 0.0)

    # park halo-padded y1 in VMEM for the shifted-window reads
    ypad_ref[...] = y13

    # ---- CondConv attention: global average pool -> 1x1 conv -> sigmoid (f32 pool) ----
    pooled = jnp.sum(y13.reshape(HP * WPAD, CM), axis=0, keepdims=True) * (1.0 / float(n_spatial))
    logits = jnp.dot(pooled.astype(bf16), aw_ref[...], preferred_element_type=f32)
    att = jax.nn.sigmoid(logits)                      # (1, KP); only the first K entries are used

    # ---- hoisted expert mix: one bf16 mixed weight for all 9 taps, once per sample ----
    wm = att[0:1, 0:1].astype(bf16) * ccw_ref[0]
    for k in range(1, K):
        wm = wm + att[0:1, k:k + 1].astype(bf16) * ccw_ref[k]
    wmix_ref[...] = wm                                # (9, CM, CM) bf16

    # ---- 3x3 CondConv: 9 shifted (strided) windows, each a (P,128)@(128,128) matmul ----
    P = Ho * Wo
    acc = jnp.zeros((P, CM), f32)
    for kh in range(3):
        for kw in range(3):
            if stride == 1:
                win = ypad_ref[pl.ds(kh, Ho), pl.ds(kw, Wo), :]
            else:
                win = ypad_ref[pl.ds(kh, Ho, stride), pl.ds(kw, Wo, stride), :]
            win = win.reshape(P, CM).astype(bf16)
            acc = acc + jnp.dot(win, wmix_ref[kh * 3 + kw], preferred_element_type=f32)

    # ---- BN2 bias + ReLU (scale already folded into the experts) ----
    y2 = jnp.maximum(acc + b2_ref[...], 0.0)

    # ---- fused epilogue: [conv1_2 | conv_res] as one 256-deep matmul + bias + ReLU ----
    cat = jnp.concatenate([y2.astype(bf16), xs_ref[...]], axis=-1)        # (P, CM+CP)
    out = jnp.dot(cat, w2wr_ref[...], preferred_element_type=f32) + bo_ref[...]
    o_ref[...] = jnp.maximum(out, 0.0).astype(o_ref.dtype)


# ----------------------------------------------------------------------------
# Wrapper: NCHW interface, NHWC + channel padding internally.
# ----------------------------------------------------------------------------
def bottleneck_forward(x_nchw, params, stride):
    B, in_ch, H, W = x_nchw.shape
    w1 = params["w1"]                      # (in_ch, mid)
    mid = w1.shape[1]
    w2 = params["w2"]                      # (mid, out_ch)
    out_ch = w2.shape[1]
    cc_w = params["cc_w"]                  # (K, mid, mid, 3, 3)  (experts, out, in, kh, kw)
    K = cc_w.shape[0]

    Ho, Wo = H // stride, W // stride
    P = Ho * Wo
    HP = H + 2
    WPAD = _round_up(W + 2, 8)             # halo-padded width, 8-aligned for clean reshapes

    CP = _round_up(in_ch, LANE)
    CM = _round_up(mid, LANE)
    CO = _round_up(out_ch, LANE)
    KP = _round_up(K, LANE)

    bf16 = jnp.bfloat16
    x_nhwc = jnp.transpose(x_nchw, (0, 2, 3, 1))

    # halo-padded (pad=1, right-padded to 8-aligned width) input, channels -> 128 lanes, bf16
    x_halo = jnp.pad(x_nhwc, ((0, 0), (1, 1), (1, WPAD - W - 1), (0, 0)))
    x_halo = _pad_last(x_halo, CP).astype(bf16).reshape(B, HP * WPAD, CP)

    # stride-subsampled input for the residual 1x1 conv
    x_sub = x_nhwc[:, ::stride, ::stride, :]
    x_sub = _pad_last(x_sub, CP).astype(bf16).reshape(B, P, CP)

    # fold BatchNorm (inference form) into per-channel scale / bias
    def fold(bn):
        gamma, beta, rm, rv = bn
        s = gamma / jnp.sqrt(rv + 1e-5)
        b = beta - rm * s
        return s, b

    s1, b1 = fold(params["bn1"])
    s2, b2 = fold(params["bn2"])
    s3, b3 = fold(params["bn3"])
    sr, br = fold(params["bn_res"])

    # BN scales folded into the weights (scale commutes with the matmuls); only biases ship to kernel
    w1_p = _pad_last(_pad_axis(w1 * s1[None, :], 0, CP), CM).astype(bf16)            # (CP, CM)
    w2_p = _pad_last(_pad_axis(w2 * s3[None, :], 0, CM), CO)                         # (CM, CO)
    wr_p = _pad_last(_pad_axis(params["w_res"] * sr[None, :], 0, CP), CO)            # (CP, CO)
    w2wr = jnp.concatenate([w2_p, wr_p], axis=0).astype(bf16)                        # (CM+CP, CO)
    aw_p = _pad_last(_pad_axis(params["attn_w"].T, 0, CM), KP).astype(bf16)          # (CM, KP)

    # CondConv experts: fold BN2 scale into output channels, repack (K, 9 taps, in, out)
    ccw = cc_w * s2[None, :, None, None, None]
    ccw = jnp.transpose(ccw, (0, 3, 4, 2, 1)).reshape(K, 9, mid, mid)
    ccw_p = _pad_last(_pad_axis(ccw, 2, CM), CM).astype(bf16)                        # (K, 9, CM, CM)

    b1_p = _pad_last(b1.reshape(1, -1), CM)
    b2_p = _pad_last(b2.reshape(1, -1), CM)
    bo_p = _pad_last((b3 + br).reshape(1, -1), CO)                                   # b3 + b_res combined

    kern = functools.partial(_bottleneck_kernel, n_spatial=H * W, H=H, W=W,
                             Ho=Ho, Wo=Wo, stride=stride, K=K)

    out_flat = pl.pallas_call(
        kern,
        out_shape=jax.ShapeDtypeStruct((B, P, CO), jnp.float32),
        grid=(B,),
        in_specs=[
            pl.BlockSpec((None, HP * WPAD, CP), lambda b: (b, 0, 0)),   # x (halo padded)
            pl.BlockSpec((None, P, CP), lambda b: (b, 0, 0)),           # x (stride subsampled)
            pl.BlockSpec((CP, CM), lambda b: (0, 0)),                   # w1 (BN1-folded)
            pl.BlockSpec((1, CM), lambda b: (0, 0)),                    # bn1 bias
            pl.BlockSpec((CM, KP), lambda b: (0, 0)),                   # attention weight
            pl.BlockSpec((K, 9, CM, CM), lambda b: (0, 0, 0, 0)),       # CondConv experts (BN2-folded)
            pl.BlockSpec((1, CM), lambda b: (0, 0)),                    # bn2 bias
            pl.BlockSpec((CM + CP, CO), lambda b: (0, 0)),              # stacked [w2 ; w_res]
            pl.BlockSpec((1, CO), lambda b: (0, 0)),                    # bn3 + bn_res bias
        ],
        out_specs=pl.BlockSpec((None, P, CO), lambda b: (b, 0, 0)),
        scratch_shapes=[pltpu.VMEM((HP, WPAD, CM), jnp.float32),
                        pltpu.VMEM((9, CM, CM), jnp.bfloat16)],
        compiler_params=pltpu.CompilerParams(
            dimension_semantics=("parallel",),
            vmem_limit_bytes=32 * 1024 * 1024,
        ),
    )(x_halo, x_sub, w1_p, b1_p, aw_p, ccw_p, b2_p, w2wr, bo_p)

    out = out_flat[:, :, :out_ch].reshape(B, Ho, Wo, out_ch)
    return jnp.transpose(out, (0, 3, 1, 2))                                          # back to NCHW


# ----------------------------------------------------------------------------
# Deterministic parameter construction + run
# ----------------------------------------------------------------------------
def make_bn(key, c):
    k1, k2, k3, k4 = jax.random.split(key, 4)
    gamma = jax.random.normal(k1, (c,), jnp.float32) * 0.1 + 1.0
    beta = jax.random.normal(k2, (c,), jnp.float32) * 0.1
    rm = jax.random.normal(k3, (c,), jnp.float32) * 0.1
    rv = jnp.abs(jax.random.normal(k4, (c,), jnp.float32)) * 0.1 + 1.0
    return (gamma, beta, rm, rv)


if __name__ == "__main__":
    B, in_ch, H, W = 2, 8, 16, 16
    out_ch = 32
    mid = out_ch // 4          # bottleneck expansion = 4
    K = 4                      # CondConv experts
    stride = 2                 # downsample=True

    key = jax.random.PRNGKey(0)
    ks = jax.random.split(key, 10)

    params = {
        "w1": jax.random.normal(ks[0], (in_ch, mid), jnp.float32) * 0.1,
        "bn1": make_bn(ks[1], mid),
        "attn_w": jax.random.normal(ks[2], (K, mid), jnp.float32) * 0.1,
        "cc_w": jax.random.normal(ks[3], (K, mid, mid, 3, 3), jnp.float32) * 0.1,
        "bn2": make_bn(ks[4], mid),
        "w2": jax.random.normal(ks[5], (mid, out_ch), jnp.float32) * 0.1,
        "bn3": make_bn(ks[6], out_ch),
        "w_res": jax.random.normal(ks[7], (in_ch, out_ch), jnp.float32) * 0.1,
        "bn_res": make_bn(ks[8], out_ch),
    }

    x = jax.random.normal(ks[9], (B, in_ch, H, W), jnp.float32)

    fwd = jax.jit(functools.partial(bottleneck_forward, stride=stride))
    out = jax.block_until_ready(fwd(x, params))
    assert out.shape == (B, out_ch, H // stride, W // stride), out.shape
    assert bool(jnp.all(jnp.isfinite(out)))
    print("KERNEL_OK")
</pallas_src>

<mosaic_0001>
module attributes {stable_mosaic.version = 11 : i64} {
  func.func @_bottleneck_kernel(%arg0: i32, %arg1: memref<1x432x128xbf16, #tpu.memory_space<vmem>>, %arg2: memref<1x64x128xbf16, #tpu.memory_space<vmem>>, %arg3: memref<128x128xbf16, #tpu.memory_space<vmem>>, %arg4: memref<1x128xf32, #tpu.memory_space<vmem>>, %arg5: memref<128x128xbf16, #tpu.memory_space<vmem>>, %arg6: memref<4x9x128x128xbf16, #tpu.memory_space<vmem>>, %arg7: memref<1x128xf32, #tpu.memory_space<vmem>>, %arg8: memref<256x128xbf16, #tpu.memory_space<vmem>>, %arg9: memref<1x128xf32, #tpu.memory_space<vmem>>, %arg10: memref<1x64x128xf32, #tpu.memory_space<vmem>>, %arg11: memref<18x24x128xf32, #tpu.memory_space<vmem>>, %arg12: memref<9x128x128xbf16, #tpu.memory_space<vmem>>) attributes {dimension_semantics = [#tpu.dimension_semantics<parallel>], iteration_bounds = array<i64: 2>, scalar_prefetch = 0 : i64, scratch_operands = 2 : i64, tpu.core_type = #tpu.core_type<tc>, window_params = [{transform_indices = @transform_0, window_bounds = array<i64: 1, 432, 128>}, {transform_indices = @transform_1, window_bounds = array<i64: 1, 64, 128>}, {pipeline_mode = #tpu.pipeline_mode<synchronous>, transform_indices = @transform_2, window_bounds = array<i64: 128, 128>}, {pipeline_mode = #tpu.pipeline_mode<synchronous>, transform_indices = @transform_3, window_bounds = array<i64: 1, 128>}, {pipeline_mode = #tpu.pipeline_mode<synchronous>, transform_indices = @transform_4, window_bounds = array<i64: 128, 128>}, {pipeline_mode = #tpu.pipeline_mode<synchronous>, transform_indices = @transform_5, window_bounds = array<i64: 4, 9, 128, 128>}, {pipeline_mode = #tpu.pipeline_mode<synchronous>, transform_indices = @transform_6, window_bounds = array<i64: 1, 128>}, {pipeline_mode = #tpu.pipeline_mode<synchronous>, transform_indices = @transform_7, window_bounds = array<i64: 256, 128>}, {pipeline_mode = #tpu.pipeline_mode<synchronous>, transform_indices = @transform_8, window_bounds = array<i64: 1, 128>}, {transform_indices = @transform_9, window_bounds = array<i64: 1, 64, 128>}]} {
    %c0 = arith.constant 0 : index
    %c0_0 = arith.constant 0 : index
    %c0_1 = arith.constant 0 : index
    %0 = vector.load %arg1[%c0, %c0_0, %c0_1] : memref<1x432x128xbf16, #tpu.memory_space<vmem>>, vector<1x432x128xbf16>
    %1 = vector.shape_cast %0 : vector<1x432x128xbf16> to vector<432x128xbf16>
    %c0_2 = arith.constant 0 : index
    %c0_3 = arith.constant 0 : index
    %2 = vector.load %arg3[%c0_2, %c0_3] : memref<128x128xbf16, #tpu.memory_space<vmem>>, vector<128x128xbf16>
    %cst = arith.constant dense<0.000000e+00> : vector<432x128xf32>
    %3 = tpu.matmul %1, %2, %cst {dimension_numbers = #tpu.dot_dimension_numbers<[1], [0], [0], [1], [0, 0, 1, 1], [], []>} : vector<432x128xbf16>, vector<128x128xbf16>, vector<432x128xf32> -> vector<432x128xf32>
    %c0_4 = arith.constant 0 : index
    %c0_5 = arith.constant 0 : index
    %4 = vector.load %arg4[%c0_4, %c0_5] : memref<1x128xf32, #tpu.memory_space<vmem>>, vector<1x128xf32>
    %5 = vector.broadcast %4 : vector<1x128xf32> to vector<432x128xf32>
    %6 = arith.addf %3, %5 : vector<432x128xf32>
    %cst_6 = arith.constant 0.000000e+00 : f32
    %7 = vector.broadcast %cst_6 : f32 to vector<432x128xf32>
    %8 = arith.maximumf %6, %7 : vector<432x128xf32>
    %9 = vector.shape_cast %8 : vector<432x128xf32> to vector<18x24x128xf32>
    %10 = tpu.iota {dimensions = array<i32: 0>} : vector<18x24x128xi32>
    %11 = tpu.iota {dimensions = array<i32: 1>} : vector<18x24x128xi32>
    %c1_i32 = arith.constant 1 : i32
    %12 = vector.broadcast %c1_i32 : i32 to vector<18x24x128xi32>
    %13 = arith.cmpi sge, %10, %12 : vector<18x24x128xi32>
    %c16_i32 = arith.constant 16 : i32
    %14 = vector.broadcast %c16_i32 : i32 to vector<18x24x128xi32>
    %15 = arith.cmpi sle, %10, %14 : vector<18x24x128xi32>
    %16 = arith.andi %13, %15 : vector<18x24x128xi1>
    %c1_i32_7 = arith.constant 1 : i32
    %17 = vector.broadcast %c1_i32_7 : i32 to vector<18x24x128xi32>
    %18 = arith.cmpi sge, %11, %17 : vector<18x24x128xi32>
    %19 = arith.andi %16, %18 : vector<18x24x128xi1>
    %c16_i32_8 = arith.constant 16 : i32
    %20 = vector.broadcast %c16_i32_8 : i32 to vector<18x24x128xi32>
    %21 = arith.cmpi sle, %11, %20 : vector<18x24x128xi32>
    %22 = arith.andi %19, %21 : vector<18x24x128xi1>
    %cst_9 = arith.constant 0.000000e+00 : f32
    %23 = vector.broadcast %cst_9 : f32 to vector<18x24x128xf32>
    %24 = arith.select %22, %9, %23 : vector<18x24x128xi1>, vector<18x24x128xf32>
    %c0_10 = arith.constant 0 : index
    %c0_11 = arith.constant 0 : index
    %c0_12 = arith.constant 0 : index
    %25 = vector.load %arg11[%c0_10, %c0_11, %c0_12] : memref<18x24x128xf32, #tpu.memory_space<vmem>>, vector<18x24x128xf32>
    tpu.vector_store %arg11[%c0_10, %c0_11, %c0_12], %24 {strides = array<i32>} : memref<18x24x128xf32, #tpu.memory_space<vmem>>, vector<18x24x128xf32>,
    %26 = vector.shape_cast %24 : vector<18x24x128xf32> to vector<432x128xf32>
    %cst_13 = arith.constant dense<0.000000e+00> : vector<128xf32>
    %27 = vector.multi_reduction <add>, %26, %cst_13 [0] : vector<432x128xf32> to vector<128xf32>
    %28 = vector.shape_cast %27 : vector<128xf32> to vector<1x128xf32>
    %cst_14 = arith.constant 3.906250e-03 : f32
    %29 = vector.broadcast %cst_14 : f32 to vector<1x128xf32>
    %30 = arith.mulf %28, %29 : vector<1x128xf32>
    %31 = arith.truncf %30 : vector<1x128xf32> to vector<1x128xbf16>
    %c0_15 = arith.constant 0 : index
    %c0_16 = arith.constant 0 : index
    %32 = vector.load %arg5[%c0_15, %c0_16] : memref<128x128xbf16, #tpu.memory_space<vmem>>, vector<128x128xbf16>
    %cst_17 = arith.constant dense<0.000000e+00> : vector<1x128xf32>
    %33 = tpu.matmul %31, %32, %cst_17 {dimension_numbers = #tpu.dot_dimension_numbers<[1], [0], [0], [1], [0, 0, 1, 1], [], []>} : vector<1x128xbf16>, vector<128x128xbf16>, vector<1x128xf32> -> vector<1x128xf32>
    %34 = arith.negf %33 : vector<1x128xf32>
    %35 = math.exp %34 : vector<1x128xf32>
    %cst_18 = arith.constant 1.000000e+00 : f32
    %36 = vector.broadcast %cst_18 : f32 to vector<1x128xf32>
    %37 = arith.addf %36, %35 : vector<1x128xf32>
    %38 = arith.divf %36, %37 : vector<1x128xf32>
    %39 = vector.extract_strided_slice %38 {offsets = [0, 0], sizes = [1, 1], strides = [1, 1]} : vector<1x128xf32> to vector<1x1xf32>
    %40 = arith.truncf %39 : vector<1x1xf32> to vector<1x1xbf16>
    %c0_19 = arith.constant 0 : index
    %c0_20 = arith.constant 0 : index
    %c0_21 = arith.constant 0 : index
    %c0_22 = arith.constant 0 : index
    %41 = vector.load %arg6[%c0_19, %c0_20, %c0_21, %c0_22] : memref<4x9x128x128xbf16, #tpu.memory_space<vmem>>, vector<1x9x128x128xbf16>
    %42 = vector.shape_cast %41 : vector<1x9x128x128xbf16> to vector<9x128x128xbf16>
    %43 = vector.shape_cast %40 : vector<1x1xbf16> to vector<1x1x1xbf16>
    %44 = vector.broadcast %43 : vector<1x1x1xbf16> to vector<9x128x128xbf16>
    %45 = arith.mulf %44, %42 : vector<9x128x128xbf16>
    %46 = vector.extract_strided_slice %38 {offsets = [0, 1], sizes = [1, 1], strides = [1, 1]} : vector<1x128xf32> to vector<1x1xf32>
    %47 = arith.truncf %46 : vector<1x1xf32> to vector<1x1xbf16>
    %c1 = arith.constant 1 : index
    %c0_23 = arith.constant 0 : index
    %c0_24 = arith.constant 0 : index
    %c0_25 = arith.constant 0 : index
    %48 = vector.load %arg6[%c1, %c0_23, %c0_24, %c0_25] : memref<4x9x128x128xbf16, #tpu.memory_space<vmem>>, vector<1x9x128x128xbf16>
    %49 = vector.shape_cast %48 : vector<1x9x128x128xbf16> to vector<9x128x128xbf16>
    %50 = vector.shape_cast %47 : vector<1x1xbf16> to vector<1x1x1xbf16>
    %51 = vector.broadcast %50 : vector<1x1x1xbf16> to vector<9x128x128xbf16>
    %52 = arith.mulf %51, %49 : vector<9x128x128xbf16>
    %53 = arith.addf %45, %52 : vector<9x128x128xbf16>
    %54 = vector.extract_strided_slice %38 {offsets = [0, 2], sizes = [1, 1], strides = [1, 1]} : vector<1x128xf32> to vector<1x1xf32>
    %55 = arith.truncf %54 : vector<1x1xf32> to vector<1x1xbf16>
    %c2 = arith.constant 2 : index
    %c0_26 = arith.constant 0 : index
    %c0_27 = arith.constant 0 : index
    %c0_28 = arith.constant 0 : index
    %56 = vector.load %arg6[%c2, %c0_26, %c0_27, %c0_28] : memref<4x9x128x128xbf16, #tpu.memory_space<vmem>>, vector<1x9x128x128xbf16>
    %57 = vector.shape_cast %56 : vector<1x9x128x128xbf16> to vector<9x128x128xbf16>
    %58 = vector.shape_cast %55 : vector<1x1xbf16> to vector<1x1x1xbf16>
    %59 = vector.broadcast %58 : vector<1x1x1xbf16> to vector<9x128x128xbf16>
    %60 = arith.mulf %59, %57 : vector<9x128x128xbf16>
    %61 = arith.addf %53, %60 : vector<9x128x128xbf16>
    %62 = vector.extract_strided_slice %38 {offsets = [0, 3], sizes = [1, 1], strides = [1, 1]} : vector<1x128xf32> to vector<1x1xf32>
    %63 = arith.truncf %62 : vector<1x1xf32> to vector<1x1xbf16>
    %c3 = arith.constant 3 : index
    %c0_29 = arith.constant 0 : index
    %c0_30 = arith.constant 0 : index
    %c0_31 = arith.constant 0 : index
    %64 = vector.load %arg6[%c3, %c0_29, %c0_30, %c0_31] : memref<4x9x128x128xbf16, #tpu.memory_space<vmem>>, vector<1x9x128x128xbf16>
    %65 = vector.shape_cast %64 : vector<1x9x128x128xbf16> to vector<9x128x128xbf16>
    %66 = vector.shape_cast %63 : vector<1x1xbf16> to vector<1x1x1xbf16>
    %67 = vector.broadcast %66 : vector<1x1x1xbf16> to vector<9x128x128xbf16>
    %68 = arith.mulf %67, %65 : vector<9x128x128xbf16>
    %69 = arith.addf %61, %68 : vector<9x128x128xbf16>
    %c0_32 = arith.constant 0 : index
    %c0_33 = arith.constant 0 : index
    %c0_34 = arith.constant 0 : index
    %70 = vector.load %arg12[%c0_32, %c0_33, %c0_34] : memref<9x128x128xbf16, #tpu.memory_space<vmem>>, vector<9x128x128xbf16>
    tpu.vector_store %arg12[%c0_32, %c0_33, %c0_34], %69 {strides = array<i32>} : memref<9x128x128xbf16, #tpu.memory_space<vmem>>, vector<9x128x128xbf16>,
    %cst_35 = arith.constant 0.000000e+00 : f32
    %71 = vector.broadcast %cst_35 : f32 to vector<64x128xf32>
    %c0_36 = arith.constant 0 : index
    %c0_37 = arith.constant 0 : index
    %c0_38 = arith.constant 0 : index
    %72 = tpu.strided_load %arg11[%c0_36, %c0_37, %c0_38] {strides = array<i32: 2, 2, 1>} : memref<18x24x128xf32, #tpu.memory_space<vmem>>, vector<8x8x128xf32>
    %73 = vector.shape_cast %72 : vector<8x8x128xf32> to vector<64x128xf32>
    %74 = arith.truncf %73 : vector<64x128xf32> to vector<64x128xbf16>
    %c0_39 = arith.constant 0 : index
    %c0_40 = arith.constant 0 : index
    %c0_41 = arith.constant 0 : index
    %75 = vector.load %arg12[%c0_39, %c0_40, %c0_41] : memref<9x128x128xbf16, #tpu.memory_space<vmem>>, vector<1x128x128xbf16>
    %76 = vector.shape_cast %75 : vector<1x128x128xbf16> to vector<128x128xbf16>
    %cst_42 = arith.constant dense<0.000000e+00> : vector<64x128xf32>
    %77 = tpu.matmul %74, %76, %cst_42 {dimension_numbers = #tpu.dot_dimension_numbers<[1], [0], [0], [1], [0, 0, 1, 1], [], []>} : vector<64x128xbf16>, vector<128x128xbf16>, vector<64x128xf32> -> vector<64x128xf32>
    %78 = arith.addf %71, %77 : vector<64x128xf32>
    %c0_43 = arith.constant 0 : index
    %c1_44 = arith.constant 1 : index
    %c0_45 = arith.constant 0 : index
    %79 = tpu.strided_load %arg11[%c0_43, %c1_44, %c0_45] {strides = array<i32: 2, 2, 1>} : memref<18x24x128xf32, #tpu.memory_space<vmem>>, vector<8x8x128xf32>
    %80 = vector.shape_cast %79 : vector<8x8x128xf32> to vector<64x128xf32>
    %81 = arith.truncf %80 : vector<64x128xf32> to vector<64x128xbf16>
    %c1_46 = arith.constant 1 : index
    %c0_47 = arith.constant 0 : index
    %c0_48 = arith.constant 0 : index
    %82 = vector.load %arg12[%c1_46, %c0_47, %c0_48] : memref<9x128x128xbf16, #tpu.memory_space<vmem>>, vector<1x128x128xbf16>
    %83 = vector.shape_cast %82 : vector<1x128x128xbf16> to vector<128x128xbf16>
    %cst_49 = arith.constant dense<0.000000e+00> : vector<64x128xf32>
    %84 = tpu.matmul %81, %83, %cst_49 {dimension_numbers = #tpu.dot_dimension_numbers<[1], [0], [0], [1], [0, 0, 1, 1], [], []>} : vector<64x128xbf16>, vector<128x128xbf16>, vector<64x128xf32> -> vector<64x128xf32>
    %85 = arith.addf %78, %84 : vector<64x128xf32>
    %c0_50 = arith.constant 0 : index
    %c2_51 = arith.constant 2 : index
    %c0_52 = arith.constant 0 : index
    %86 = tpu.strided_load %arg11[%c0_50, %c2_51, %c0_52] {strides = array<i32: 2, 2, 1>} : memref<18x24x128xf32, #tpu.memory_space<vmem>>, vector<8x8x128xf32>
    %87 = vector.shape_cast %86 : vector<8x8x128xf32> to vector<64x128xf32>
    %88 = arith.truncf %87 : vector<64x128xf32> to vector<64x128xbf16>
    %c2_53 = arith.constant 2 : index
    %c0_54 = arith.constant 0 : index
    %c0_55 = arith.constant 0 : index
    %89 = vector.load %arg12[%c2_53, %c0_54, %c0_55] : memref<9x128x128xbf16, #tpu.memory_space<vmem>>, vector<1x128x128xbf16>
    %90 = vector.shape_cast %89 : vector<1x128x128xbf16> to vector<128x128xbf16>
    %cst_56 = arith.constant dense<0.000000e+00> : vector<64x128xf32>
    %91 = tpu.matmul %88, %90, %cst_56 {dimension_numbers = #tpu.dot_dimension_numbers<[1], [0], [0], [1], [0, 0, 1, 1], [], []>} : vector<64x128xbf16>, vector<128x128xbf16>, vector<64x128xf32> -> vector<64x128xf32>
    %92 = arith.addf %85, %91 : vector<64x128xf32>
    %c1_57 = arith.constant 1 : index
    %c0_58 = arith.constant 0 : index
    %c0_59 = arith.constant 0 : index
    %93 = tpu.strided_load %arg11[%c1_57, %c0_58, %c0_59] {strides = array<i32: 2, 2, 1>} : memref<18x24x128xf32, #tpu.memory_space<vmem>>, vector<8x8x128xf32>
    %94 = vector.shape_cast %93 : vector<8x8x128xf32> to vector<64x128xf32>
    %95 = arith.truncf %94 : vector<64x128xf32> to vector<64x128xbf16>
    %c3_60 = arith.constant 3 : index
    %c0_61 = arith.constant 0 : index
    %c0_62 = arith.constant 0 : index
    %96 = vector.load %arg12[%c3_60, %c0_61, %c0_62] : memref<9x128x128xbf16, #tpu.memory_space<vmem>>, vector<1x128x128xbf16>
    %97 = vector.shape_cast %96 : vector<1x128x128xbf16> to vector<128x128xbf16>
    %cst_63 = arith.constant dense<0.000000e+00> : vector<64x128xf32>
    %98 = tpu.matmul %95, %97, %cst_63 {dimension_numbers = #tpu.dot_dimension_numbers<[1], [0], [0], [1], [0, 0, 1, 1], [], []>} : vector<64x128xbf16>, vector<128x128xbf16>, vector<64x128xf32> -> vector<64x128xf32>
    %99 = arith.addf %92, %98 : vector<64x128xf32>
    %c1_64 = arith.constant 1 : index
    %c1_65 = arith.constant 1 : index
    %c0_66 = arith.constant 0 : index
    %100 = tpu.strided_load %arg11[%c1_64, %c1_65, %c0_66] {strides = array<i32: 2, 2, 1>} : memref<18x24x128xf32, #tpu.memory_space<vmem>>, vector<8x8x128xf32>
    %101 = vector.shape_cast %100 : vector<8x8x128xf32> to vector<64x128xf32>
    %102 = arith.truncf %101 : vector<64x128xf32> to vector<64x128xbf16>
    %c4 = arith.constant 4 : index
    %c0_67 = arith.constant 0 : index
    %c0_68 = arith.constant 0 : index
    %103 = vector.load %arg12[%c4, %c0_67, %c0_68] : memref<9x128x128xbf16, #tpu.memory_space<vmem>>, vector<1x128x128xbf16>
    %104 = vector.shape_cast %103 : vector<1x128x128xbf16> to vector<128x128xbf16>
    %cst_69 = arith.constant dense<0.000000e+00> : vector<64x128xf32>
    %105 = tpu.matmul %102, %104, %cst_69 {dimension_numbers = #tpu.dot_dimension_numbers<[1], [0], [0], [1], [0, 0, 1, 1], [], []>} : vector<64x128xbf16>, vector<128x128xbf16>, vector<64x128xf32> -> vector<64x128xf32>
    %106 = arith.addf %99, %105 : vector<64x128xf32>
    %c1_70 = arith.constant 1 : index
    %c2_71 = arith.constant 2 : index
    %c0_72 = arith.constant 0 : index
    %107 = tpu.strided_load %arg11[%c1_70, %c2_71, %c0_72] {strides = array<i32: 2, 2, 1>} : memref<18x24x128xf32, #tpu.memory_space<vmem>>, vector<8x8x128xf32>
    %108 = vector.shape_cast %107 : vector<8x8x128xf32> to vector<64x128xf32>
    %109 = arith.truncf %108 : vector<64x128xf32> to vector<64x128xbf16>
    %c5 = arith.constant 5 : index
    %c0_73 = arith.constant 0 : index
    %c0_74 = arith.constant 0 : index
    %110 = vector.load %arg12[%c5, %c0_73, %c0_74] : memref<9x128x128xbf16, #tpu.memory_space<vmem>>, vector<1x128x128xbf16>
    %111 = vector.shape_cast %110 : vector<1x128x128xbf16> to vector<128x128xbf16>
    %cst_75 = arith.constant dense<0.000000e+00> : vector<64x128xf32>
    %112 = tpu.matmul %109, %111, %cst_75 {dimension_numbers = #tpu.dot_dimension_numbers<[1], [0], [0], [1], [0, 0, 1, 1], [], []>} : vector<64x128xbf16>, vector<128x128xbf16>, vector<64x128xf32> -> vector<64x128xf32>
    %113 = arith.addf %106, %112 : vector<64x128xf32>
    %c2_76 = arith.constant 2 : index
    %c0_77 = arith.constant 0 : index
    %c0_78 = arith.constant 0 : index
    %114 = tpu.strided_load %arg11[%c2_76, %c0_77, %c0_78] {strides = array<i32: 2, 2, 1>} : memref<18x24x128xf32, #tpu.memory_space<vmem>>, vector<8x8x128xf32>
    %115 = vector.shape_cast %114 : vector<8x8x128xf32> to vector<64x128xf32>
    %116 = arith.truncf %115 : vector<64x128xf32> to vector<64x128xbf16>
    %c6 = arith.constant 6 : index
    %c0_79 = arith.constant 0 : index
    %c0_80 = arith.constant 0 : index
    %117 = vector.load %arg12[%c6, %c0_79, %c0_80] : memref<9x128x128xbf16, #tpu.memory_space<vmem>>, vector<1x128x128xbf16>
    %118 = vector.shape_cast %117 : vector<1x128x128xbf16> to vector<128x128xbf16>
    %cst_81 = arith.constant dense<0.000000e+00> : vector<64x128xf32>
    %119 = tpu.matmul %116, %118, %cst_81 {dimension_numbers = #tpu.dot_dimension_numbers<[1], [0], [0], [1], [0, 0, 1, 1], [], []>} : vector<64x128xbf16>, vector<128x128xbf16>, vector<64x128xf32> -> vector<64x128xf32>
    %120 = arith.addf %113, %119 : vector<64x128xf32>
    %c2_82 = arith.constant 2 : index
    %c1_83 = arith.constant 1 : index
    %c0_84 = arith.constant 0 : index
    %121 = tpu.strided_load %arg11[%c2_82, %c1_83, %c0_84] {strides = array<i32: 2, 2, 1>} : memref<18x24x128xf32, #tpu.memory_space<vmem>>, vector<8x8x128xf32>
    %122 = vector.shape_cast %121 : vector<8x8x128xf32> to vector<64x128xf32>
    %123 = arith.truncf %122 : vector<64x128xf32> to vector<64x128xbf16>
    %c7 = arith.constant 7 : index
    %c0_85 = arith.constant 0 : index
    %c0_86 = arith.constant 0 : index
    %124 = vector.load %arg12[%c7, %c0_85, %c0_86] : memref<9x128x128xbf16, #tpu.memory_space<vmem>>, vector<1x128x128xbf16>
    %125 = vector.shape_cast %124 : vector<1x128x128xbf16> to vector<128x128xbf16>
    %cst_87 = arith.constant dense<0.000000e+00> : vector<64x128xf32>
    %126 = tpu.matmul %123, %125, %cst_87 {dimension_numbers = #tpu.dot_dimension_numbers<[1], [0], [0], [1], [0, 0, 1, 1], [], []>} : vector<64x128xbf16>, vector<128x128xbf16>, vector<64x128xf32> -> vector<64x128xf32>
    %127 = arith.addf %120, %126 : vector<64x128xf32>
    %c2_88 = arith.constant 2 : index
    %c2_89 = arith.constant 2 : index
    %c0_90 = arith.constant 0 : index
    %128 = tpu.strided_load %arg11[%c2_88, %c2_89, %c0_90] {strides = array<i32: 2, 2, 1>} : memref<18x24x128xf32, #tpu.memory_space<vmem>>, vector<8x8x128xf32>
    %129 = vector.shape_cast %128 : vector<8x8x128xf32> to vector<64x128xf32>
    %130 = arith.truncf %129 : vector<64x128xf32> to vector<64x128xbf16>
    %c8 = arith.constant 8 : index
    %c0_91 = arith.constant 0 : index
    %c0_92 = arith.constant 0 : index
    %131 = vector.load %arg12[%c8, %c0_91, %c0_92] : memref<9x128x128xbf16, #tpu.memory_space<vmem>>, vector<1x128x128xbf16>
    %132 = vector.shape_cast %131 : vector<1x128x128xbf16> to vector<128x128xbf16>
    %cst_93 = arith.constant dense<0.000000e+00> : vector<64x128xf32>
    %133 = tpu.matmul %130, %132, %cst_93 {dimension_numbers = #tpu.dot_dimension_numbers<[1], [0], [0], [1], [0, 0, 1, 1], [], []>} : vector<64x128xbf16>, vector<128x128xbf16>, vector<64x128xf32> -> vector<64x128xf32>
    %134 = arith.addf %127, %133 : vector<64x128xf32>
    %c0_94 = arith.constant 0 : index
    %c0_95 = arith.constant 0 : index
    %135 = vector.load %arg7[%c0_94, %c0_95] : memref<1x128xf32, #tpu.memory_space<vmem>>, vector<1x128xf32>
    %136 = vector.broadcast %135 : vector<1x128xf32> to vector<64x128xf32>
    %137 = arith.addf %134, %136 : vector<64x128xf32>
    %cst_96 = arith.constant 0.000000e+00 : f32
    %138 = vector.broadcast %cst_96 : f32 to vector<64x128xf32>
    %139 = arith.maximumf %137, %138 : vector<64x128xf32>
    %140 = arith.truncf %139 : vector<64x128xf32> to vector<64x128xbf16>
    %c0_97 = arith.constant 0 : index
    %c0_98 = arith.constant 0 : index
    %c0_99 = arith.constant 0 : index
    %141 = vector.load %arg2[%c0_97, %c0_98, %c0_99] : memref<1x64x128xbf16, #tpu.memory_space<vmem>>, vector<1x64x128xbf16>
    %142 = vector.shape_cast %141 : vector<1x64x128xbf16> to vector<64x128xbf16>
    %143 = tpu.concatenate %140, %142 in 1 : vector<64x128xbf16>, vector<64x128xbf16> -> vector<64x256xbf16>
    %c0_100 = arith.constant 0 : index
    %c0_101 = arith.constant 0 : index
    %144 = vector.load %arg8[%c0_100, %c0_101] : memref<256x128xbf16, #tpu.memory_space<vmem>>, vector<256x128xbf16>
    %cst_102 = arith.constant dense<0.000000e+00> : vector<64x128xf32>
    %145 = tpu.matmul %143, %144, %cst_102 {dimension_numbers = #tpu.dot_dimension_numbers<[1], [0], [0], [1], [0, 0, 1, 1], [], []>} : vector<64x256xbf16>, vector<256x128xbf16>, vector<64x128xf32> -> vector<64x128xf32>
    %c0_103 = arith.constant 0 : index
    %c0_104 = arith.constant 0 : index
    %146 = vector.load %arg9[%c0_103, %c0_104] : memref<1x128xf32, #tpu.memory_space<vmem>>, vector<1x128xf32>
    %147 = vector.broadcast %146 : vector<1x128xf32> to vector<64x128xf32>
    %148 = arith.addf %145, %147 : vector<64x128xf32>
    %cst_105 = arith.constant 0.000000e+00 : f32
    %149 = vector.broadcast %cst_105 : f32 to vector<64x128xf32>
    %150 = arith.maximumf %148, %149 : vector<64x128xf32>
    %c0_106 = arith.constant 0 : index
    %c0_107 = arith.constant 0 : index
    %c0_108 = arith.constant 0 : index
    %151 = vector.load %arg10[%c0_106, %c0_107, %c0_108] : memref<1x64x128xf32, #tpu.memory_space<vmem>>, vector<1x64x128xf32>
    %152 = vector.shape_cast %151 : vector<1x64x128xf32> to vector<64x128xf32>
    %153 = vector.shape_cast %150 : vector<64x128xf32> to vector<1x64x128xf32>
    tpu.vector_store %arg10[%c0_106, %c0_107, %c0_108], %153 {strides = array<i32>} : memref<1x64x128xf32, #tpu.memory_space<vmem>>, vector<1x64x128xf32>,
    return
  }
  func.func @transform_0(%arg0: i32) -> (i32, i32, i32) {
    %c0_i32 = arith.constant 0 : i32
    %c0_i32_0 = arith.constant 0 : i32
    %c0_i32_1 = arith.constant 0 : i32
    return %arg0, %c0_i32, %c0_i32_0 : i32, i32, i32
  }
  func.func @transform_1(%arg0: i32) -> (i32, i32, i32) {
    %c0_i32 = arith.constant 0 : i32
    %c0_i32_0 = arith.constant 0 : i32
    %c0_i32_1 = arith.constant 0 : i32
    return %arg0, %c0_i32, %c0_i32_0 : i32, i32, i32
  }
  func.func @transform_2(%arg0: i32) -> (i32, i32) {
    %c0_i32 = arith.constant 0 : i32
    %c0_i32_0 = arith.constant 0 : i32
    %c0_i32_1 = arith.constant 0 : i32
    return %c0_i32, %c0_i32_0 : i32, i32
  }
  func.func @transform_3(%arg0: i32) -> (i32, i32) {
    %c0_i32 = arith.constant 0 : i32
    %c0_i32_0 = arith.constant 0 : i32
    %c0_i32_1 = arith.constant 0 : i32
    return %c0_i32, %c0_i32_0 : i32, i32
  }
  func.func @transform_4(%arg0: i32) -> (i32, i32) {
    %c0_i32 = arith.constant 0 : i32
    %c0_i32_0 = arith.constant 0 : i32
    %c0_i32_1 = arith.constant 0 : i32
    return %c0_i32, %c0_i32_0 : i32, i32
  }
  func.func @transform_5(%arg0: i32) -> (i32, i32, i32, i32) {
    %c0_i32 = arith.constant 0 : i32
    %c0_i32_0 = arith.constant 0 : i32
    %c0_i32_1 = arith.constant 0 : i32
    %c0_i32_2 = arith.constant 0 : i32
    %c0_i32_3 = arith.constant 0 : i32
    return %c0_i32, %c0_i32_0, %c0_i32_1, %c0_i32_2 : i32, i32, i32, i32
  }
  func.func @transform_6(%arg0: i32) -> (i32, i32) {
    %c0_i32 = arith.constant 0 : i32
    %c0_i32_0 = arith.constant 0 : i32
    %c0_i32_1 = arith.constant 0 : i32
    return %c0_i32, %c0_i32_0 : i32, i32
  }
  func.func @transform_7(%arg0: i32) -> (i32, i32) {
    %c0_i32 = arith.constant 0 : i32
    %c0_i32_0 = arith.constant 0 : i32
    %c0_i32_1 = arith.constant 0 : i32
    return %c0_i32, %c0_i32_0 : i32, i32
  }
  func.func @transform_8(%arg0: i32) -> (i32, i32) {
    %c0_i32 = arith.constant 0 : i32
    %c0_i32_0 = arith.constant 0 : i32
    %c0_i32_1 = arith.constant 0 : i32
    return %c0_i32, %c0_i32_0 : i32, i32
  }
  func.func @transform_9(%arg0: i32) -> (i32, i32, i32) {
    %c0_i32 = arith.constant 0 : i32
    %c0_i32_0 = arith.constant 0 : i32
    %c0_i32_1 = arith.constant 0 : i32
    return %arg0, %c0_i32, %c0_i32_0 : i32, i32, i32
  }
}

</mosaic_0001>

<llo_original>
// kernel: bottleneck_forward.1
$region0: #{bottleneck_forward.1}
  #allocation0 [shape = 'u32[]', space=smem, size = 0x4, offset = 0x4, fixed_abs, tag = 'smem constant byte address 0x4 - core index']
  #allocation1 [shape = 'u32[144,128]{1,0:T(1,128)}', space=vmem, size = 0x12000, scoped, tag = 'internal scratch']
  #allocation2 [shape = 'f32[18,24,128]{2,1,0:T(8,128)}', space=vmem, size = 0x36000, scoped, tag = 'scratch operand']
  #allocation3 [shape = 'bf16[9,128,128]{2,1,0:T(8,128)(2,1)}', space=vmem, size = 0x48000, scoped, tag = 'scratch operand']
  %s0 = inlined_call_operand.vmem [shape: bf16[2,432,128], index: 0, kind: input, shape index: {}]
  %s1 = inlined_call_operand.vmem [shape: bf16[2,64,128], index: 1, kind: input, shape index: {}]
  %s2 = inlined_call_operand.vmem [shape: bf16[128,128], index: 2, kind: input, shape index: {}]
  %s3 = inlined_call_operand.vmem [shape: f32[1,128], index: 3, kind: input, shape index: {}]
  %s4 = inlined_call_operand.vmem [shape: bf16[128,128], index: 4, kind: input, shape index: {}]
  %s5 = inlined_call_operand.vmem [shape: bf16[4,9,128,128], index: 5, kind: input, shape index: {}]
  %s6 = inlined_call_operand.vmem [shape: f32[1,128], index: 6, kind: input, shape index: {}]
  %s7 = inlined_call_operand.vmem [shape: bf16[256,128], index: 7, kind: input, shape index: {}]
  %s8 = inlined_call_operand.vmem [shape: f32[1,128], index: 8, kind: input, shape index: {}]
  %s9 = inlined_call_operand.vmem [shape: f32[2,64,128], index: 9, kind: output, shape index: {}]
  %s10 = sld [smem:[#allocation0]]
  $region69: #{bottleneck_forward.1} parent=0
    _
  %s12 = ssub.s32 1, %s10
  %s13 = scalar_select 0, %s12, %s10
  loop: start=0, step=1, limit=4
  $region2: #{bottleneck_forward.1} parent=0 // loop_pre_header
    _
  $region3: #{bottleneck_forward.1} parent=0 // loop_header
    %s15 = sphi 0, %s19
    %p16 = scmp.ge.s32.totalorder %s15, 4
    %s25 = sphi 0, %s27
    %s28 = sphi 0, %s25
    %s29 = sphi 0, %s28
    %s45 = sphi 0, %s29
    %s51 = sphi 0, %s53
    %s54 = sphi 0, %s51
    %s55 = sphi 0, %s54
    %s71 = sphi 0, %s55
    %s75 = sphi 0, %s75
    %s77 = sphi 0, %s75
    %s78 = sphi 0, %s77
    %s92 = sphi 0, %s78
    %s96 = sphi 0, %s96
    %s98 = sphi 0, %s96
    %s99 = sphi 0, %s98
    %s113 = sphi 0, %s99
    %s117 = sphi 0, %s117
    %s119 = sphi 0, %s117
    %s120 = sphi 0, %s119
    %s134 = sphi 0, %s120
    %s138 = sphi 0, %s138
    %s140 = sphi 0, %s138
    %s141 = sphi 0, %s140
    %s155 = sphi 0, %s141
    %s159 = sphi 0, %s159
    %s161 = sphi 0, %s159
    %s162 = sphi 0, %s161
    %s176 = sphi 0, %s162
    %s180 = sphi 0, %s180
    %s182 = sphi 0, %s180
    %s183 = sphi 0, %s182
    %s197 = sphi 0, %s183
    %s201 = sphi 0, %s201
    %s203 = sphi 0, %s201
    %s204 = sphi 0, %s203
    %s218 = sphi 0, %s204
    %s224 = sphi 0, %s226
    %s227 = sphi 0, %s224
    %s228 = sphi 0, %s227
    %s244 = sphi 0, %s228
  $region4: #{bottleneck_forward.1} parent=0 // loop_header_branch
    %18 = sbr.rel (%p16) target = $region8
  $region5: #{bottleneck_forward.1} parent=0 // loop_body
    %s20 = ssub.s32 %s15, 1
    %s21 = ssub.s32 %s15, 2
    %s22 = sadd.s32 %s15, 1
    %s23 = ssub.s32 %s15, %s22
    %p24 = scmp.eq.s32.totalorder %s23, 0
    %s26 = sadd.s32 %s25, 1
    %s27 = scalar_select %p24, %s25, %s26
    %p30 = pneg %p24
    %p31 = scmp.eq.s32.totalorder %s15, 1
    %p32 = por %p30, %p31
    %p33 = scmp.ne.s32.totalorder %s25, %s28
    %p34 = scmp.eq.s32.totalorder %s15, 0
    %p35 = por %p33, %p34
    %p36 = scmp.ne.s32.totalorder %s25, %s28
    %p37 = scmp.eq.s32.totalorder %s20, 1
    %p38 = por %p36, %p37
    %p39 = scmp.ne.s32.totalorder %s28, %s29
    %p40 = scmp.eq.s32.totalorder %s20, 0
    %p41 = por %p39, %p40
    %p42 = scmp.ne.s32.totalorder %s28, %s29
    %p43 = scmp.eq.s32.totalorder %s21, 1
    %p44 = por %p42, %p43
    %p46 = scmp.ne.s32.totalorder %s29, %s45
    %p47 = scmp.eq.s32.totalorder %s21, 0
    %p48 = por %p46, %p47
    %s49 = ssub.s32 %s15, %s22
    %p50 = scmp.eq.s32.totalorder %s49, 0
    %s52 = sadd.s32 %s51, 1
    %s53 = scalar_select %p50, %s51, %s52
    %p56 = pneg %p50
    %p57 = scmp.eq.s32.totalorder %s15, 1
    %p58 = por %p56, %p57
    %p59 = scmp.ne.s32.totalorder %s51, %s54
    %p60 = scmp.eq.s32.totalorder %s15, 0
    %p61 = por %p59, %p60
    %p62 = scmp.ne.s32.totalorder %s51, %s54
    %p63 = scmp.eq.s32.totalorder %s20, 1
    %p64 = por %p62, %p63
    %p65 = scmp.ne.s32.totalorder %s54, %s55
    %p66 = scmp.eq.s32.totalorder %s20, 0
    %p67 = por %p65, %p66
    %p68 = scmp.ne.s32.totalorder %s54, %s55
    %p69 = scmp.eq.s32.totalorder %s21, 1
    %p70 = por %p68, %p69
    %p72 = scmp.ne.s32.totalorder %s55, %s71
    %p73 = scmp.eq.s32.totalorder %s21, 0
    %p74 = por %p72, %p73
    %s76 = sadd.s32 %s75, 1
    %p79 = scmp.eq.s32.totalorder %s15, 1
    %p80 = scmp.ne.s32.totalorder %s75, %s77
    %p81 = scmp.eq.s32.totalorder %s15, 0
    %p82 = por %p80, %p81
    %p83 = scmp.ne.s32.totalorder %s75, %s77
    %p84 = scmp.eq.s32.totalorder %s20, 1
    %p85 = por %p83, %p84
    %p86 = scmp.ne.s32.totalorder %s77, %s78
    %p87 = scmp.eq.s32.totalorder %s20, 0
    %p88 = por %p86, %p87
    %p89 = scmp.ne.s32.totalorder %s77, %s78
    %p90 = scmp.eq.s32.totalorder %s21, 1
    %p91 = por %p89, %p90
    %p93 = scmp.ne.s32.totalorder %s78, %s92
    %p94 = scmp.eq.s32.totalorder %s21, 0
    %p95 = por %p93, %p94
    %s97 = sadd.s32 %s96, 1
    %p100 = scmp.eq.s32.totalorder %s15, 1
    %p101 = scmp.ne.s32.totalorder %s96, %s98
    %p102 = scmp.eq.s32.totalorder %s15, 0
    %p103 = por %p101, %p102
    %p104 = scmp.ne.s32.totalorder %s96, %s98
    %p105 = scmp.eq.s32.totalorder %s20, 1
    %p106 = por %p104, %p105
    %p107 = scmp.ne.s32.totalorder %s98, %s99
    %p108 = scmp.eq.s32.totalorder %s20, 0
    %p109 = por %p107, %p108
    %p110 = scmp.ne.s32.totalorder %s98, %s99
    %p111 = scmp.eq.s32.totalorder %s21, 1
    %p112 = por %p110, %p111
    %p114 = scmp.ne.s32.totalorder %s99, %s113
    %p115 = scmp.eq.s32.totalorder %s21, 0
    %p116 = por %p114, %p115
    %s118 = sadd.s32 %s117, 1
    %p121 = scmp.eq.s32.totalorder %s15, 1
    %p122 = scmp.ne.s32.totalorder %s117, %s119
    %p123 = scmp.eq.s32.totalorder %s15, 0
    %p124 = por %p122, %p123
    %p125 = scmp.ne.s32.totalorder %s117, %s119
    %p126 = scmp.eq.s32.totalorder %s20, 1
    %p127 = por %p125, %p126
    %p128 = scmp.ne.s32.totalorder %s119, %s120
    %p129 = scmp.eq.s32.totalorder %s20, 0
    %p130 = por %p128, %p129
    %p131 = scmp.ne.s32.totalorder %s119, %s120
    %p132 = scmp.eq.s32.totalorder %s21, 1
    %p133 = por %p131, %p132
    %p135 = scmp.ne.s32.totalorder %s120, %s134
    %p136 = scmp.eq.s32.totalorder %s21, 0
    %p137 = por %p135, %p136
    %s139 = sadd.s32 %s138, 1
    %p142 = scmp.eq.s32.totalorder %s15, 1
    %p143 = scmp.ne.s32.totalorder %s138, %s140
    %p144 = scmp.eq.s32.totalorder %s15, 0
    %p145 = por %p143, %p144
    %p146 = scmp.ne.s32.totalorder %s138, %s140
    %p147 = scmp.eq.s32.totalorder %s20, 1
    %p148 = por %p146, %p147
    %p149 = scmp.ne.s32.totalorder %s140, %s141
    %p150 = scmp.eq.s32.totalorder %s20, 0
    %p151 = por %p149, %p150
    %p152 = scmp.ne.s32.totalorder %s140, %s141
    %p153 = scmp.eq.s32.totalorder %s21, 1
    %p154 = por %p152, %p153
    %p156 = scmp.ne.s32.totalorder %s141, %s155
    %p157 = scmp.eq.s32.totalorder %s21, 0
    %p158 = por %p156, %p157
    %s160 = sadd.s32 %s159, 1
    %p163 = scmp.eq.s32.totalorder %s15, 1
    %p164 = scmp.ne.s32.totalorder %s159, %s161
    %p165 = scmp.eq.s32.totalorder %s15, 0
    %p166 = por %p164, %p165
    %p167 = scmp.ne.s32.totalorder %s159, %s161
    %p168 = scmp.eq.s32.totalorder %s20, 1
    %p169 = por %p167, %p168
    %p170 = scmp.ne.s32.totalorder %s161, %s162
    %p171 = scmp.eq.s32.totalorder %s20, 0
    %p172 = por %p170, %p171
    %p173 = scmp.ne.s32.totalorder %s161, %s162
    %p174 = scmp.eq.s32.totalorder %s21, 1
    %p175 = por %p173, %p174
    %p177 = scmp.ne.s32.totalorder %s162, %s176
    %p178 = scmp.eq.s32.totalorder %s21, 0
    %p179 = por %p177, %p178
    %s181 = sadd.s32 %s180, 1
    %p184 = scmp.eq.s32.totalorder %s15, 1
    %p185 = scmp.ne.s32.totalorder %s180, %s182
    %p186 = scmp.eq.s32.totalorder %s15, 0
    %p187 = por %p185, %p186
    %p188 = scmp.ne.s32.totalorder %s180, %s182
    %p189 = scmp.eq.s32.totalorder %s20, 1
    %p190 = por %p188, %p189
    %p191 = scmp.ne.s32.totalorder %s182, %s183
    %p192 = scmp.eq.s32.totalorder %s20, 0
    %p193 = por %p191, %p192
    %p194 = scmp.ne.s32.totalorder %s182, %s183
    %p195 = scmp.eq.s32.totalorder %s21, 1
    %p196 = por %p194, %p195
    %p198 = scmp.ne.s32.totalorder %s183, %s197
    %p199 = scmp.eq.s32.totalorder %s21, 0
    %p200 = por %p198, %p199
    %s202 = sadd.s32 %s201, 1
    %p205 = scmp.eq.s32.totalorder %s15, 1
    %p206 = scmp.ne.s32.totalorder %s201, %s203
    %p207 = scmp.eq.s32.totalorder %s15, 0
    %p208 = por %p206, %p207
    %p209 = scmp.ne.s32.totalorder %s201, %s203
    %p210 = scmp.eq.s32.totalorder %s20, 1
    %p211 = por %p209, %p210
    %p212 = scmp.ne.s32.totalorder %s203, %s204
    %p213 = scmp.eq.s32.totalorder %s20, 0
    %p214 = por %p212, %p213
    %p215 = scmp.ne.s32.totalorder %s203, %s204
    %p216 = scmp.eq.s32.totalorder %s21, 1
    %p217 = por %p215, %p216
    %p219 = scmp.ne.s32.totalorder %s204, %s218
    %p220 = scmp.eq.s32.totalorder %s21, 0
    %p221 = por %p219, %p220
    %s222 = ssub.s32 %s15, %s22
    %p223 = scmp.eq.s32.totalorder %s222, 0
    %s225 = sadd.s32 %s224, 1
    %s226 = scalar_select %p223, %s224, %s225
    %p229 = pneg %p223
    %p230 = scmp.eq.s32.totalorder %s15, 1
    %p231 = por %p229, %p230
    %p232 = scmp.ne.s32.totalorder %s224, %s227
    %p233 = scmp.eq.s32.totalorder %s15, 0
    %p234 = por %p232, %p233
    %p235 = scmp.ne.s32.totalorder %s224, %s227
    %p236 = scmp.eq.s32.totalorder %s20, 1
    %p237 = por %p235, %p236
    %p238 = scmp.ne.s32.totalorder %s227, %s228
    %p239 = scmp.eq.s32.totalorder %s20, 0
    %p240 = por %p238, %p239
    %p241 = scmp.ne.s32.totalorder %s227, %s228
    %p242 = scmp.eq.s32.totalorder %s21, 1
    %p243 = por %p241, %p242
    %p245 = scmp.ne.s32.totalorder %s228, %s244
    %p246 = scmp.eq.s32.totalorder %s21, 0
    %p247 = por %p245, %p246
    %p248 = scmp.le.s32.totalorder 1, %s15
    %p249 = scmp.lt.s32.totalorder %s15, 3
    %p250 = pnand %p248, %p249
    %p251 = pneg %p250
    // Predicated region
    $region9: #{bottleneck_forward.1} parent=5 // pred_check
      _
    $region10: #{bottleneck_forward.1} parent=5 // pred_check_branch
      %253 = sbr.rel (%p250) target = $region12
    $region11: #{bottleneck_forward.1} parent=5 // pred_region
      %s254 = ssub.s32 %s15, 1
      // Predicated region
      $region13: #{bottleneck_forward.1} parent=11 // pred_check
        %p255 = pneg %p88
      $region14: #{bottleneck_forward.1} parent=11 // pred_check_branch
        %257 = sbr.rel (%p255) target = $region16
      $region15: #{bottleneck_forward.1} parent=11 // pred_region
        _
      $region16: #{bottleneck_forward.1} parent=11 // pred_fallthru
        _
      // Predicated region
      $region17: #{bottleneck_forward.1} parent=11 // pred_check
        %p258 = pneg %p109
      $region18: #{bottleneck_forward.1} parent=11 // pred_check_branch
        %260 = sbr.rel (%p258) target = $region20
      $region19: #{bottleneck_forward.1} parent=11 // pred_region
        _
      $region20: #{bottleneck_forward.1} parent=11 // pred_fallthru
        _
      // Predicated region
      $region21: #{bottleneck_forward.1} parent=11 // pred_check
        %p261 = pneg %p130
      $region22: #{bottleneck_forward.1} parent=11 // pred_check_branch
        %263 = sbr.rel (%p261) target = $region24
      $region23: #{bottleneck_forward.1} parent=11 // pred_region
        _
      $region24: #{bottleneck_forward.1} parent=11 // pred_fallthru
        _
      // Predicated region
      $region25: #{bottleneck_forward.1} parent=11 // pred_check
        %p264 = pneg %p151
      $region26: #{bottleneck_forward.1} parent=11 // pred_check_branch
        %266 = sbr.rel (%p264) target = $region28
      $region27: #{bottleneck_forward.1} parent=11 // pred_region
        _
      $region28: #{bottleneck_forward.1} parent=11 // pred_fallthru
        _
      // Predicated region
      $region29: #{bottleneck_forward.1} parent=11 // pred_check
        %p267 = pneg %p172
      $region30: #{bottleneck_forward.1} parent=11 // pred_check_branch
        %269 = sbr.rel (%p267) target = $region32
      $region31: #{bottleneck_forward.1} parent=11 // pred_region
        _
      $region32: #{bottleneck_forward.1} parent=11 // pred_fallthru
        _
      // Predicated region
      $region33: #{bottleneck_forward.1} parent=11 // pred_check
        %p270 = pneg %p193
      $region34: #{bottleneck_forward.1} parent=11 // pred_check_branch
        %272 = sbr.rel (%p270) target = $region36
      $region35: #{bottleneck_forward.1} parent=11 // pred_region
        _
      $region36: #{bottleneck_forward.1} parent=11 // pred_fallthru
        _
      // Predicated region
      $region37: #{bottleneck_forward.1} parent=11 // pred_check
        %p273 = pneg %p214
      $region38: #{bottleneck_forward.1} parent=11 // pred_check_branch
        %275 = sbr.rel (%p273) target = $region40
      $region39: #{bottleneck_forward.1} parent=11 // pred_region
        _
      $region40: #{bottleneck_forward.1} parent=11 // pred_fallthru
        _
    $region12: #{bottleneck_forward.1} parent=5 // pred_fallthru
      _
    %p276 = scmp.lt.s32.totalorder %s15, 2
    // Predicated region
    $region41: #{bottleneck_forward.1} parent=5 // pred_check
      %p277 = pneg %p276
    $region42: #{bottleneck_forward.1} parent=5 // pred_check_branch
      %279 = sbr.rel (%p277) target = $region44
    $region43: #{bottleneck_forward.1} parent=5 // pred_region
      // Predicated region
      $region45: #{bottleneck_forward.1} parent=43 // pred_check
        %p280 = pneg %p35
      $region46: #{bottleneck_forward.1} parent=43 // pred_check_branch
        %282 = sbr.rel (%p280) target = $region48
      $region47: #{bottleneck_forward.1} parent=43 // pred_region
        %p283 = scmp.lt.s32.totalorder %s15, 1
        %s284 = scalar_select %p283, %s15, 1
        %s285 = smul.addr %s284, 54
        %s286 = smul.addr %s285, 4
        %s287 = scalar_lea.vmem %s0, %s286
      $region48: #{bottleneck_forward.1} parent=43 // pred_fallthru
        _
      // Predicated region
      $region49: #{bottleneck_forward.1} parent=43 // pred_check
        %p288 = pneg %p61
      $region50: #{bottleneck_forward.1} parent=43 // pred_check_branch
        %290 = sbr.rel (%p288) target = $region52
      $region51: #{bottleneck_forward.1} parent=43 // pred_region
        %p291 = scmp.lt.s32.totalorder %s15, 1
        %s292 = scalar_select %p291, %s15, 1
        %s293 = smul.addr %s292, 8
        %s294 = smul.addr %s293, 4
        %s295 = scalar_lea.vmem %s1, %s294
      $region52: #{bottleneck_forward.1} parent=43 // pred_fallthru
        _
    $region44: #{bottleneck_forward.1} parent=5 // pred_fallthru
      _
    %p296 = scmp.le.s32.totalorder 1, %s15
    %p297 = scmp.lt.s32.totalorder %s15, 3
    %p298 = pnand %p296, %p297
    %p299 = pneg %p298
    // Predicated region
    $region53: #{bottleneck_forward.1} parent=5 // pred_check
      _
    $region54: #{bottleneck_forward.1} parent=5 // pred_check_branch
      %301 = sbr.rel (%p298) target = $region56
    $region55: #{bottleneck_forward.1} parent=5 // pred_region
      %s302 = ssub.s32 %s15, 1
      %p303 = scmp.lt.s32.totalorder %s20, 1
      %s304 = scalar_select %p303, %s20, 1
      %s305 = smul.addr %s304, 54
      %s306 = smul.addr %s305, 4
      %s307 = scalar_lea.vmem %s0, %s306
      %p308 = pneg %p41
      %p309 = pneg %p38
      %p310 = scmp.lt.s32.totalorder %s20, 1
      %s311 = scalar_select %p310, %s20, 1
      %s312 = smul.addr %s311, 8
      %s313 = smul.addr %s312, 4
      %s314 = scalar_lea.vmem %s1, %s313
      %p315 = pneg %p67
      %p316 = pneg %p64
      %p317 = pneg %p88
      %p318 = pneg %p85
      %p319 = pneg %p109
      %p320 = pneg %p106
      %p321 = pneg %p130
      %p322 = pneg %p127
      %p323 = pneg %p151
      %p324 = pneg %p148
      %p325 = pneg %p172
      %p326 = pneg %p169
      %p327 = pneg %p193
      %p328 = pneg %p190
      %p329 = pneg %p214
      %p330 = pneg %p211
      %p331 = pneg %p240
      %p332 = pneg %p237
      %p333 = scmp.lt.s32.totalorder %s20, 1
      %s334 = scalar_select %p333, %s20, 1
      %s335 = smul.addr %s334, 8
      %s336 = smul.addr %s335, 8
      %s337 = scalar_lea.vmem %s9, %s336
      %p338 = scmp.lt.s32.totalorder %s20, 1
      %s339 = scalar_select %p338, %s20, 1
      %s340 = smul.addr %s339, 54
      %s341 = smul.addr %s340, 4
      %s342 = scalar_lea.vmem %s0, %s341
      %p343 = scmp.lt.s32.totalorder %s20, 1
      %s344 = scalar_select %p343, %s20, 1
      %s345 = smul.addr %s344, 8
      %s346 = smul.addr %s345, 4
      %s347 = scalar_lea.vmem %s1, %s346
      %p348 = scmp.lt.s32.totalorder %s20, 1
      %s349 = scalar_select %p348, %s20, 1
      %s350 = smul.addr %s349, 8
      %s351 = smul.addr %s350, 8
      %s352 = scalar_lea.vmem %s9, %s351
      %v354 = vld [vmem:[%s342] sm:$0xf]
      %v355 = vld [vmem:[%s342 + $0x4] sm:$0xf]
      %v356 = vld [vmem:[%s342 + $0x8] sm:$0xf]
      %v357 = vld [vmem:[%s342 + $0xc] sm:$0xf]
      %v358 = vld [vmem:[%s342 + $0x10] sm:$0xf]
      %v359 = vld [vmem:[%s342 + $0x14] sm:$0xf]
      %v360 = vld [vmem:[%s342 + $0x18] sm:$0xf]
      %v361 = vld [vmem:[%s342 + $0x1c] sm:$0xf]
      %v362 = vld [vmem:[%s342 + $0x20] sm:$0xf]
      %v363 = vld [vmem:[%s342 + $0x24] sm:$0xf]
      %v364 = vld [vmem:[%s342 + $0x28] sm:$0xf]
      %v365 = vld [vmem:[%s342 + $0x2c] sm:$0xf]
      %v366 = vld [vmem:[%s342 + $0x30] sm:$0xf]
      %v367 = vld [vmem:[%s342 + $0x34] sm:$0xf]
      %v368 = vld [vmem:[%s342 + $0x38] sm:$0xf]
      %v369 = vld [vmem:[%s342 + $0x3c] sm:$0xf]
      %v370 = vld [vmem:[%s342 + $0x40] sm:$0xf]
      %v371 = vld [vmem:[%s342 + $0x44] sm:$0xf]
      %v372 = vld [vmem:[%s342 + $0x48] sm:$0xf]
      %v373 = vld [vmem:[%s342 + $0x4c] sm:$0xf]
      %v374 = vld [vmem:[%s342 + $0x50] sm:$0xf]
      %v375 = vld [vmem:[%s342 + $0x54] sm:$0xf]
      %v376 = vld [vmem:[%s342 + $0x58] sm:$0xf]
      %v377 = vld [vmem:[%s342 + $0x5c] sm:$0xf]
      %v378 = vld [vmem:[%s342 + $0x60] sm:$0xf]
      %v379 = vld [vmem:[%s342 + $0x64] sm:$0xf]
      %v380 = vld [vmem:[%s342 + $0x68] sm:$0xf]
      %v381 = vld [vmem:[%s342 + $0x6c] sm:$0xf]
      %v382 = vld [vmem:[%s342 + $0x70] sm:$0xf]
      %v383 = vld [vmem:[%s342 + $0x74] sm:$0xf]
      %v384 = vld [vmem:[%s342 + $0x78] sm:$0xf]
      %v385 = vld [vmem:[%s342 + $0x7c] sm:$0xf]
      %v386 = vld [vmem:[%s342 + $0x80] sm:$0xf]
      %v387 = vld [vmem:[%s342 + $0x84] sm:$0xf]
      %v388 = vld [vmem:[%s342 + $0x88] sm:$0xf]
      %v389 = vld [vmem:[%s342 + $0x8c] sm:$0xf]
      %v390 = vld [vmem:[%s342 + $0x90] sm:$0xf]
      %v391 = vld [vmem:[%s342 + $0x94] sm:$0xf]
      %v392 = vld [vmem:[%s342 + $0x98] sm:$0xf]
      %v393 = vld [vmem:[%s342 + $0x9c] sm:$0xf]
      %v394 = vld [vmem:[%s342 + $0xa0] sm:$0xf]
      %v395 = vld [vmem:[%s342 + $0xa4] sm:$0xf]
      %v396 = vld [vmem:[%s342 + $0xa8] sm:$0xf]
      %v397 = vld [vmem:[%s342 + $0xac] sm:$0xf]
      %v398 = vld [vmem:[%s342 + $0xb0] sm:$0xf]
      %v399 = vld [vmem:[%s342 + $0xb4] sm:$0xf]
      %v400 = vld [vmem:[%s342 + $0xb8] sm:$0xf]
      %v401 = vld [vmem:[%s342 + $0xbc] sm:$0xf]
      %v402 = vld [vmem:[%s342 + $0xc0] sm:$0xf]
      %v403 = vld [vmem:[%s342 + $0xc4] sm:$0xf]
      %v404 = vld [vmem:[%s342 + $0xc8] sm:$0xf]
      %v405 = vld [vmem:[%s342 + $0xcc] sm:$0xf]
      %v406 = vld [vmem:[%s342 + $0xd0] sm:$0xf]
      %v407 = vld [vmem:[%s342 + $0xd4] sm:$0xf]
      %v408 = vld [vmem:[%s2] sm:$0xf]
      %v409 = vld [vmem:[%s2 + $0x4] sm:$0xf]
      %v410 = vld [vmem:[%s2 + $0x8] sm:$0xf]
      %v411 = vld [vmem:[%s2 + $0xc] sm:$0xf]
      %v412 = vld [vmem:[%s2 + $0x10] sm:$0xf]
      %v413 = vld [vmem:[%s2 + $0x14] sm:$0xf]
      %v414 = vld [vmem:[%s2 + $0x18] sm:$0xf]
      %v415 = vld [vmem:[%s2 + $0x1c] sm:$0xf]
      %v416 = vld [vmem:[%s2 + $0x20] sm:$0xf]
      %v417 = vld [vmem:[%s2 + $0x24] sm:$0xf]
      %v418 = vld [vmem:[%s2 + $0x28] sm:$0xf]
      %v419 = vld [vmem:[%s2 + $0x2c] sm:$0xf]
      %v420 = vld [vmem:[%s2 + $0x30] sm:$0xf]
      %v421 = vld [vmem:[%s2 + $0x34] sm:$0xf]
      %v422 = vld [vmem:[%s2 + $0x38] sm:$0xf]
      %v423 = vld [vmem:[%s2 + $0x3c] sm:$0xf]
      %v424 = vld [vmem:[%s3] sm:$0x1]
      %v426 = vlaneseq
      %v427 = vshrl.u32 %v426, 7
      %v428 = vsub.s32 0, %v427
      %v429 = vrot.slane %v424, %v428
      %v485 = vunpack.c.l.b16 %v354
      %v486 = vunpack.c.l.b16 %v355
      %v487 = vunpack.c.l.b16 %v356
      %v488 = vunpack.c.l.b16 %v357
      %v489 = vunpack.c.l.b16 %v358
      %v490 = vunpack.c.l.b16 %v359
      %v491 = vunpack.c.l.b16 %v360
      %v492 = vunpack.c.l.b16 %v361
      %v493 = vunpack.c.l.b16 %v362
      %v494 = vunpack.c.l.b16 %v363
      %v495 = vunpack.c.l.b16 %v364
      %v496 = vunpack.c.l.b16 %v365
      %v497 = vunpack.c.l.b16 %v366
      %v498 = vunpack.c.l.b16 %v367
      %v499 = vunpack.c.l.b16 %v368
      %v500 = vunpack.c.l.b16 %v369
      %v501 = vunpack.c.l.b16 %v370
      %v502 = vunpack.c.l.b16 %v371
      %v503 = vunpack.c.l.b16 %v372
      %v504 = vunpack.c.l.b16 %v373
      %v505 = vunpack.c.l.b16 %v374
      %v506 = vunpack.c.l.b16 %v375
      %v507 = vunpack.c.l.b16 %v376
      %v508 = vunpack.c.l.b16 %v377
      %v509 = vunpack.c.l.b16 %v378
      %v510 = vunpack.c.l.b16 %v379
      %v511 = vunpack.c.l.b16 %v380
      %v512 = vunpack.c.l.b16 %v381
      %v513 = vunpack.c.l.b16 %v382
      %v514 = vunpack.c.l.b16 %v383
      %v515 = vunpack.c.l.b16 %v384
      %v516 = vunpack.c.l.b16 %v385
      %v517 = vunpack.c.l.b16 %v386
      %v518 = vunpack.c.l.b16 %v387
      %v519 = vunpack.c.l.b16 %v388
      %v520 = vunpack.c.l.b16 %v389
      %v521 = vunpack.c.l.b16 %v390
      %v522 = vunpack.c.l.b16 %v391
      %v523 = vunpack.c.l.b16 %v392
      %v524 = vunpack.c.l.b16 %v393
      %v525 = vunpack.c.l.b16 %v394
      %v526 = vunpack.c.l.b16 %v395
      %v527 = vunpack.c.l.b16 %v396
      %v528 = vunpack.c.l.b16 %v397
      %v529 = vunpack.c.l.b16 %v398
      %v530 = vunpack.c.l.b16 %v399
      %v531 = vunpack.c.l.b16 %v400
      %v532 = vunpack.c.l.b16 %v401
      %v533 = vunpack.c.l.b16 %v402
      %v534 = vunpack.c.l.b16 %v403
      %v535 = vunpack.c.l.b16 %v404
      %v536 = vunpack.c.l.b16 %v405
      %v537 = vunpack.c.l.b16 %v406
      %v538 = vunpack.c.l.b16 %v407
      %v539 = vpack.c.b16 %v486, %v485
      %v540 = vpack.c.b16 %v488, %v487
      %v541 = vpack.c.b16 %v490, %v489
      %v542 = vpack.c.b16 %v492, %v491
      %v543 = vpack.c.b16 %v494, %v493
      %v544 = vpack.c.b16 %v496, %v495
      %v545 = vpack.c.b16 %v498, %v497
      %v546 = vpack.c.b16 %v500, %v499
      %v547 = vpack.c.b16 %v502, %v501
      %v548 = vpack.c.b16 %v504, %v503
      %v549 = vpack.c.b16 %v506, %v505
      %v550 = vpack.c.b16 %v508, %v507
      %v551 = vpack.c.b16 %v510, %v509
      %v552 = vpack.c.b16 %v512, %v511
      %v553 = vpack.c.b16 %v514, %v513
      %v554 = vpack.c.b16 %v516, %v515
      %v555 = vpack.c.b16 %v518, %v517
      %v556 = vpack.c.b16 %v520, %v519
      %v557 = vpack.c.b16 %v522, %v521
      %v558 = vpack.c.b16 %v524, %v523
      %v559 = vpack.c.b16 %v526, %v525
      %v560 = vpack.c.b16 %v528, %v527
      %v561 = vpack.c.b16 %v530, %v529
      %v562 = vpack.c.b16 %v532, %v531
      %v563 = vpack.c.b16 %v534, %v533
      %v564 = vpack.c.b16 %v536, %v535
      %v565 = vpack.c.b16 %v538, %v537
      %v609 = vunpack.c.l.b16 %v408
      %v610 = vunpack.c.l.b16 %v409
      %v611 = vunpack.c.l.b16 %v410
      %v612 = vunpack.c.l.b16 %v411
      %v613 = vunpack.c.l.b16 %v412
      %v614 = vunpack.c.l.b16 %v413
      %v615 = vunpack.c.l.b16 %v414
      %v616 = vunpack.c.l.b16 %v415
      %v617 = vunpack.c.l.b16 %v416
      %v618 = vunpack.c.l.b16 %v417
      %v619 = vunpack.c.l.b16 %v418
      %v620 = vunpack.c.l.b16 %v419
      %v621 = vunpack.c.l.b16 %v420
      %v622 = vunpack.c.l.b16 %v421
      %v623 = vunpack.c.l.b16 %v422
      %v624 = vunpack.c.l.b16 %v423
      %v625 = vpack.c.b16 %v610, %v609
      %v626 = vpack.c.b16 %v612, %v611
      %v627 = vpack.c.b16 %v614, %v613
      %v628 = vpack.c.b16 %v616, %v615
      %v629 = vpack.c.b16 %v618, %v617
      %v630 = vpack.c.b16 %v620, %v619
      %v631 = vpack.c.b16 %v622, %v621
      %v632 = vpack.c.b16 %v624, %v623
      %641 = vmatprep.subr.bf16.mxu0 0
      %642 = vmatpush1.bf16.msra.mxu0 %v632
      %643 = vmatprep.subr.bf16.mxu0 0
      %644 = vmatpush1.bf16.msra.mxu0 %v631
      %645 = vmatprep.subr.bf16.mxu0 0
      %646 = vmatpush1.bf16.msra.mxu0 %v630
      %647 = vmatprep.subr.bf16.mxu0 0
      %648 = vmatpush1.bf16.msra.mxu0 %v629
      %649 = vmatprep.subr.bf16.mxu0 0
      %650 = vmatpush1.bf16.msra.mxu0 %v628
      %651 = vmatprep.subr.bf16.mxu0 0
      %652 = vmatpush1.bf16.msra.mxu0 %v627
      %653 = vmatprep.subr.bf16.mxu0 0
      %654 = vmatpush1.bf16.msra.mxu0 %v626
      %655 = vmatprep.subr.bf16.mxu0 0
      %656 = vmatpush1.bf16.msra.mxu0 %v625
      %657 = vmatprep.subr.bf16.mxu0 0
      %658 = vmatpush2.bf16.msra.mxu0 0
      %659 = vmatprep.subr.bf16.mxu0 0
      %660 = vmatpush2.bf16.msra.mxu0 0
      %661 = vmatprep.subr.bf16.mxu0 0
      %662 = vmatpush2.bf16.msra.mxu0 0
      %663 = vmatprep.subr.bf16.mxu0 0
      %664 = vmatpush2.bf16.msra.mxu0 0
      %665 = vmatprep.subr.bf16.mxu0 0
      %666 = vmatpush2.bf16.msra.mxu0 0
      %667 = vmatprep.subr.bf16.mxu0 0
      %668 = vmatpush2.bf16.msra.mxu0 0
      %669 = vmatprep.subr.bf16.mxu0 0
      %670 = vmatpush2.bf16.msra.mxu0 0
      %671 = vmatprep.subr.bf16.mxu0 0
      %672 = vmatpush2.bf16.msra.mxu0 0
      %673 = vmatprep.mubr.bf16.mxu0 0
      %674 = vmatmul.mubr.bf16.gmra.mxu0 %v539
      %v675 = vpop.f32.mrf.mxu0
      %v676 = vadd.f32 %v429, %v675
      %v677 = vpop.f32.mrf.mxu0
      %v678 = vpop.f32.mrf.mxu0
      %v679 = vadd.f32 %v429, %v678
      %v680 = vpop.f32.mrf.mxu0
      %681 = vmatprep.mubr.bf16.mxu0 0
      %682 = vmatmul.mubr.bf16.gmra.mxu0 %v540
      %v683 = vpop.f32.mrf.mxu0
      %v684 = vadd.f32 %v429, %v683
      %v685 = vpop.f32.mrf.mxu0
      %v686 = vpop.f32.mrf.mxu0
      %v687 = vadd.f32 %v429, %v686
      %v688 = vpop.f32.mrf.mxu0
      %689 = vmatprep.mubr.bf16.mxu0 0
      %690 = vmatmul.mubr.bf16.gmra.mxu0 %v541
      %v691 = vpop.f32.mrf.mxu0
      %v692 = vadd.f32 %v429, %v691
      %v693 = vpop.f32.mrf.mxu0
      %v694 = vpop.f32.mrf.mxu0
      %v695 = vadd.f32 %v429, %v694
      %v696 = vpop.f32.mrf.mxu0
      %697 = vmatprep.mubr.bf16.mxu0 0
      %698 = vmatmul.mubr.bf16.gmra.mxu0 %v542
      %v699 = vpop.f32.mrf.mxu0
      %v700 = vadd.f32 %v429, %v699
      %v701 = vpop.f32.mrf.mxu0
      %v702 = vpop.f32.mrf.mxu0
      %v703 = vadd.f32 %v429, %v702
      %v704 = vpop.f32.mrf.mxu0
      %705 = vmatprep.mubr.bf16.mxu0 0
      %706 = vmatmul.mubr.bf16.gmra.mxu0 %v543
      %v707 = vpop.f32.mrf.mxu0
      %v708 = vadd.f32 %v429, %v707
      %v709 = vpop.f32.mrf.mxu0
      %v710 = vpop.f32.mrf.mxu0
      %v711 = vadd.f32 %v429, %v710
      %v712 = vpop.f32.mrf.mxu0
      %713 = vmatprep.mubr.bf16.mxu0 0
      %714 = vmatmul.mubr.bf16.gmra.mxu0 %v544
      %v715 = vpop.f32.mrf.mxu0
      %v716 = vadd.f32 %v429, %v715
      %v717 = vpop.f32.mrf.mxu0
      %v718 = vpop.f32.mrf.mxu0
      %v719 = vadd.f32 %v429, %v718
      %v720 = vpop.f32.mrf.mxu0
      %721 = vmatprep.mubr.bf16.mxu0 0
      %722 = vmatmul.mubr.bf16.gmra.mxu0 %v545
      %v723 = vpop.f32.mrf.mxu0
      %v724 = vadd.f32 %v429, %v723
      %v725 = vpop.f32.mrf.mxu0
      %v726 = vpop.f32.mrf.mxu0
      %v727 = vadd.f32 %v429, %v726
      %v728 = vpop.f32.mrf.mxu0
      %729 = vmatprep.mubr.bf16.mxu0 0
      %730 = vmatmul.mubr.bf16.gmra.mxu0 %v546
      %v731 = vpop.f32.mrf.mxu0
      %v732 = vadd.f32 %v429, %v731
      %v733 = vpop.f32.mrf.mxu0
      %v734 = vpop.f32.mrf.mxu0
      %v735 = vadd.f32 %v429, %v734
      %v736 = vpop.f32.mrf.mxu0
      %737 = vmatprep.mubr.bf16.mxu0 0
      %738 = vmatmul.mubr.bf16.gmra.mxu0 %v547
      %v739 = vpop.f32.mrf.mxu0
      %v740 = vadd.f32 %v429, %v739
      %v741 = vpop.f32.mrf.mxu0
      %v742 = vpop.f32.mrf.mxu0
      %v743 = vadd.f32 %v429, %v742
      %v744 = vpop.f32.mrf.mxu0
      %745 = vmatprep.mubr.bf16.mxu0 0
      %746 = vmatmul.mubr.bf16.gmra.mxu0 %v548
      %v747 = vpop.f32.mrf.mxu0
      %v748 = vadd.f32 %v429, %v747
      %v749 = vpop.f32.mrf.mxu0
      %v750 = vpop.f32.mrf.mxu0
      %v751 = vadd.f32 %v429, %v750
      %v752 = vpop.f32.mrf.mxu0
      %753 = vmatprep.mubr.bf16.mxu0 0
      %754 = vmatmul.mubr.bf16.gmra.mxu0 %v549
      %v755 = vpop.f32.mrf.mxu0
      %v756 = vadd.f32 %v429, %v755
      %v757 = vpop.f32.mrf.mxu0
      %v758 = vpop.f32.mrf.mxu0
      %v759 = vadd.f32 %v429, %v758
      %v760 = vpop.f32.mrf.mxu0
      %761 = vmatprep.mubr.bf16.mxu0 0
      %762 = vmatmul.mubr.bf16.gmra.mxu0 %v550
      %v763 = vpop.f32.mrf.mxu0
      %v764 = vadd.f32 %v429, %v763
      %v765 = vpop.f32.mrf.mxu0
      %v766 = vpop.f32.mrf.mxu0
      %v767 = vadd.f32 %v429, %v766
      %v768 = vpop.f32.mrf.mxu0
      %769 = vmatprep.mubr.bf16.mxu0 0
      %770 = vmatmul.mubr.bf16.gmra.mxu0 %v551
      %v771 = vpop.f32.mrf.mxu0
      %v772 = vadd.f32 %v429, %v771
      %v773 = vpop.f32.mrf.mxu0
      %v774 = vpop.f32.mrf.mxu0
      %v775 = vadd.f32 %v429, %v774
      %v776 = vpop.f32.mrf.mxu0
      %777 = vmatprep.mubr.bf16.mxu0 0
      %778 = vmatmul.mubr.bf16.gmra.mxu0 %v552
      %v779 = vpop.f32.mrf.mxu0
      %v780 = vadd.f32 %v429, %v779
      %v781 = vpop.f32.mrf.mxu0
      %v782 = vpop.f32.mrf.mxu0
      %v783 = vadd.f32 %v429, %v782
      %v784 = vpop.f32.mrf.mxu0
      %785 = vmatprep.mubr.bf16.mxu0 0
      %786 = vmatmul.mubr.bf16.gmra.mxu0 %v553
      %v787 = vpop.f32.mrf.mxu0
      %v788 = vadd.f32 %v429, %v787
      %v789 = vpop.f32.mrf.mxu0
      %v790 = vpop.f32.mrf.mxu0
      %v791 = vadd.f32 %v429, %v790
      %v792 = vpop.f32.mrf.mxu0
      %793 = vmatprep.mubr.bf16.mxu0 0
      %794 = vmatmul.mubr.bf16.gmra.mxu0 %v554
      %v795 = vpop.f32.mrf.mxu0
      %v796 = vadd.f32 %v429, %v795
      %v797 = vpop.f32.mrf.mxu0
      %v798 = vpop.f32.mrf.mxu0
      %v799 = vadd.f32 %v429, %v798
      %v800 = vpop.f32.mrf.mxu0
      %801 = vmatprep.mubr.bf16.mxu0 0
      %802 = vmatmul.mubr.bf16.gmra.mxu0 %v555
      %v803 = vpop.f32.mrf.mxu0
      %v804 = vadd.f32 %v429, %v803
      %v805 = vpop.f32.mrf.mxu0
      %v806 = vpop.f32.mrf.mxu0
      %v807 = vadd.f32 %v429, %v806
      %v808 = vpop.f32.mrf.mxu0
      %809 = vmatprep.mubr.bf16.mxu0 0
      %810 = vmatmul.mubr.bf16.gmra.mxu0 %v556
      %v811 = vpop.f32.mrf.mxu0
      %v812 = vadd.f32 %v429, %v811
      %v813 = vpop.f32.mrf.mxu0
      %v814 = vpop.f32.mrf.mxu0
      %v815 = vadd.f32 %v429, %v814
      %v816 = vpop.f32.mrf.mxu0
      %817 = vmatprep.mubr.bf16.mxu0 0
      %818 = vmatmul.mubr.bf16.gmra.mxu0 %v557
      %v819 = vpop.f32.mrf.mxu0
      %v820 = vadd.f32 %v429, %v819
      %v821 = vpop.f32.mrf.mxu0
      %v822 = vpop.f32.mrf.mxu0
      %v823 = vadd.f32 %v429, %v822
      %v824 = vpop.f32.mrf.mxu0
      %825 = vmatprep.mubr.bf16.mxu0 0
      %826 = vmatmul.mubr.bf16.gmra.mxu0 %v558
      %v827 = vpop.f32.mrf.mxu0
      %v828 = vadd.f32 %v429, %v827
      %v829 = vpop.f32.mrf.mxu0
      %v830 = vpop.f32.mrf.mxu0
      %v831 = vadd.f32 %v429, %v830
      %v832 = vpop.f32.mrf.mxu0
      %833 = vmatprep.mubr.bf16.mxu0 0
      %834 = vmatmul.mubr.bf16.gmra.mxu0 %v559
      %v835 = vpop.f32.mrf.mxu0
      %v836 = vadd.f32 %v429, %v835
      %v837 = vpop.f32.mrf.mxu0
      %v838 = vpop.f32.mrf.mxu0
      %v839 = vadd.f32 %v429, %v838
      %v840 = vpop.f32.mrf.mxu0
      %841 = vmatprep.mubr.bf16.mxu0 0
      %842 = vmatmul.mubr.bf16.gmra.mxu0 %v560
      %v843 = vpop.f32.mrf.mxu0
      %v844 = vadd.f32 %v429, %v843
      %v845 = vpop.f32.mrf.mxu0
      %v846 = vpop.f32.mrf.mxu0
      %v847 = vadd.f32 %v429, %v846
      %v848 = vpop.f32.mrf.mxu0
      %849 = vmatprep.mubr.bf16.mxu0 0
      %850 = vmatmul.mubr.bf16.gmra.mxu0 %v561
      %v851 = vpop.f32.mrf.mxu0
      %v852 = vadd.f32 %v429, %v851
      %v853 = vpop.f32.mrf.mxu0
      %v854 = vpop.f32.mrf.mxu0
      %v855 = vadd.f32 %v429, %v854
      %v856 = vpop.f32.mrf.mxu0
      %857 = vmatprep.mubr.bf16.mxu0 0
      %858 = vmatmul.mubr.bf16.gmra.mxu0 %v562
      %v859 = vpop.f32.mrf.mxu0
      %v860 = vadd.f32 %v429, %v859
      %v861 = vpop.f32.mrf.mxu0
      %v862 = vpop.f32.mrf.mxu0
      %v863 = vadd.f32 %v429, %v862
      %v864 = vpop.f32.mrf.mxu0
      %865 = vmatprep.mubr.bf16.mxu0 0
      %866 = vmatmul.mubr.bf16.gmra.mxu0 %v563
      %v867 = vpop.f32.mrf.mxu0
      %v868 = vadd.f32 %v429, %v867
      %v869 = vpop.f32.mrf.mxu0
      %v870 = vpop.f32.mrf.mxu0
      %v871 = vadd.f32 %v429, %v870
      %v872 = vpop.f32.mrf.mxu0
      %873 = vmatprep.mubr.bf16.mxu0 0
      %874 = vmatmul.mubr.bf16.gmra.mxu0 %v564
      %v875 = vpop.f32.mrf.mxu0
      %v876 = vadd.f32 %v429, %v875
      %v877 = vpop.f32.mrf.mxu0
      %v878 = vpop.f32.mrf.mxu0
      %v879 = vadd.f32 %v429, %v878
      %v880 = vpop.f32.mrf.mxu0
      %881 = vmatprep.mubr.bf16.mxu0 0
      %882 = vmatmul.mubr.bf16.gmra.mxu0 %v565
      %v883 = vpop.f32.mrf.mxu0
      %v884 = vadd.f32 %v429, %v883
      %v885 = vpop.f32.mrf.mxu0
      %v886 = vpop.f32.mrf.mxu0
      %v887 = vadd.f32 %v429, %v886
      %v888 = vpop.f32.mrf.mxu0
      %889 = vdwg.mxu0
      %v890 = vmax.f32 %v676, 0.0
      %v891 = vmax.f32 %v679, 0.0
      %v892 = vmax.f32 %v684, 0.0
      %v893 = vmax.f32 %v687, 0.0
      %v894 = vmax.f32 %v692, 0.0
      %v895 = vmax.f32 %v695, 0.0
      %v896 = vmax.f32 %v700, 0.0
      %v897 = vmax.f32 %v703, 0.0
      %v898 = vmax.f32 %v708, 0.0
      %v899 = vmax.f32 %v711, 0.0
      %v900 = vmax.f32 %v716, 0.0
      %v901 = vmax.f32 %v719, 0.0
      %v902 = vmax.f32 %v724, 0.0
      %v903 = vmax.f32 %v727, 0.0
      %v904 = vmax.f32 %v732, 0.0
      %v905 = vmax.f32 %v735, 0.0
      %v906 = vmax.f32 %v740, 0.0
      %v907 = vmax.f32 %v743, 0.0
      %v908 = vmax.f32 %v748, 0.0
      %v909 = vmax.f32 %v751, 0.0
      %v910 = vmax.f32 %v756, 0.0
      %v911 = vmax.f32 %v759, 0.0
      %v912 = vmax.f32 %v764, 0.0
      %v913 = vmax.f32 %v767, 0.0
      %v914 = vmax.f32 %v772, 0.0
      %v915 = vmax.f32 %v775, 0.0
      %v916 = vmax.f32 %v780, 0.0
      %v917 = vmax.f32 %v783, 0.0
      %v918 = vmax.f32 %v788, 0.0
      %v919 = vmax.f32 %v791, 0.0
      %v920 = vmax.f32 %v796, 0.0
      %v921 = vmax.f32 %v799, 0.0
      %v922 = vmax.f32 %v804, 0.0
      %v923 = vmax.f32 %v807, 0.0
      %v924 = vmax.f32 %v812, 0.0
      %v925 = vmax.f32 %v815, 0.0
      %v926 = vmax.f32 %v820, 0.0
      %v927 = vmax.f32 %v823, 0.0
      %v928 = vmax.f32 %v828, 0.0
      %v929 = vmax.f32 %v831, 0.0
      %v930 = vmax.f32 %v836, 0.0
      %v931 = vmax.f32 %v839, 0.0
      %v932 = vmax.f32 %v844, 0.0
      %v933 = vmax.f32 %v847, 0.0
      %v934 = vmax.f32 %v852, 0.0
      %v935 = vmax.f32 %v855, 0.0
      %v936 = vmax.f32 %v860, 0.0
      %v937 = vmax.f32 %v863, 0.0
      %v938 = vmax.f32 %v868, 0.0
      %v939 = vmax.f32 %v871, 0.0
      %v940 = vmax.f32 %v876, 0.0
      %v941 = vmax.f32 %v879, 0.0
      %v942 = vmax.f32 %v884, 0.0
      %v943 = vmax.f32 %v887, 0.0
      %v944 = vlaneseq
      %v945 = vshrl.u32 %v944, 7
      %v946 = vadd.s32 %v945, 8
      %v947 = vadd.s32 %v945, 16
      %vm948 = vcmp.ge.s32.totalorder %v945, 1
      %vm949 = vcmp.ge.s32.totalorder %v946, 1
      %vm950 = vcmp.ge.s32.totalorder %v947, 1
      %vm951 = vmand 0, %vm948
      %vm952 = vmand 0, %vm949
      %vm953 = vmand 0, %vm950
      %vm954 = vmand 1, %vm948
      %vm955 = vmand 1, %vm949
      %vm956 = vmand 1, %vm950
      %vm957 = vcmp.le.s32.totalorder %v945, 16
      %vm958 = vcmp.le.s32.totalorder %v946, 16
      %vm959 = vcmp.le.s32.totalorder %v947, 16
      %vm960 = vmand %vm951, %vm957
      %vm961 = vmand %vm952, %vm958
      %vm962 = vmand %vm953, %vm959
      %vm963 = vmand %vm954, %vm957
      %vm964 = vmand %vm955, %vm958
      %vm965 = vmand %vm956, %vm959
      %v966 = vsel %vm960, %v890, 0.0
      %v967 = vsel %vm961, %v891, 0.0
      %v968 = vsel %vm962, %v892, 0.0
      %v969 = vsel %vm963, %v893, 0.0
      %v970 = vsel %vm964, %v894, 0.0
      %v971 = vsel %vm965, %v895, 0.0
      %v972 = vsel %vm963, %v896, 0.0
      %v973 = vsel %vm964, %v897, 0.0
      %v974 = vsel %vm965, %v898, 0.0
      %v975 = vsel %vm963, %v899, 0.0
      %v976 = vsel %vm964, %v900, 0.0
      %v977 = vsel %vm965, %v901, 0.0
      %v978 = vsel %vm963, %v902, 0.0
      %v979 = vsel %vm964, %v903, 0.0
      %v980 = vsel %vm965, %v904, 0.0
      %v981 = vsel %vm963, %v905, 0.0
      %v982 = vsel %vm964, %v906, 0.0
      %v983 = vsel %vm965, %v907, 0.0
      %v984 = vsel %vm963, %v908, 0.0
      %v985 = vsel %vm964, %v909, 0.0
      %v986 = vsel %vm965, %v910, 0.0
      %v987 = vsel %vm963, %v911, 0.0
      %v988 = vsel %vm964, %v912, 0.0
      %v989 = vsel %vm965, %v913, 0.0
      %v990 = vsel %vm963, %v914, 0.0
      %v991 = vsel %vm964, %v915, 0.0
      %v992 = vsel %vm965, %v916, 0.0
      %v993 = vsel %vm963, %v917, 0.0
      %v994 = vsel %vm964, %v918, 0.0
      %v995 = vsel %vm965, %v919, 0.0
      %v996 = vsel %vm963, %v920, 0.0
      %v997 = vsel %vm964, %v921, 0.0
      %v998 = vsel %vm965, %v922, 0.0
      %v999 = vsel %vm963, %v923, 0.0
      %v1000 = vsel %vm964, %v924, 0.0
      %v1001 = vsel %vm965, %v925, 0.0
      %v1002 = vsel %vm963, %v926, 0.0
      %v1003 = vsel %vm964, %v927, 0.0
      %v1004 = vsel %vm965, %v928, 0.0
      %v1005 = vsel %vm963, %v929, 0.0
      %v1006 = vsel %vm964, %v930, 0.0
      %v1007 = vsel %vm965, %v931, 0.0
      %v1008 = vsel %vm963, %v932, 0.0
      %v1009 = vsel %vm964, %v933, 0.0
      %v1010 = vsel %vm965, %v934, 0.0
      %v1011 = vsel %vm963, %v935, 0.0
      %v1012 = vsel %vm964, %v936, 0.0
      %v1013 = vsel %vm965, %v937, 0.0
      %v1014 = vsel %vm963, %v938, 0.0
      %v1015 = vsel %vm964, %v939, 0.0
      %v1016 = vsel %vm965, %v940, 0.0
      %v1017 = vsel %vm960, %v941, 0.0
      %v1018 = vsel %vm961, %v942, 0.0
      %v1019 = vsel %vm962, %v943, 0.0
      %1020 = vst [vmem:[#allocation2] sm:$0xff] %v966
      %1021 = vst [vmem:[#allocation2 + $0x8] sm:$0xff] %v967
      %1022 = vst [vmem:[#allocation2 + $0x10] sm:$0xff] %v968
      %1023 = vst [vmem:[#allocation2 + $0x18] sm:$0xff] %v969
      %1024 = vst [vmem:[#allocation2 + $0x20] sm:$0xff] %v970
      %1025 = vst [vmem:[#allocation2 + $0x28] sm:$0xff] %v971
      %1026 = vst [vmem:[#allocation2 + $0x30] sm:$0xff] %v972
      %1027 = vst [vmem:[#allocation2 + $0x38] sm:$0xff] %v973
      %1028 = vst [vmem:[#allocation2 + $0x40] sm:$0xff] %v974
      %1029 = vst [vmem:[#allocation2 + $0x48] sm:$0xff] %v975
      %1030 = vst [vmem:[#allocation2 + $0x50] sm:$0xff] %v976
      %1031 = vst [vmem:[#allocation2 + $0x58] sm:$0xff] %v977
      %1032 = vst [vmem:[#allocation2 + $0x60] sm:$0xff] %v978
      %1033 = vst [vmem:[#allocation2 + $0x68] sm:$0xff] %v979
      %1034 = vst [vmem:[#allocation2 + $0x70] sm:$0xff] %v980
      %1035 = vst [vmem:[#allocation2 + $0x78] sm:$0xff] %v981
      %1036 = vst [vmem:[#allocation2 + $0x80] sm:$0xff] %v982
      %1037 = vst [vmem:[#allocation2 + $0x88] sm:$0xff] %v983
      %1038 = vst [vmem:[#allocation2 + $0x90] sm:$0xff] %v984
      %1039 = vst [vmem:[#allocation2 + $0x98] sm:$0xff] %v985
      %1040 = vst [vmem:[#allocation2 + $0xa0] sm:$0xff] %v986
      %1041 = vst [vmem:[#allocation2 + $0xa8] sm:$0xff] %v987
      %1042 = vst [vmem:[#allocation2 + $0xb0] sm:$0xff] %v988
      %1043 = vst [vmem:[#allocation2 + $0xb8] sm:$0xff] %v989
      %1044 = vst [vmem:[#allocation2 + $0xc0] sm:$0xff] %v990
      %1045 = vst [vmem:[#allocation2 + $0xc8] sm:$0xff] %v991
      %1046 = vst [vmem:[#allocation2 + $0xd0] sm:$0xff] %v992
      %1047 = vst [vmem:[#allocation2 + $0xd8] sm:$0xff] %v993
      %1048 = vst [vmem:[#allocation2 + $0xe0] sm:$0xff] %v994
      %1049 = vst [vmem:[#allocation2 + $0xe8] sm:$0xff] %v995
      %1050 = vst [vmem:[#allocation2 + $0xf0] sm:$0xff] %v996
      %1051 = vst [vmem:[#allocation2 + $0xf8] sm:$0xff] %v997
      %1052 = vst [vmem:[#allocation2 + $0x100] sm:$0xff] %v998
      %1053 = vst [vmem:[#allocation2 + $0x108] sm:$0xff] %v999
      %1054 = vst [vmem:[#allocation2 + $0x110] sm:$0xff] %v1000
      %1055 = vst [vmem:[#allocation2 + $0x118] sm:$0xff] %v1001
      %1056 = vst [vmem:[#allocation2 + $0x120] sm:$0xff] %v1002
      %1057 = vst [vmem:[#allocation2 + $0x128] sm:$0xff] %v1003
      %1058 = vst [vmem:[#allocation2 + $0x130] sm:$0xff] %v1004
      %1059 = vst [vmem:[#allocation2 + $0x138] sm:$0xff] %v1005
      %1060 = vst [vmem:[#allocation2 + $0x140] sm:$0xff] %v1006
      %1061 = vst [vmem:[#allocation2 + $0x148] sm:$0xff] %v1007
      %1062 = vst [vmem:[#allocation2 + $0x150] sm:$0xff] %v1008
      %1063 = vst [vmem:[#allocation2 + $0x158] sm:$0xff] %v1009
      %1064 = vst [vmem:[#allocation2 + $0x160] sm:$0xff] %v1010
      %1065 = vst [vmem:[#allocation2 + $0x168] sm:$0xff] %v1011
      %1066 = vst [vmem:[#allocation2 + $0x170] sm:$0xff] %v1012
      %1067 = vst [vmem:[#allocation2 + $0x178] sm:$0xff] %v1013
      %1068 = vst [vmem:[#allocation2 + $0x180] sm:$0xff] %v1014
      %1069 = vst [vmem:[#allocation2 + $0x188] sm:$0xff] %v1015
      %1070 = vst [vmem:[#allocation2 + $0x190] sm:$0xff] %v1016
      %1071 = vst [vmem:[#allocation2 + $0x198] sm:$0xff] %v1017
      %1072 = vst [vmem:[#allocation2 + $0x1a0] sm:$0xff] %v1018
      %1073 = vst [vmem:[#allocation2 + $0x1a8] sm:$0xff] %v1019
      %v1074 = vadd.f32 %v966, %v967
      %v1075 = vadd.f32 %v1074, %v968
      %v1076 = vadd.f32 %v1075, %v969
      %v1077 = vadd.f32 %v1076, %v970
      %v1078 = vadd.f32 %v1077, %v971
      %v1079 = vadd.f32 %v1078, %v972
      %v1080 = vadd.f32 %v1079, %v973
      %v1081 = vadd.f32 %v1080, %v974
      %v1082 = vadd.f32 %v1081, %v975
      %v1083 = vadd.f32 %v1082, %v976
      %v1084 = vadd.f32 %v1083, %v977
      %v1085 = vadd.f32 %v1084, %v978
      %v1086 = vadd.f32 %v1085, %v979
      %v1087 = vadd.f32 %v1086, %v980
      %v1088 = vadd.f32 %v1087, %v981
      %v1089 = vadd.f32 %v1088, %v982
      %v1090 = vadd.f32 %v1089, %v983
      %v1091 = vadd.f32 %v1090, %v984
      %v1092 = vadd.f32 %v1091, %v985
      %v1093 = vadd.f32 %v1092, %v986
      %v1094 = vadd.f32 %v1093, %v987
      %v1095 = vadd.f32 %v1094, %v988
      %v1096 = vadd.f32 %v1095, %v989
      %v1097 = vadd.f32 %v1096, %v990
      %v1098 = vadd.f32 %v1097, %v991
      %v1099 = vadd.f32 %v1098, %v992
      %v1100 = vadd.f32 %v1099, %v993
      %v1101 = vadd.f32 %v1100, %v994
      %v1102 = vadd.f32 %v1101, %v995
      %v1103 = vadd.f32 %v1102, %v996
      %v1104 = vadd.f32 %v1103, %v997
      %v1105 = vadd.f32 %v1104, %v998
      %v1106 = vadd.f32 %v1105, %v999
      %v1107 = vadd.f32 %v1106, %v1000
      %v1108 = vadd.f32 %v1107, %v1001
      %v1109 = vadd.f32 %v1108, %v1002
      %v1110 = vadd.f32 %v1109, %v1003
      %v1111 = vadd.f32 %v1110, %v1004
      %v1112 = vadd.f32 %v1111, %v1005
      %v1113 = vadd.f32 %v1112, %v1006
      %v1114 = vadd.f32 %v1113, %v1007
      %v1115 = vadd.f32 %v1114, %v1008
      %v1116 = vadd.f32 %v1115, %v1009
      %v1117 = vadd.f32 %v1116, %v1010
      %v1118 = vadd.f32 %v1117, %v1011
      %v1119 = vadd.f32 %v1118, %v1012
      %v1120 = vadd.f32 %v1119, %v1013
      %v1121 = vadd.f32 %v1120, %v1014
      %v1122 = vadd.f32 %v1121, %v1015
      %v1123 = vadd.f32 %v1122, %v1016
      %v1124 = vadd.f32 %v1123, %v1017
      %v1125 = vadd.f32 %v1124, %v1018
      %v1126 = vadd.f32 %v1125, %v1019
      %v1127 = vrot.slane %v1126, 4
      %v1128 = vadd.f32 %v1126, %v1127
      %v1129 = vrot.slane %v1128, 2
      %v1130 = vadd.f32 %v1128, %v1129
      %v1131 = vrot.slane %v1130, 1
      %v1132 = vadd.f32 %v1130, %v1131
      %v1133 = vmul.f32 %v1132, 0.00390625
      %v1134 = vpack.c.bf16 %v1133, %v1133
      %v1135 = vld [vmem:[%s4] sm:$0xf]
      %v1136 = vld [vmem:[%s4 + $0x4] sm:$0xf]
      %v1137 = vld [vmem:[%s4 + $0x8] sm:$0xf]
      %v1138 = vld [vmem:[%s4 + $0xc] sm:$0xf]
      %v1139 = vld [vmem:[%s4 + $0x10] sm:$0xf]
      %v1140 = vld [vmem:[%s4 + $0x14] sm:$0xf]
      %v1141 = vld [vmem:[%s4 + $0x18] sm:$0xf]
      %v1142 = vld [vmem:[%s4 + $0x1c] sm:$0xf]
      %v1143 = vld [vmem:[%s4 + $0x20] sm:$0xf]
      %v1144 = vld [vmem:[%s4 + $0x24] sm:$0xf]
      %v1145 = vld [vmem:[%s4 + $0x28] sm:$0xf]
      %v1146 = vld [vmem:[%s4 + $0x2c] sm:$0xf]
      %v1147 = vld [vmem:[%s4 + $0x30] sm:$0xf]
      %v1148 = vld [vmem:[%s4 + $0x34] sm:$0xf]
      %v1149 = vld [vmem:[%s4 + $0x38] sm:$0xf]
      %v1150 = vld [vmem:[%s4 + $0x3c] sm:$0xf]
      %v1167 = vunpack.c.l.b16 %v1135
      %v1168 = vunpack.c.l.b16 %v1136
      %v1169 = vunpack.c.l.b16 %v1137
      %v1170 = vunpack.c.l.b16 %v1138
      %v1171 = vunpack.c.l.b16 %v1139
      %v1172 = vunpack.c.l.b16 %v1140
      %v1173 = vunpack.c.l.b16 %v1141
      %v1174 = vunpack.c.l.b16 %v1142
      %v1175 = vunpack.c.l.b16 %v1143
      %v1176 = vunpack.c.l.b16 %v1144
      %v1177 = vunpack.c.l.b16 %v1145
      %v1178 = vunpack.c.l.b16 %v1146
      %v1179 = vunpack.c.l.b16 %v1147
      %v1180 = vunpack.c.l.b16 %v1148
      %v1181 = vunpack.c.l.b16 %v1149
      %v1182 = vunpack.c.l.b16 %v1150
      %v1183 = vpack.c.b16 %v1168, %v1167
      %v1184 = vpack.c.b16 %v1170, %v1169
      %v1185 = vpack.c.b16 %v1172, %v1171
      %v1186 = vpack.c.b16 %v1174, %v1173
      %v1187 = vpack.c.b16 %v1176, %v1175
      %v1188 = vpack.c.b16 %v1178, %v1177
      %v1189 = vpack.c.b16 %v1180, %v1179
      %v1190 = vpack.c.b16 %v1182, %v1181
      %1199 = vmatprep.subr.bf16.mxu0 0
      %1200 = vmatpush1.bf16.msra.mxu0 %v1190
      %1201 = vmatprep.subr.bf16.mxu0 0
      %1202 = vmatpush1.bf16.msra.mxu0 %v1189
      %1203 = vmatprep.subr.bf16.mxu0 0
      %1204 = vmatpush1.bf16.msra.mxu0 %v1188
      %1205 = vmatprep.subr.bf16.mxu0 0
      %1206 = vmatpush1.bf16.msra.mxu0 %v1187
      %1207 = vmatprep.subr.bf16.mxu0 0
      %1208 = vmatpush1.bf16.msra.mxu0 %v1186
      %1209 = vmatprep.subr.bf16.mxu0 0
      %1210 = vmatpush1.bf16.msra.mxu0 %v1185
      %1211 = vmatprep.subr.bf16.mxu0 0
      %1212 = vmatpush1.bf16.msra.mxu0 %v1184
      %1213 = vmatprep.subr.bf16.mxu0 0
      %1214 = vmatpush1.bf16.msra.mxu0 %v1183
      %1215 = vmatprep.subr.bf16.mxu0 0
      %1216 = vmatpush2.bf16.msra.mxu0 0
      %1217 = vmatprep.subr.bf16.mxu0 0
      %1218 = vmatpush2.bf16.msra.mxu0 0
      %1219 = vmatprep.subr.bf16.mxu0 0
      %1220 = vmatpush2.bf16.msra.mxu0 0
      %1221 = vmatprep.subr.bf16.mxu0 0
      %1222 = vmatpush2.bf16.msra.mxu0 0
      %1223 = vmatprep.subr.bf16.mxu0 0
      %1224 = vmatpush2.bf16.msra.mxu0 0
      %1225 = vmatprep.subr.bf16.mxu0 0
      %1226 = vmatpush2.bf16.msra.mxu0 0
      %1227 = vmatprep.subr.bf16.mxu0 0
      %1228 = vmatpush2.bf16.msra.mxu0 0
      %1229 = vmatprep.subr.bf16.mxu0 0
      %1230 = vmatpush2.bf16.msra.mxu0 0
      %1231 = vmatprep.mubr.bf16.mxu0 0
      %1232 = vmatmul.mubr.bf16.gmra.mxu0 %v1134
      %v1233 = vpop.f32.mrf.mxu0
      %v1234 = vadd.f32 0.0, %v1233
      %v1235 = vpop.f32.mrf.mxu0
      %v1236 = vpop.f32.mrf.mxu0
      %v1237 = vpop.f32.mrf.mxu0
      %1238 = vdwg.mxu0
      %v1239 = vxor.u32 %v1234, 2147483648
      %v1240 = vmul.f32 %v1239, 1.442695
      %v1241 = vpow.pop %v1240
      %v1242 = vadd.f32 %v1241, 1.0
      %v1243 = vrcp.pop %v1242
      %v1244 = vmul.f32 1.0, %v1243
      %v1245 = vpack.c.bf16 %v1244, %v1244
      %v1246 = vld [vmem:[%s5] sm:$0xf]
      %v1247 = vld [vmem:[%s5 + $0x4] sm:$0xf]
      %v1248 = vld [vmem:[%s5 + $0x8] sm:$0xf]
      %v1249 = vld [vmem:[%s5 + $0xc] sm:$0xf]
      %v1250 = vld [vmem:[%s5 + $0x10] sm:$0xf]
      %v1251 = vld [vmem:[%s5 + $0x14] sm:$0xf]
      %v1252 = vld [vmem:[%s5 + $0x18] sm:$0xf]
      %v1253 = vld [vmem:[%s5 + $0x1c] sm:$0xf]
      %v1254 = vld [vmem:[%s5 + $0x20] sm:$0xf]
      %v1255 = vld [vmem:[%s5 + $0x24] sm:$0xf]
      %v1256 = vld [vmem:[%s5 + $0x28] sm:$0xf]
      %v1257 = vld [vmem:[%s5 + $0x2c] sm:$0xf]
      %v1258 = vld [vmem:[%s5 + $0x30] sm:$0xf]
      %v1259 = vld [vmem:[%s5 + $0x34] sm:$0xf]
      %v1260 = vld [vmem:[%s5 + $0x38] sm:$0xf]
      %v1261 = vld [vmem:[%s5 + $0x3c] sm:$0xf]
      %v1262 = vld [vmem:[%s5 + $0x40] sm:$0xf]
      %v1263 = vld [vmem:[%s5 + $0x44] sm:$0xf]
      %v1264 = vld [vmem:[%s5 + $0x48] sm:$0xf]
      %v1265 = vld [vmem:[%s5 + $0x4c] sm:$0xf]
      %v1266 = vld [vmem:[%s5 + $0x50] sm:$0xf]
      %v1267 = vld [vmem:[%s5 + $0x54] sm:$0xf]
      %v1268 = vld [vmem:[%s5 + $0x58] sm:$0xf]
      %v1269 = vld [vmem:[%s5 + $0x5c] sm:$0xf]
      %v1270 = vld [vmem:[%s5 + $0x60] sm:$0xf]
      %v1271 = vld [vmem:[%s5 + $0x64] sm:$0xf]
      %v1272 = vld [vmem:[%s5 + $0x68] sm:$0xf]
      %v1273 = vld [vmem:[%s5 + $0x6c] sm:$0xf]
      %v1274 = vld [vmem:[%s5 + $0x70] sm:$0xf]
      %v1275 = vld [vmem:[%s5 + $0x74] sm:$0xf]
      %v1276 = vld [vmem:[%s5 + $0x78] sm:$0xf]
      %v1277 = vld [vmem:[%s5 + $0x7c] sm:$0xf]
      %v1278 = vld [vmem:[%s5 + $0x80] sm:$0xf]
      %v1279 = vld [vmem:[%s5 + $0x84] sm:$0xf]
      %v1280 = vld [vmem:[%s5 + $0x88] sm:$0xf]
      %v1281 = vld [vmem:[%s5 + $0x8c] sm:$0xf]
      %v1282 = vld [vmem:[%s5 + $0x90] sm:$0xf]
      %v1283 = vld [vmem:[%s5 + $0x94] sm:$0xf]
      %v1284 = vld [vmem:[%s5 + $0x98] sm:$0xf]
      %v1285 = vld [vmem:[%s5 + $0x9c] sm:$0xf]
      %v1286 = vld [vmem:[%s5 + $0xa0] sm:$0xf]
      %v1287 = vld [vmem:[%s5 + $0xa4] sm:$0xf]
      %v1288 = vld [vmem:[%s5 + $0xa8] sm:$0xf]
      %v1289 = vld [vmem:[%s5 + $0xac] sm:$0xf]
      %v1290 = vld [vmem:[%s5 + $0xb0] sm:$0xf]
      %v1291 = vld [vmem:[%s5 + $0xb4] sm:$0xf]
      %v1292 = vld [vmem:[%s5 + $0xb8] sm:$0xf]
      %v1293 = vld [vmem:[%s5 + $0xbc] sm:$0xf]
      %v1294 = vld [vmem:[%s5 + $0xc0] sm:$0xf]
      %v1295 = vld [vmem:[%s5 + $0xc4] sm:$0xf]
      %v1296 = vld [vmem:[%s5 + $0xc8] sm:$0xf]
      %v1297 = vld [vmem:[%s5 + $0xcc] sm:$0xf]
      %v1298 = vld [vmem:[%s5 + $0xd0] sm:$0xf]
      %v1299 = vld [vmem:[%s5 + $0xd4] sm:$0xf]
      %v1300 = vld [vmem:[%s5 + $0xd8] sm:$0xf]
      %v1301 = vld [vmem:[%s5 + $0xdc] sm:$0xf]
      %v1302 = vld [vmem:[%s5 + $0xe0] sm:$0xf]
      %v1303 = vld [vmem:[%s5 + $0xe4] sm:$0xf]
      %v1304 = vld [vmem:[%s5 + $0xe8] sm:$0xf]
      %v1305 = vld [vmem:[%s5 + $0xec] sm:$0xf]
      %v1306 = vld [vmem:[%s5 + $0xf0] sm:$0xf]
      %v1307 = vld [vmem:[%s5 + $0xf4] sm:$0xf]
      %v1308 = vld [vmem:[%s5 + $0xf8] sm:$0xf]
      %v1309 = vld [vmem:[%s5 + $0xfc] sm:$0xf]
      %v1310 = vld [vmem:[%s5 + $0x100] sm:$0xf]
      %v1311 = vld [vmem:[%s5 + $0x104] sm:$0xf]
      %v1312 = vld [vmem:[%s5 + $0x108] sm:$0xf]
      %v1313 = vld [vmem:[%s5 + $0x10c] sm:$0xf]
      %v1314 = vld [vmem:[%s5 + $0x110] sm:$0xf]
      %v1315 = vld [vmem:[%s5 + $0x114] sm:$0xf]
      %v1316 = vld [vmem:[%s5 + $0x118] sm:$0xf]
      %v1317 = vld [vmem:[%s5 + $0x11c] sm:$0xf]
      %v1318 = vld [vmem:[%s5 + $0x120] sm:$0xf]
      %v1319 = vld [vmem:[%s5 + $0x124] sm:$0xf]
      %v1320 = vld [vmem:[%s5 + $0x128] sm:$0xf]
      %v1321 = vld [vmem:[%s5 + $0x12c] sm:$0xf]
      %v1322 = vld [vmem:[%s5 + $0x130] sm:$0xf]
      %v1323 = vld [vmem:[%s5 + $0x134] sm:$0xf]
      %v1324 = vld [vmem:[%s5 + $0x138] sm:$0xf]
      %v1325 = vld [vmem:[%s5 + $0x13c] sm:$0xf]
      %v1326 = vld [vmem:[%s5 + $0x140] sm:$0xf]
      %v1327 = vld [vmem:[%s5 + $0x144] sm:$0xf]
      %v1328 = vld [vmem:[%s5 + $0x148] sm:$0xf]
      %v1329 = vld [vmem:[%s5 + $0x14c] sm:$0xf]
      %v1330 = vld [vmem:[%s5 + $0x150] sm:$0xf]
      %v1331 = vld [vmem:[%s5 + $0x154] sm:$0xf]
      %v1332 = vld [vmem:[%s5 + $0x158] sm:$0xf]
      %v1333 = vld [vmem:[%s5 + $0x15c] sm:$0xf]
      %v1334 = vld [vmem:[%s5 + $0x160] sm:$0xf]
      %v1335 = vld [vmem:[%s5 + $0x164] sm:$0xf]
      %v1336 = vld [vmem:[%s5 + $0x168] sm:$0xf]
      %v1337 = vld [vmem:[%s5 + $0x16c] sm:$0xf]
      %v1338 = vld [vmem:[%s5 + $0x170] sm:$0xf]
      %v1339 = vld [vmem:[%s5 + $0x174] sm:$0xf]
      %v1340 = vld [vmem:[%s5 + $0x178] sm:$0xf]
      %v1341 = vld [vmem:[%s5 + $0x17c] sm:$0xf]
      %v1342 = vld [vmem:[%s5 + $0x180] sm:$0xf]
      %v1343 = vld [vmem:[%s5 + $0x184] sm:$0xf]
      %v1344 = vld [vmem:[%s5 + $0x188] sm:$0xf]
      %v1345 = vld [vmem:[%s5 + $0x18c] sm:$0xf]
      %v1346 = vld [vmem:[%s5 + $0x190] sm:$0xf]
      %v1347 = vld [vmem:[%s5 + $0x194] sm:$0xf]
      %v1348 = vld [vmem:[%s5 + $0x198] sm:$0xf]
      %v1349 = vld [vmem:[%s5 + $0x19c] sm:$0xf]
      %v1350 = vld [vmem:[%s5 + $0x1a0] sm:$0xf]
      %v1351 = vld [vmem:[%s5 + $0x1a4] sm:$0xf]
      %v1352 = vld [vmem:[%s5 + $0x1a8] sm:$0xf]
      %v1353 = vld [vmem:[%s5 + $0x1ac] sm:$0xf]
      %v1354 = vld [vmem:[%s5 + $0x1b0] sm:$0xf]
      %v1355 = vld [vmem:[%s5 + $0x1b4] sm:$0xf]
      %v1356 = vld [vmem:[%s5 + $0x1b8] sm:$0xf]
      %v1357 = vld [vmem:[%s5 + $0x1bc] sm:$0xf]
      %v1358 = vld [vmem:[%s5 + $0x1c0] sm:$0xf]
      %v1359 = vld [vmem:[%s5 + $0x1c4] sm:$0xf]
      %v1360 = vld [vmem:[%s5 + $0x1c8] sm:$0xf]
      %v1361 = vld [vmem:[%s5 + $0x1cc] sm:$0xf]
      %v1362 = vld [vmem:[%s5 + $0x1d0] sm:$0xf]
      %v1363 = vld [vmem:[%s5 + $0x1d4] sm:$0xf]
      %v1364 = vld [vmem:[%s5 + $0x1d8] sm:$0xf]
      %v1365 = vld [vmem:[%s5 + $0x1dc] sm:$0xf]
      %v1366 = vld [vmem:[%s5 + $0x1e0] sm:$0xf]
      %v1367 = vld [vmem:[%s5 + $0x1e4] sm:$0xf]
      %v1368 = vld [vmem:[%s5 + $0x1e8] sm:$0xf]
      %v1369 = vld [vmem:[%s5 + $0x1ec] sm:$0xf]
      %v1370 = vld [vmem:[%s5 + $0x1f0] sm:$0xf]
      %v1371 = vld [vmem:[%s5 + $0x1f4] sm:$0xf]
      %v1372 = vld [vmem:[%s5 + $0x1f8] sm:$0xf]
      %v1373 = vld [vmem:[%s5 + $0x1fc] sm:$0xf]
      %v1374 = vld [vmem:[%s5 + $0x200] sm:$0xf]
      %v1375 = vld [vmem:[%s5 + $0x204] sm:$0xf]
      %v1376 = vld [vmem:[%s5 + $0x208] sm:$0xf]
      %v1377 = vld [vmem:[%s5 + $0x20c] sm:$0xf]
      %v1378 = vld [vmem:[%s5 + $0x210] sm:$0xf]
      %v1379 = vld [vmem:[%s5 + $0x214] sm:$0xf]
      %v1380 = vld [vmem:[%s5 + $0x218] sm:$0xf]
      %v1381 = vld [vmem:[%s5 + $0x21c] sm:$0xf]
      %v1382 = vld [vmem:[%s5 + $0x220] sm:$0xf]
      %v1383 = vld [vmem:[%s5 + $0x224] sm:$0xf]
      %v1384 = vld [vmem:[%s5 + $0x228] sm:$0xf]
      %v1385 = vld [vmem:[%s5 + $0x22c] sm:$0xf]
      %v1386 = vld [vmem:[%s5 + $0x230] sm:$0xf]
      %v1387 = vld [vmem:[%s5 + $0x234] sm:$0xf]
      %v1388 = vld [vmem:[%s5 + $0x238] sm:$0xf]
      %v1389 = vld [vmem:[%s5 + $0x23c] sm:$0xf]
      %s1391 = vtos %v1245
      %v1392 = vstv %s1391
      %v1393 = vpack.i.b16 %v1392, %v1392
      %v1395 = vmul.bf16 %v1393, %v1246
      %v1396 = vmul.bf16 %v1393, %v1247
      %v1397 = vmul.bf16 %v1393, %v1248
      %v1398 = vmul.bf16 %v1393, %v1249
      %v1399 = vmul.bf16 %v1393, %v1250
      %v1400 = vmul.bf16 %v1393, %v1251
      %v1401 = vmul.bf16 %v1393, %v1252
      %v1402 = vmul.bf16 %v1393, %v1253
      %v1403 = vmul.bf16 %v1393, %v1254
      %v1404 = vmul.bf16 %v1393, %v1255
      %v1405 = vmul.bf16 %v1393, %v1256
      %v1406 = vmul.bf16 %v1393, %v1257
      %v1407 = vmul.bf16 %v1393, %v1258
      %v1408 = vmul.bf16 %v1393, %v1259
      %v1409 = vmul.bf16 %v1393, %v1260
      %v1410 = vmul.bf16 %v1393, %v1261
      %v1411 = vmul.bf16 %v1393, %v1262
      %v1412 = vmul.bf16 %v1393, %v1263
      %v1413 = vmul.bf16 %v1393, %v1264
      %v1414 = vmul.bf16 %v1393, %v1265
      %v1415 = vmul.bf16 %v1393, %v1266
      %v1416 = vmul.bf16 %v1393, %v1267
      %v1417 = vmul.bf16 %v1393, %v1268
      %v1418 = vmul.bf16 %v1393, %v1269
      %v1419 = vmul.bf16 %v1393, %v1270
      %v1420 = vmul.bf16 %v1393, %v1271
      %v1421 = vmul.bf16 %v1393, %v1272
      %v1422 = vmul.bf16 %v1393, %v1273
      %v1423 = vmul.bf16 %v1393, %v1274
      %v1424 = vmul.bf16 %v1393, %v1275
      %v1425 = vmul.bf16 %v1393, %v1276
      %v1426 = vmul.bf16 %v1393, %v1277
      %v1427 = vmul.bf16 %v1393, %v1278
      %v1428 = vmul.bf16 %v1393, %v1279
      %v1429 = vmul.bf16 %v1393, %v1280
      %v1430 = vmul.bf16 %v1393, %v1281
      %v1431 = vmul.bf16 %v1393, %v1282
      %v1432 = vmul.bf16 %v1393, %v1283
      %v1433 = vmul.bf16 %v1393, %v1284
      %v1434 = vmul.bf16 %v1393, %v1285
      %v1435 = vmul.bf16 %v1393, %v1286
      %v1436 = vmul.bf16 %v1393, %v1287
      %v1437 = vmul.bf16 %v1393, %v1288
      %v1438 = vmul.bf16 %v1393, %v1289
      %v1439 = vmul.bf16 %v1393, %v1290
      %v1440 = vmul.bf16 %v1393, %v1291
      %v1441 = vmul.bf16 %v1393, %v1292
      %v1442 = vmul.bf16 %v1393, %v1293
      %v1443 = vmul.bf16 %v1393, %v1294
      %v1444 = vmul.bf16 %v1393, %v1295
      %v1445 = vmul.bf16 %v1393, %v1296
      %v1446 = vmul.bf16 %v1393, %v1297
      %v1447 = vmul.bf16 %v1393, %v1298
      %v1448 = vmul.bf16 %v1393, %v1299
      %v1449 = vmul.bf16 %v1393, %v1300
      %v1450 = vmul.bf16 %v1393, %v1301
      %v1451 = vmul.bf16 %v1393, %v1302
      %v1452 = vmul.bf16 %v1393, %v1303
      %v1453 = vmul.bf16 %v1393, %v1304
      %v1454 = vmul.bf16 %v1393, %v1305
      %v1455 = vmul.bf16 %v1393, %v1306
      %v1456 = vmul.bf16 %v1393, %v1307
      %v1457 = vmul.bf16 %v1393, %v1308
      %v1458 = vmul.bf16 %v1393, %v1309
      %v1459 = vmul.bf16 %v1393, %v1310
      %v1460 = vmul.bf16 %v1393, %v1311
      %v1461 = vmul.bf16 %v1393, %v1312
      %v1462 = vmul.bf16 %v1393, %v1313
      %v1463 = vmul.bf16 %v1393, %v1314
      %v1464 = vmul.bf16 %v1393, %v1315
      %v1465 = vmul.bf16 %v1393, %v1316
      %v1466 = vmul.bf16 %v1393, %v1317
      %v1467 = vmul.bf16 %v1393, %v1318
      %v1468 = vmul.bf16 %v1393, %v1319
      %v1469 = vmul.bf16 %v1393, %v1320
      %v1470 = vmul.bf16 %v1393, %v1321
      %v1471 = vmul.bf16 %v1393, %v1322
      %v1472 = vmul.bf16 %v1393, %v1323
      %v1473 = vmul.bf16 %v1393, %v1324
      %v1474 = vmul.bf16 %v1393, %v1325
      %v1475 = vmul.bf16 %v1393, %v1326
      %v1476 = vmul.bf16 %v1393, %v1327
      %v1477 = vmul.bf16 %v1393, %v1328
      %v1478 = vmul.bf16 %v1393, %v1329
      %v1479 = vmul.bf16 %v1393, %v1330
      %v1480 = vmul.bf16 %v1393, %v1331
      %v1481 = vmul.bf16 %v1393, %v1332
      %v1482 = vmul.bf16 %v1393, %v1333
      %v1483 = vmul.bf16 %v1393, %v1334
      %v1484 = vmul.bf16 %v1393, %v1335
      %v1485 = vmul.bf16 %v1393, %v1336
      %v1486 = vmul.bf16 %v1393, %v1337
      %v1487 = vmul.bf16 %v1393, %v1338
      %v1488 = vmul.bf16 %v1393, %v1339
      %v1489 = vmul.bf16 %v1393, %v1340
      %v1490 = vmul.bf16 %v1393, %v1341
      %v1491 = vmul.bf16 %v1393, %v1342
      %v1492 = vmul.bf16 %v1393, %v1343
      %v1493 = vmul.bf16 %v1393, %v1344
      %v1494 = vmul.bf16 %v1393, %v1345
      %v1495 = vmul.bf16 %v1393, %v1346
      %v1496 = vmul.bf16 %v1393, %v1347
      %v1497 = vmul.bf16 %v1393, %v1348
      %v1498 = vmul.bf16 %v1393, %v1349
      %v1499 = vmul.bf16 %v1393, %v1350
      %v1500 = vmul.bf16 %v1393, %v1351
      %v1501 = vmul.bf16 %v1393, %v1352
      %v1502 = vmul.bf16 %v1393, %v1353
      %v1503 = vmul.bf16 %v1393, %v1354
      %v1504 = vmul.bf16 %v1393, %v1355
      %v1505 = vmul.bf16 %v1393, %v1356
      %v1506 = vmul.bf16 %v1393, %v1357
      %v1507 = vmul.bf16 %v1393, %v1358
      %v1508 = vmul.bf16 %v1393, %v1359
      %v1509 = vmul.bf16 %v1393, %v1360
      %v1510 = vmul.bf16 %v1393, %v1361
      %v1511 = vmul.bf16 %v1393, %v1362
      %v1512 = vmul.bf16 %v1393, %v1363
      %v1513 = vmul.bf16 %v1393, %v1364
      %v1514 = vmul.bf16 %v1393, %v1365
      %v1515 = vmul.bf16 %v1393, %v1366
      %v1516 = vmul.bf16 %v1393, %v1367
      %v1517 = vmul.bf16 %v1393, %v1368
      %v1518 = vmul.bf16 %v1393, %v1369
      %v1519 = vmul.bf16 %v1393, %v1370
      %v1520 = vmul.bf16 %v1393, %v1371
      %v1521 = vmul.bf16 %v1393, %v1372
      %v1522 = vmul.bf16 %v1393, %v1373
      %v1523 = vmul.bf16 %v1393, %v1374
      %v1524 = vmul.bf16 %v1393, %v1375
      %v1525 = vmul.bf16 %v1393, %v1376
      %v1526 = vmul.bf16 %v1393, %v1377
      %v1527 = vmul.bf16 %v1393, %v1378
      %v1528 = vmul.bf16 %v1393, %v1379
      %v1529 = vmul.bf16 %v1393, %v1380
      %v1530 = vmul.bf16 %v1393, %v1381
      %v1531 = vmul.bf16 %v1393, %v1382
      %v1532 = vmul.bf16 %v1393, %v1383
      %v1533 = vmul.bf16 %v1393, %v1384
      %v1534 = vmul.bf16 %v1393, %v1385
      %v1535 = vmul.bf16 %v1393, %v1386
      %v1536 = vmul.bf16 %v1393, %v1387
      %v1537 = vmul.bf16 %v1393, %v1388
      %v1538 = vmul.bf16 %v1393, %v1389
      %s1539 = scalar_lea.vmem %s5, 576
      %v1540 = vld [vmem:[%s1539] sm:$0xf]
      %v1541 = vld [vmem:[%s1539 + $0x4] sm:$0xf]
      %v1542 = vld [vmem:[%s1539 + $0x8] sm:$0xf]
      %v1543 = vld [vmem:[%s1539 + $0xc] sm:$0xf]
      %v1544 = vld [vmem:[%s1539 + $0x10] sm:$0xf]
      %v1545 = vld [vmem:[%s1539 + $0x14] sm:$0xf]
      %v1546 = vld [vmem:[%s1539 + $0x18] sm:$0xf]
      %v1547 = vld [vmem:[%s1539 + $0x1c] sm:$0xf]
      %v1548 = vld [vmem:[%s1539 + $0x20] sm:$0xf]
      %v1549 = vld [vmem:[%s1539 + $0x24] sm:$0xf]
      %v1550 = vld [vmem:[%s1539 + $0x28] sm:$0xf]
      %v1551 = vld [vmem:[%s1539 + $0x2c] sm:$0xf]
      %v1552 = vld [vmem:[%s1539 + $0x30] sm:$0xf]
      %v1553 = vld [vmem:[%s1539 + $0x34] sm:$0xf]
      %v1554 = vld [vmem:[%s1539 + $0x38] sm:$0xf]
      %v1555 = vld [vmem:[%s1539 + $0x3c] sm:$0xf]
      %v1556 = vld [vmem:[%s1539 + $0x40] sm:$0xf]
      %v1557 = vld [vmem:[%s1539 + $0x44] sm:$0xf]
      %v1558 = vld [vmem:[%s1539 + $0x48] sm:$0xf]
      %v1559 = vld [vmem:[%s1539 + $0x4c] sm:$0xf]
      %v1560 = vld [vmem:[%s1539 + $0x50] sm:$0xf]
      %v1561 = vld [vmem:[%s1539 + $0x54] sm:$0xf]
      %v1562 = vld [vmem:[%s1539 + $0x58] sm:$0xf]
      %v1563 = vld [vmem:[%s1539 + $0x5c] sm:$0xf]
      %v1564 = vld [vmem:[%s1539 + $0x60] sm:$0xf]
      %v1565 = vld [vmem:[%s1539 + $0x64] sm:$0xf]
      %v1566 = vld [vmem:[%s1539 + $0x68] sm:$0xf]
      %v1567 = vld [vmem:[%s1539 + $0x6c] sm:$0xf]
      %v1568 = vld [vmem:[%s1539 + $0x70] sm:$0xf]
      %v1569 = vld [vmem:[%s1539 + $0x74] sm:$0xf]
      %v1570 = vld [vmem:[%s1539 + $0x78] sm:$0xf]
      %v1571 = vld [vmem:[%s1539 + $0x7c] sm:$0xf]
      %v1572 = vld [vmem:[%s1539 + $0x80] sm:$0xf]
      %v1573 = vld [vmem:[%s1539 + $0x84] sm:$0xf]
      %v1574 = vld [vmem:[%s1539 + $0x88] sm:$0xf]
      %v1575 = vld [vmem:[%s1539 + $0x8c] sm:$0xf]
      %v1576 = vld [vmem:[%s1539 + $0x90] sm:$0xf]
      %v1577 = vld [vmem:[%s1539 + $0x94] sm:$0xf]
      %v1578 = vld [vmem:[%s1539 + $0x98] sm:$0xf]
      %v1579 = vld [vmem:[%s1539 + $0x9c] sm:$0xf]
      %v1580 = vld [vmem:[%s1539 + $0xa0] sm:$0xf]
      %v1581 = vld [vmem:[%s1539 + $0xa4] sm:$0xf]
      %v1582 = vld [vmem:[%s1539 + $0xa8] sm:$0xf]
      %v1583 = vld [vmem:[%s1539 + $0xac] sm:$0xf]
      %v1584 = vld [vmem:[%s1539 + $0xb0] sm:$0xf]
      %v1585 = vld [vmem:[%s1539 + $0xb4] sm:$0xf]
      %v1586 = vld [vmem:[%s1539 + $0xb8] sm:$0xf]
      %v1587 = vld [vmem:[%s1539 + $0xbc] sm:$0xf]
      %v1588 = vld [vmem:[%s1539 + $0xc0] sm:$0xf]
      %v1589 = vld [vmem:[%s1539 + $0xc4] sm:$0xf]
      %v1590 = vld [vmem:[%s1539 + $0xc8] sm:$0xf]
      %v1591 = vld [vmem:[%s1539 + $0xcc] sm:$0xf]
      %v1592 = vld [vmem:[%s1539 + $0xd0] sm:$0xf]
      %v1593 = vld [vmem:[%s1539 + $0xd4] sm:$0xf]
      %v1594 = vld [vmem:[%s1539 + $0xd8] sm:$0xf]
      %v1595 = vld [vmem:[%s1539 + $0xdc] sm:$0xf]
      %v1596 = vld [vmem:[%s1539 + $0xe0] sm:$0xf]
      %v1597 = vld [vmem:[%s1539 + $0xe4] sm:$0xf]
      %v1598 = vld [vmem:[%s1539 + $0xe8] sm:$0xf]
      %v1599 = vld [vmem:[%s1539 + $0xec] sm:$0xf]
      %v1600 = vld [vmem:[%s1539 + $0xf0] sm:$0xf]
      %v1601 = vld [vmem:[%s1539 + $0xf4] sm:$0xf]
      %v1602 = vld [vmem:[%s1539 + $0xf8] sm:$0xf]
      %v1603 = vld [vmem:[%s1539 + $0xfc] sm:$0xf]
      %v1604 = vld [vmem:[%s1539 + $0x100] sm:$0xf]
      %v1605 = vld [vmem:[%s1539 + $0x104] sm:$0xf]
      %v1606 = vld [vmem:[%s1539 + $0x108] sm:$0xf]
      %v1607 = vld [vmem:[%s1539 + $0x10c] sm:$0xf]
      %v1608 = vld [vmem:[%s1539 + $0x110] sm:$0xf]
      %v1609 = vld [vmem:[%s1539 + $0x114] sm:$0xf]
      %v1610 = vld [vmem:[%s1539 + $0x118] sm:$0xf]
      %v1611 = vld [vmem:[%s1539 + $0x11c] sm:$0xf]
      %v1612 = vld [vmem:[%s1539 + $0x120] sm:$0xf]
      %v1613 = vld [vmem:[%s1539 + $0x124] sm:$0xf]
      %v1614 = vld [vmem:[%s1539 + $0x128] sm:$0xf]
      %v1615 = vld [vmem:[%s1539 + $0x12c] sm:$0xf]
      %v1616 = vld [vmem:[%s1539 + $0x130] sm:$0xf]
      %v1617 = vld [vmem:[%s1539 + $0x134] sm:$0xf]
      %v1618 = vld [vmem:[%s1539 + $0x138] sm:$0xf]
      %v1619 = vld [vmem:[%s1539 + $0x13c] sm:$0xf]
      %v1620 = vld [vmem:[%s1539 + $0x140] sm:$0xf]
      %v1621 = vld [vmem:[%s1539 + $0x144] sm:$0xf]
      %v1622 = vld [vmem:[%s1539 + $0x148] sm:$0xf]
      %v1623 = vld [vmem:[%s1539 + $0x14c] sm:$0xf]
      %v1624 = vld [vmem:[%s1539 + $0x150] sm:$0xf]
      %v1625 = vld [vmem:[%s1539 + $0x154] sm:$0xf]
      %v1626 = vld [vmem:[%s1539 + $0x158] sm:$0xf]
      %v1627 = vld [vmem:[%s1539 + $0x15c] sm:$0xf]
      %v1628 = vld [vmem:[%s1539 + $0x160] sm:$0xf]
      %v1629 = vld [vmem:[%s1539 + $0x164] sm:$0xf]
      %v1630 = vld [vmem:[%s1539 + $0x168] sm:$0xf]
      %v1631 = vld [vmem:[%s1539 + $0x16c] sm:$0xf]
      %v1632 = vld [vmem:[%s1539 + $0x170] sm:$0xf]
      %v1633 = vld [vmem:[%s1539 + $0x174] sm:$0xf]
      %v1634 = vld [vmem:[%s1539 + $0x178] sm:$0xf]
      %v1635 = vld [vmem:[%s1539 + $0x17c] sm:$0xf]
      %v1636 = vld [vmem:[%s1539 + $0x180] sm:$0xf]
      %v1637 = vld [vmem:[%s1539 + $0x184] sm:$0xf]
      %v1638 = vld [vmem:[%s1539 + $0x188] sm:$0xf]
      %v1639 = vld [vmem:[%s1539 + $0x18c] sm:$0xf]
      %v1640 = vld [vmem:[%s1539 + $0x190] sm:$0xf]
      %v1641 = vld [vmem:[%s1539 + $0x194] sm:$0xf]
      %v1642 = vld [vmem:[%s1539 + $0x198] sm:$0xf]
      %v1643 = vld [vmem:[%s1539 + $0x19c] sm:$0xf]
      %v1644 = vld [vmem:[%s1539 + $0x1a0] sm:$0xf]
      %v1645 = vld [vmem:[%s1539 + $0x1a4] sm:$0xf]
      %v1646 = vld [vmem:[%s1539 + $0x1a8] sm:$0xf]
      %v1647 = vld [vmem:[%s1539 + $0x1ac] sm:$0xf]
      %v1648 = vld [vmem:[%s1539 + $0x1b0] sm:$0xf]
      %v1649 = vld [vmem:[%s1539 + $0x1b4] sm:$0xf]
      %v1650 = vld [vmem:[%s1539 + $0x1b8] sm:$0xf]
      %v1651 = vld [vmem:[%s1539 + $0x1bc] sm:$0xf]
      %v1652 = vld [vmem:[%s1539 + $0x1c0] sm:$0xf]
      %v1653 = vld [vmem:[%s1539 + $0x1c4] sm:$0xf]
      %v1654 = vld [vmem:[%s1539 + $0x1c8] sm:$0xf]
      %v1655 = vld [vmem:[%s1539 + $0x1cc] sm:$0xf]
      %v1656 = vld [vmem:[%s1539 + $0x1d0] sm:$0xf]
      %v1657 = vld [vmem:[%s1539 + $0x1d4] sm:$0xf]
      %v1658 = vld [vmem:[%s1539 + $0x1d8] sm:$0xf]
      %v1659 = vld [vmem:[%s1539 + $0x1dc] sm:$0xf]
      %v1660 = vld [vmem:[%s1539 + $0x1e0] sm:$0xf]
      %v1661 = vld [vmem:[%s1539 + $0x1e4] sm:$0xf]
      %v1662 = vld [vmem:[%s1539 + $0x1e8] sm:$0xf]
      %v1663 = vld [vmem:[%s1539 + $0x1ec] sm:$0xf]
      %v1664 = vld [vmem:[%s1539 + $0x1f0] sm:$0xf]
      %v1665 = vld [vmem:[%s1539 + $0x1f4] sm:$0xf]
      %v1666 = vld [vmem:[%s1539 + $0x1f8] sm:$0xf]
      %v1667 = vld [vmem:[%s1539 + $0x1fc] sm:$0xf]
      %v1668 = vld [vmem:[%s1539 + $0x200] sm:$0xf]
      %v1669 = vld [vmem:[%s1539 + $0x204] sm:$0xf]
      %v1670 = vld [vmem:[%s1539 + $0x208] sm:$0xf]
      %v1671 = vld [vmem:[%s1539 + $0x20c] sm:$0xf]
      %v1672 = vld [vmem:[%s1539 + $0x210] sm:$0xf]
      %v1673 = vld [vmem:[%s1539 + $0x214] sm:$0xf]
      %v1674 = vld [vmem:[%s1539 + $0x218] sm:$0xf]
      %v1675 = vld [vmem:[%s1539 + $0x21c] sm:$0xf]
      %v1676 = vld [vmem:[%s1539 + $0x220] sm:$0xf]
      %v1677 = vld [vmem:[%s1539 + $0x224] sm:$0xf]
      %v1678 = vld [vmem:[%s1539 + $0x228] sm:$0xf]
      %v1679 = vld [vmem:[%s1539 + $0x22c] sm:$0xf]
      %v1680 = vld [vmem:[%s1539 + $0x230] sm:$0xf]
      %v1681 = vld [vmem:[%s1539 + $0x234] sm:$0xf]
      %v1682 = vld [vmem:[%s1539 + $0x238] sm:$0xf]
      %v1683 = vld [vmem:[%s1539 + $0x23c] sm:$0xf]
      %1685 = vrot.lane.b32.xlu0 %v1245, 127
      %v1686 = vpop.permute.xlu0 %1685
      %s1688 = vtos %v1686
      %v1689 = vstv %s1688
      %v1690 = vpack.i.b16 %v1689, %v1689
      %v1692 = vmul.bf16 %v1690, %v1540
      %v1693 = vmul.bf16 %v1690, %v1541
      %v1694 = vmul.bf16 %v1690, %v1542
      %v1695 = vmul.bf16 %v1690, %v1543
      %v1696 = vmul.bf16 %v1690, %v1544
      %v1697 = vmul.bf16 %v1690, %v1545
      %v1698 = vmul.bf16 %v1690, %v1546
      %v1699 = vmul.bf16 %v1690, %v1547
      %v1700 = vmul.bf16 %v1690, %v1548
      %v1701 = vmul.bf16 %v1690, %v1549
      %v1702 = vmul.bf16 %v1690, %v1550
      %v1703 = vmul.bf16 %v1690, %v1551
      %v1704 = vmul.bf16 %v1690, %v1552
      %v1705 = vmul.bf16 %v1690, %v1553
      %v1706 = vmul.bf16 %v1690, %v1554
      %v1707 = vmul.bf16 %v1690, %v1555
      %v1708 = vmul.bf16 %v1690, %v1556
      %v1709 = vmul.bf16 %v1690, %v1557
      %v1710 = vmul.bf16 %v1690, %v1558
      %v1711 = vmul.bf16 %v1690, %v1559
      %v1712 = vmul.bf16 %v1690, %v1560
      %v1713 = vmul.bf16 %v1690, %v1561
      %v1714 = vmul.bf16 %v1690, %v1562
      %v1715 = vmul.bf16 %v1690, %v1563
      %v1716 = vmul.bf16 %v1690, %v1564
      %v1717 = vmul.bf16 %v1690, %v1565
      %v1718 = vmul.bf16 %v1690, %v1566
      %v1719 = vmul.bf16 %v1690, %v1567
      %v1720 = vmul.bf16 %v1690, %v1568
      %v1721 = vmul.bf16 %v1690, %v1569
      %v1722 = vmul.bf16 %v1690, %v1570
      %v1723 = vmul.bf16 %v1690, %v1571
      %v1724 = vmul.bf16 %v1690, %v1572
      %v1725 = vmul.bf16 %v1690, %v1573
      %v1726 = vmul.bf16 %v1690, %v1574
      %v1727 = vmul.bf16 %v1690, %v1575
      %v1728 = vmul.bf16 %v1690, %v1576
      %v1729 = vmul.bf16 %v1690, %v1577
      %v1730 = vmul.bf16 %v1690, %v1578
      %v1731 = vmul.bf16 %v1690, %v1579
      %v1732 = vmul.bf16 %v1690, %v1580
      %v1733 = vmul.bf16 %v1690, %v1581
      %v1734 = vmul.bf16 %v1690, %v1582
      %v1735 = vmul.bf16 %v1690, %v1583
      %v1736 = vmul.bf16 %v1690, %v1584
      %v1737 = vmul.bf16 %v1690, %v1585
      %v1738 = vmul.bf16 %v1690, %v1586
      %v1739 = vmul.bf16 %v1690, %v1587
      %v1740 = vmul.bf16 %v1690, %v1588
      %v1741 = vmul.bf16 %v1690, %v1589
      %v1742 = vmul.bf16 %v1690, %v1590
      %v1743 = vmul.bf16 %v1690, %v1591
      %v1744 = vmul.bf16 %v1690, %v1592
      %v1745 = vmul.bf16 %v1690, %v1593
      %v1746 = vmul.bf16 %v1690, %v1594
      %v1747 = vmul.bf16 %v1690, %v1595
      %v1748 = vmul.bf16 %v1690, %v1596
      %v1749 = vmul.bf16 %v1690, %v1597
      %v1750 = vmul.bf16 %v1690, %v1598
      %v1751 = vmul.bf16 %v1690, %v1599
      %v1752 = vmul.bf16 %v1690, %v1600
      %v1753 = vmul.bf16 %v1690, %v1601
      %v1754 = vmul.bf16 %v1690, %v1602
      %v1755 = vmul.bf16 %v1690, %v1603
      %v1756 = vmul.bf16 %v1690, %v1604
      %v1757 = vmul.bf16 %v1690, %v1605
      %v1758 = vmul.bf16 %v1690, %v1606
      %v1759 = vmul.bf16 %v1690, %v1607
      %v1760 = vmul.bf16 %v1690, %v1608
      %v1761 = vmul.bf16 %v1690, %v1609
      %v1762 = vmul.bf16 %v1690, %v1610
      %v1763 = vmul.bf16 %v1690, %v1611
      %v1764 = vmul.bf16 %v1690, %v1612
      %v1765 = vmul.bf16 %v1690, %v1613
      %v1766 = vmul.bf16 %v1690, %v1614
      %v1767 = vmul.bf16 %v1690, %v1615
      %v1768 = vmul.bf16 %v1690, %v1616
      %v1769 = vmul.bf16 %v1690, %v1617
      %v1770 = vmul.bf16 %v1690, %v1618
      %v1771 = vmul.bf16 %v1690, %v1619
      %v1772 = vmul.bf16 %v1690, %v1620
      %v1773 = vmul.bf16 %v1690, %v1621
      %v1774 = vmul.bf16 %v1690, %v1622
      %v1775 = vmul.bf16 %v1690, %v1623
      %v1776 = vmul.bf16 %v1690, %v1624
      %v1777 = vmul.bf16 %v1690, %v1625
      %v1778 = vmul.bf16 %v1690, %v1626
      %v1779 = vmul.bf16 %v1690, %v1627
      %v1780 = vmul.bf16 %v1690, %v1628
      %v1781 = vmul.bf16 %v1690, %v1629
      %v1782 = vmul.bf16 %v1690, %v1630
      %v1783 = vmul.bf16 %v1690, %v1631
      %v1784 = vmul.bf16 %v1690, %v1632
      %v1785 = vmul.bf16 %v1690, %v1633
      %v1786 = vmul.bf16 %v1690, %v1634
      %v1787 = vmul.bf16 %v1690, %v1635
      %v1788 = vmul.bf16 %v1690, %v1636
      %v1789 = vmul.bf16 %v1690, %v1637
      %v1790 = vmul.bf16 %v1690, %v1638
      %v1791 = vmul.bf16 %v1690, %v1639
      %v1792 = vmul.bf16 %v1690, %v1640
      %v1793 = vmul.bf16 %v1690, %v1641
      %v1794 = vmul.bf16 %v1690, %v1642
      %v1795 = vmul.bf16 %v1690, %v1643
      %v1796 = vmul.bf16 %v1690, %v1644
      %v1797 = vmul.bf16 %v1690, %v1645
      %v1798 = vmul.bf16 %v1690, %v1646
      %v1799 = vmul.bf16 %v1690, %v1647
      %v1800 = vmul.bf16 %v1690, %v1648
      %v1801 = vmul.bf16 %v1690, %v1649
      %v1802 = vmul.bf16 %v1690, %v1650
      %v1803 = vmul.bf16 %v1690, %v1651
      %v1804 = vmul.bf16 %v1690, %v1652
      %v1805 = vmul.bf16 %v1690, %v1653
      %v1806 = vmul.bf16 %v1690, %v1654
      %v1807 = vmul.bf16 %v1690, %v1655
      %v1808 = vmul.bf16 %v1690, %v1656
      %v1809 = vmul.bf16 %v1690, %v1657
      %v1810 = vmul.bf16 %v1690, %v1658
      %v1811 = vmul.bf16 %v1690, %v1659
      %v1812 = vmul.bf16 %v1690, %v1660
      %v1813 = vmul.bf16 %v1690, %v1661
      %v1814 = vmul.bf16 %v1690, %v1662
      %v1815 = vmul.bf16 %v1690, %v1663
      %v1816 = vmul.bf16 %v1690, %v1664
      %v1817 = vmul.bf16 %v1690, %v1665
      %v1818 = vmul.bf16 %v1690, %v1666
      %v1819 = vmul.bf16 %v1690, %v1667
      %v1820 = vmul.bf16 %v1690, %v1668
      %v1821 = vmul.bf16 %v1690, %v1669
      %v1822 = vmul.bf16 %v1690, %v1670
      %v1823 = vmul.bf16 %v1690, %v1671
      %v1824 = vmul.bf16 %v1690, %v1672
      %v1825 = vmul.bf16 %v1690, %v1673
      %v1826 = vmul.bf16 %v1690, %v1674
      %v1827 = vmul.bf16 %v1690, %v1675
      %v1828 = vmul.bf16 %v1690, %v1676
      %v1829 = vmul.bf16 %v1690, %v1677
      %v1830 = vmul.bf16 %v1690, %v1678
      %v1831 = vmul.bf16 %v1690, %v1679
      %v1832 = vmul.bf16 %v1690, %v1680
      %v1833 = vmul.bf16 %v1690, %v1681
      %v1834 = vmul.bf16 %v1690, %v1682
      %v1835 = vmul.bf16 %v1690, %v1683
      %v1836 = vadd.bf16 %v1395, %v1692
      %v1837 = vadd.bf16 %v1396, %v1693
      %v1838 = vadd.bf16 %v1397, %v1694
      %v1839 = vadd.bf16 %v1398, %v1695
      %v1840 = vadd.bf16 %v1399, %v1696
      %v1841 = vadd.bf16 %v1400, %v1697
      %v1842 = vadd.bf16 %v1401, %v1698
      %v1843 = vadd.bf16 %v1402, %v1699
      %v1844 = vadd.bf16 %v1403, %v1700
      %v1845 = vadd.bf16 %v1404, %v1701
      %v1846 = vadd.bf16 %v1405, %v1702
      %v1847 = vadd.bf16 %v1406, %v1703
      %v1848 = vadd.bf16 %v1407, %v1704
      %v1849 = vadd.bf16 %v1408, %v1705
      %v1850 = vadd.bf16 %v1409, %v1706
      %v1851 = vadd.bf16 %v1410, %v1707
      %v1852 = vadd.bf16 %v1411, %v1708
      %v1853 = vadd.bf16 %v1412, %v1709
      %v1854 = vadd.bf16 %v1413, %v1710
      %v1855 = vadd.bf16 %v1414, %v1711
      %v1856 = vadd.bf16 %v1415, %v1712
      %v1857 = vadd.bf16 %v1416, %v1713
      %v1858 = vadd.bf16 %v1417, %v1714
      %v1859 = vadd.bf16 %v1418, %v1715
      %v1860 = vadd.bf16 %v1419, %v1716
      %v1861 = vadd.bf16 %v1420, %v1717
      %v1862 = vadd.bf16 %v1421, %v1718
      %v1863 = vadd.bf16 %v1422, %v1719
      %v1864 = vadd.bf16 %v1423, %v1720
      %v1865 = vadd.bf16 %v1424, %v1721
      %v1866 = vadd.bf16 %v1425, %v1722
      %v1867 = vadd.bf16 %v1426, %v1723
      %v1868 = vadd.bf16 %v1427, %v1724
      %v1869 = vadd.bf16 %v1428, %v1725
      %v1870 = vadd.bf16 %v1429, %v1726
      %v1871 = vadd.bf16 %v1430, %v1727
      %v1872 = vadd.bf16 %v1431, %v1728
      %v1873 = vadd.bf16 %v1432, %v1729
      %v1874 = vadd.bf16 %v1433, %v1730
      %v1875 = vadd.bf16 %v1434, %v1731
      %v1876 = vadd.bf16 %v1435, %v1732
      %v1877 = vadd.bf16 %v1436, %v1733
      %v1878 = vadd.bf16 %v1437, %v1734
      %v1879 = vadd.bf16 %v1438, %v1735
      %v1880 = vadd.bf16 %v1439, %v1736
      %v1881 = vadd.bf16 %v1440, %v1737
      %v1882 = vadd.bf16 %v1441, %v1738
      %v1883 = vadd.bf16 %v1442, %v1739
      %v1884 = vadd.bf16 %v1443, %v1740
      %v1885 = vadd.bf16 %v1444, %v1741
      %v1886 = vadd.bf16 %v1445, %v1742
      %v1887 = vadd.bf16 %v1446, %v1743
      %v1888 = vadd.bf16 %v1447, %v1744
      %v1889 = vadd.bf16 %v1448, %v1745
      %v1890 = vadd.bf16 %v1449, %v1746
      %v1891 = vadd.bf16 %v1450, %v1747
      %v1892 = vadd.bf16 %v1451, %v1748
      %v1893 = vadd.bf16 %v1452, %v1749
      %v1894 = vadd.bf16 %v1453, %v1750
      %v1895 = vadd.bf16 %v1454, %v1751
      %v1896 = vadd.bf16 %v1455, %v1752
      %v1897 = vadd.bf16 %v1456, %v1753
      %v1898 = vadd.bf16 %v1457, %v1754
      %v1899 = vadd.bf16 %v1458, %v1755
      %v1900 = vadd.bf16 %v1459, %v1756
      %v1901 = vadd.bf16 %v1460, %v1757
      %v1902 = vadd.bf16 %v1461, %v1758
      %v1903 = vadd.bf16 %v1462, %v1759
      %v1904 = vadd.bf16 %v1463, %v1760
      %v1905 = vadd.bf16 %v1464, %v1761
      %v1906 = vadd.bf16 %v1465, %v1762
      %v1907 = vadd.bf16 %v1466, %v1763
      %v1908 = vadd.bf16 %v1467, %v1764
      %v1909 = vadd.bf16 %v1468, %v1765
      %v1910 = vadd.bf16 %v1469, %v1766
      %v1911 = vadd.bf16 %v1470, %v1767
      %v1912 = vadd.bf16 %v1471, %v1768
      %v1913 = vadd.bf16 %v1472, %v1769
      %v1914 = vadd.bf16 %v1473, %v1770
      %v1915 = vadd.bf16 %v1474, %v1771
      %v1916 = vadd.bf16 %v1475, %v1772
      %v1917 = vadd.bf16 %v1476, %v1773
      %v1918 = vadd.bf16 %v1477, %v1774
      %v1919 = vadd.bf16 %v1478, %v1775
      %v1920 = vadd.bf16 %v1479, %v1776
      %v1921 = vadd.bf16 %v1480, %v1777
      %v1922 = vadd.bf16 %v1481, %v1778
      %v1923 = vadd.bf16 %v1482, %v1779
      %v1924 = vadd.bf16 %v1483, %v1780
      %v1925 = vadd.bf16 %v1484, %v1781
      %v1926 = vadd.bf16 %v1485, %v1782
      %v1927 = vadd.bf16 %v1486, %v1783
      %v1928 = vadd.bf16 %v1487, %v1784
      %v1929 = vadd.bf16 %v1488, %v1785
      %v1930 = vadd.bf16 %v1489, %v1786
      %v1931 = vadd.bf16 %v1490, %v1787
      %v1932 = vadd.bf16 %v1491, %v1788
      %v1933 = vadd.bf16 %v1492, %v1789
      %v1934 = vadd.bf16 %v1493, %v1790
      %v1935 = vadd.bf16 %v1494, %v1791
      %v1936 = vadd.bf16 %v1495, %v1792
      %v1937 = vadd.bf16 %v1496, %v1793
      %v1938 = vadd.bf16 %v1497, %v1794
      %v1939 = vadd.bf16 %v1498, %v1795
      %v1940 = vadd.bf16 %v1499, %v1796
      %v1941 = vadd.bf16 %v1500, %v1797
      %v1942 = vadd.bf16 %v1501, %v1798
      %v1943 = vadd.bf16 %v1502, %v1799
      %v1944 = vadd.bf16 %v1503, %v1800
      %v1945 = vadd.bf16 %v1504, %v1801
      %v1946 = vadd.bf16 %v1505, %v1802
      %v1947 = vadd.bf16 %v1506, %v1803
      %v1948 = vadd.bf16 %v1507, %v1804
      %v1949 = vadd.bf16 %v1508, %v1805
      %v1950 = vadd.bf16 %v1509, %v1806
      %v1951 = vadd.bf16 %v1510, %v1807
      %v1952 = vadd.bf16 %v1511, %v1808
      %v1953 = vadd.bf16 %v1512, %v1809
      %v1954 = vadd.bf16 %v1513, %v1810
      %v1955 = vadd.bf16 %v1514, %v1811
      %v1956 = vadd.bf16 %v1515, %v1812
      %v1957 = vadd.bf16 %v1516, %v1813
      %v1958 = vadd.bf16 %v1517, %v1814
      %v1959 = vadd.bf16 %v1518, %v1815
      %v1960 = vadd.bf16 %v1519, %v1816
      %v1961 = vadd.bf16 %v1520, %v1817
      %v1962 = vadd.bf16 %v1521, %v1818
      %v1963 = vadd.bf16 %v1522, %v1819
      %v1964 = vadd.bf16 %v1523, %v1820
      %v1965 = vadd.bf16 %v1524, %v1821
      %v1966 = vadd.bf16 %v1525, %v1822
      %v1967 = vadd.bf16 %v1526, %v1823
      %v1968 = vadd.bf16 %v1527, %v1824
      %v1969 = vadd.bf16 %v1528, %v1825
      %v1970 = vadd.bf16 %v1529, %v1826
      %v1971 = vadd.bf16 %v1530, %v1827
      %v1972 = vadd.bf16 %v1531, %v1828
      %v1973 = vadd.bf16 %v1532, %v1829
      %v1974 = vadd.bf16 %v1533, %v1830
      %v1975 = vadd.bf16 %v1534, %v1831
      %v1976 = vadd.bf16 %v1535, %v1832
      %v1977 = vadd.bf16 %v1536, %v1833
      %v1978 = vadd.bf16 %v1537, %v1834
      %v1979 = vadd.bf16 %v1538, %v1835
      %s1980 = scalar_lea.vmem %s5, 1152
      %v1981 = vld [vmem:[%s1980] sm:$0xf]
      %v1982 = vld [vmem:[%s1980 + $0x4] sm:$0xf]
      %v1983 = vld [vmem:[%s1980 + $0x8] sm:$0xf]
      %v1984 = vld [vmem:[%s1980 + $0xc] sm:$0xf]
      %v1985 = vld [vmem:[%s1980 + $0x10] sm:$0xf]
      %v1986 = vld [vmem:[%s1980 + $0x14] sm:$0xf]
      %v1987 = vld [vmem:[%s1980 + $0x18] sm:$0xf]
      %v1988 = vld [vmem:[%s1980 + $0x1c] sm:$0xf]
      %v1989 = vld [vmem:[%s1980 + $0x20] sm:$0xf]
      %v1990 = vld [vmem:[%s1980 + $0x24] sm:$0xf]
      %v1991 = vld [vmem:[%s1980 + $0x28] sm:$0xf]
      %v1992 = vld [vmem:[%s1980 + $0x2c] sm:$0xf]
      %v1993 = vld [vmem:[%s1980 + $0x30] sm:$0xf]
      %v1994 = vld [vmem:[%s1980 + $0x34] sm:$0xf]
      %v1995 = vld [vmem:[%s1980 + $0x38] sm:$0xf]
      %v1996 = vld [vmem:[%s1980 + $0x3c] sm:$0xf]
      %v1997 = vld [vmem:[%s1980 + $0x40] sm:$0xf]
      %v1998 = vld [vmem:[%s1980 + $0x44] sm:$0xf]
      %v1999 = vld [vmem:[%s1980 + $0x48] sm:$0xf]
      %v2000 = vld [vmem:[%s1980 + $0x4c] sm:$0xf]
      %v2001 = vld [vmem:[%s1980 + $0x50] sm:$0xf]
      %v2002 = vld [vmem:[%s1980 + $0x54] sm:$0xf]
      %v2003 = vld [vmem:[%s1980 + $0x58] sm:$0xf]
      %v2004 = vld [vmem:[%s1980 + $0x5c] sm:$0xf]
      %v2005 = vld [vmem:[%s1980 + $0x60] sm:$0xf]
      %v2006 = vld [vmem:[%s1980 + $0x64] sm:$0xf]
      %v2007 = vld [vmem:[%s1980 + $0x68] sm:$0xf]
      %v2008 = vld [vmem:[%s1980 + $0x6c] sm:$0xf]
      %v2009 = vld [vmem:[%s1980 + $0x70] sm:$0xf]
      %v2010 = vld [vmem:[%s1980 + $0x74] sm:$0xf]
      %v2011 = vld [vmem:[%s1980 + $0x78] sm:$0xf]
      %v2012 = vld [vmem:[%s1980 + $0x7c] sm:$0xf]
      %v2013 = vld [vmem:[%s1980 + $0x80] sm:$0xf]
      %v2014 = vld [vmem:[%s1980 + $0x84] sm:$0xf]
      %v2015 = vld [vmem:[%s1980 + $0x88] sm:$0xf]
      %v2016 = vld [vmem:[%s1980 + $0x8c] sm:$0xf]
      %v2017 = vld [vmem:[%s1980 + $0x90] sm:$0xf]
      %v2018 = vld [vmem:[%s1980 + $0x94] sm:$0xf]
      %v2019 = vld [vmem:[%s1980 + $0x98] sm:$0xf]
      %v2020 = vld [vmem:[%s1980 + $0x9c] sm:$0xf]
      %v2021 = vld [vmem:[%s1980 + $0xa0] sm:$0xf]
      %v2022 = vld [vmem:[%s1980 + $0xa4] sm:$0xf]
      %v2023 = vld [vmem:[%s1980 + $0xa8] sm:$0xf]
      %v2024 = vld [vmem:[%s1980 + $0xac] sm:$0xf]
      %v2025 = vld [vmem:[%s1980 + $0xb0] sm:$0xf]
      %v2026 = vld [vmem:[%s1980 + $0xb4] sm:$0xf]
      %v2027 = vld [vmem:[%s1980 + $0xb8] sm:$0xf]
      %v2028 = vld [vmem:[%s1980 + $0xbc] sm:$0xf]
      %v2029 = vld [vmem:[%s1980 + $0xc0] sm:$0xf]
      %v2030 = vld [vmem:[%s1980 + $0xc4] sm:$0xf]
      %v2031 = vld [vmem:[%s1980 + $0xc8] sm:$0xf]
      %v2032 = vld [vmem:[%s1980 + $0xcc] sm:$0xf]
      %v2033 = vld [vmem:[%s1980 + $0xd0] sm:$0xf]
      %v2034 = vld [vmem:[%s1980 + $0xd4] sm:$0xf]
      %v2035 = vld [vmem:[%s1980 + $0xd8] sm:$0xf]
      %v2036 = vld [vmem:[%s1980 + $0xdc] sm:$0xf]
      %v2037 = vld [vmem:[%s1980 + $0xe0] sm:$0xf]
      %v2038 = vld [vmem:[%s1980 + $0xe4] sm:$0xf]
      %v2039 = vld [vmem:[%s1980 + $0xe8] sm:$0xf]
      %v2040 = vld [vmem:[%s1980 + $0xec] sm:$0xf]
      %v2041 = vld [vmem:[%s1980 + $0xf0] sm:$0xf]
      %v2042 = vld [vmem:[%s1980 + $0xf4] sm:$0xf]
      %v2043 = vld [vmem:[%s1980 + $0xf8] sm:$0xf]
      %v2044 = vld [vmem:[%s1980 + $0xfc] sm:$0xf]
      %v2045 = vld [vmem:[%s1980 + $0x100] sm:$0xf]
      %v2046 = vld [vmem:[%s1980 + $0x104] sm:$0xf]
      %v2047 = vld [vmem:[%s1980 + $0x108] sm:$0xf]
      %v2048 = vld [vmem:[%s1980 + $0x10c] sm:$0xf]
      %v2049 = vld [vmem:[%s1980 + $0x110] sm:$0xf]
      %v2050 = vld [vmem:[%s1980 + $0x114] sm:$0xf]
      %v2051 = vld [vmem:[%s1980 + $0x118] sm:$0xf]
      %v2052 = vld [vmem:[%s1980 + $0x11c] sm:$0xf]
      %v2053 = vld [vmem:[%s1980 + $0x120] sm:$0xf]
      %v2054 = vld [vmem:[%s1980 + $0x124] sm:$0xf]
      %v2055 = vld [vmem:[%s1980 + $0x128] sm:$0xf]
      %v2056 = vld [vmem:[%s1980 + $0x12c] sm:$0xf]
      %v2057 = vld [vmem:[%s1980 + $0x130] sm:$0xf]
      %v2058 = vld [vmem:[%s1980 + $0x134] sm:$0xf]
      %v2059 = vld [vmem:[%s1980 + $0x138] sm:$0xf]
      %v2060 = vld [vmem:[%s1980 + $0x13c] sm:$0xf]
      %v2061 = vld [vmem:[%s1980 + $0x140] sm:$0xf]
      %v2062 = vld [vmem:[%s1980 + $0x144] sm:$0xf]
      %v2063 = vld [vmem:[%s1980 + $0x148] sm:$0xf]
      %v2064 = vld [vmem:[%s1980 + $0x14c] sm:$0xf]
      %v2065 = vld [vmem:[%s1980 + $0x150] sm:$0xf]
      %v2066 = vld [vmem:[%s1980 + $0x154] sm:$0xf]
      %v2067 = vld [vmem:[%s1980 + $0x158] sm:$0xf]
      %v2068 = vld [vmem:[%s1980 + $0x15c] sm:$0xf]
      %v2069 = vld [vmem:[%s1980 + $0x160] sm:$0xf]
      %v2070 = vld [vmem:[%s1980 + $0x164] sm:$0xf]
      %v2071 = vld [vmem:[%s1980 + $0x168] sm:$0xf]
      %v2072 = vld [vmem:[%s1980 + $0x16c] sm:$0xf]
      %v2073 = vld [vmem:[%s1980 + $0x170] sm:$0xf]
      %v2074 = vld [vmem:[%s1980 + $0x174] sm:$0xf]
      %v2075 = vld [vmem:[%s1980 + $0x178] sm:$0xf]
      %v2076 = vld [vmem:[%s1980 + $0x17c] sm:$0xf]
      %v2077 = vld [vmem:[%s1980 + $0x180] sm:$0xf]
      %v2078 = vld [vmem:[%s1980 + $0x184] sm:$0xf]
      %v2079 = vld [vmem:[%s1980 + $0x188] sm:$0xf]
      %v2080 = vld [vmem:[%s1980 + $0x18c] sm:$0xf]
      %v2081 = vld [vmem:[%s1980 + $0x190] sm:$0xf]
      %v2082 = vld [vmem:[%s1980 + $0x194] sm:$0xf]
      %v2083 = vld [vmem:[%s1980 + $0x198] sm:$0xf]
      %v2084 = vld [vmem:[%s1980 + $0x19c] sm:$0xf]
      %v2085 = vld [vmem:[%s1980 + $0x1a0] sm:$0xf]
      %v2086 = vld [vmem:[%s1980 + $0x1a4] sm:$0xf]
      %v2087 = vld [vmem:[%s1980 + $0x1a8] sm:$0xf]
      %v2088 = vld [vmem:[%s1980 + $0x1ac] sm:$0xf]
      %v2089 = vld [vmem:[%s1980 + $0x1b0] sm:$0xf]
      %v2090 = vld [vmem:[%s1980 + $0x1b4] sm:$0xf]
      %v2091 = vld [vmem:[%s1980 + $0x1b8] sm:$0xf]
      %v2092 = vld [vmem:[%s1980 + $0x1bc] sm:$0xf]
      %v2093 = vld [vmem:[%s1980 + $0x1c0] sm:$0xf]
      %v2094 = vld [vmem:[%s1980 + $0x1c4] sm:$0xf]
      %v2095 = vld [vmem:[%s1980 + $0x1c8] sm:$0xf]
      %v2096 = vld [vmem:[%s1980 + $0x1cc] sm:$0xf]
      %v2097 = vld [vmem:[%s1980 + $0x1d0] sm:$0xf]
      %v2098 = vld [vmem:[%s1980 + $0x1d4] sm:$0xf]
      %v2099 = vld [vmem:[%s1980 + $0x1d8] sm:$0xf]
      %v2100 = vld [vmem:[%s1980 + $0x1dc] sm:$0xf]
      %v2101 = vld [vmem:[%s1980 + $0x1e0] sm:$0xf]
      %v2102 = vld [vmem:[%s1980 + $0x1e4] sm:$0xf]
      %v2103 = vld [vmem:[%s1980 + $0x1e8] sm:$0xf]
      %v2104 = vld [vmem:[%s1980 + $0x1ec] sm:$0xf]
      %v2105 = vld [vmem:[%s1980 + $0x1f0] sm:$0xf]
      %v2106 = vld [vmem:[%s1980 + $0x1f4] sm:$0xf]
      %v2107 = vld [vmem:[%s1980 + $0x1f8] sm:$0xf]
      %v2108 = vld [vmem:[%s1980 + $0x1fc] sm:$0xf]
      %v2109 = vld [vmem:[%s1980 + $0x200] sm:$0xf]
      %v2110 = vld [vmem:[%s1980 + $0x204] sm:$0xf]
      %v2111 = vld [vmem:[%s1980 + $0x208] sm:$0xf]
      %v2112 = vld [vmem:[%s1980 + $0x20c] sm:$0xf]
      %v2113 = vld [vmem:[%s1980 + $0x210] sm:$0xf]
      %v2114 = vld [vmem:[%s1980 + $0x214] sm:$0xf]
      %v2115 = vld [vmem:[%s1980 + $0x218] sm:$0xf]
      %v2116 = vld [vmem:[%s1980 + $0x21c] sm:$0xf]
      %v2117 = vld [vmem:[%s1980 + $0x220] sm:$0xf]
      %v2118 = vld [vmem:[%s1980 + $0x224] sm:$0xf]
      %v2119 = vld [vmem:[%s1980 + $0x228] sm:$0xf]
      %v2120 = vld [vmem:[%s1980 + $0x22c] sm:$0xf]
      %v2121 = vld [vmem:[%s1980 + $0x230] sm:$0xf]
      %v2122 = vld [vmem:[%s1980 + $0x234] sm:$0xf]
      %v2123 = vld [vmem:[%s1980 + $0x238] sm:$0xf]
      %v2124 = vld [vmem:[%s1980 + $0x23c] sm:$0xf]
      %2125 = vrot.lane.b32.xlu0 %v1245, 126
      %v2126 = vpop.permute.xlu0 %2125
      %s2128 = vtos %v2126
      %v2129 = vstv %s2128
      %v2130 = vpack.i.b16 %v2129, %v2129
      %v2132 = vmul.bf16 %v2130, %v1981
      %v2133 = vmul.bf16 %v2130, %v1982
      %v2134 = vmul.bf16 %v2130, %v1983
      %v2135 = vmul.bf16 %v2130, %v1984
      %v2136 = vmul.bf16 %v2130, %v1985
      %v2137 = vmul.bf16 %v2130, %v1986
      %v2138 = vmul.bf16 %v2130, %v1987
      %v2139 = vmul.bf16 %v2130, %v1988
      %v2140 = vmul.bf16 %v2130, %v1989
      %v2141 = vmul.bf16 %v2130, %v1990
      %v2142 = vmul.bf16 %v2130, %v1991
      %v2143 = vmul.bf16 %v2130, %v1992
      %v2144 = vmul.bf16 %v2130, %v1993
      %v2145 = vmul.bf16 %v2130, %v1994
      %v2146 = vmul.bf16 %v2130, %v1995
      %v2147 = vmul.bf16 %v2130, %v1996
      %v2148 = vmul.bf16 %v2130, %v1997
      %v2149 = vmul.bf16 %v2130, %v1998
      %v2150 = vmul.bf16 %v2130, %v1999
      %v2151 = vmul.bf16 %v2130, %v2000
      %v2152 = vmul.bf16 %v2130, %v2001
      %v2153 = vmul.bf16 %v2130, %v2002
      %v2154 = vmul.bf16 %v2130, %v2003
      %v2155 = vmul.bf16 %v2130, %v2004
      %v2156 = vmul.bf16 %v2130, %v2005
      %v2157 = vmul.bf16 %v2130, %v2006
      %v2158 = vmul.bf16 %v2130, %v2007
      %v2159 = vmul.bf16 %v2130, %v2008
      %v2160 = vmul.bf16 %v2130, %v2009
      %v2161 = vmul.bf16 %v2130, %v2010
      %v2162 = vmul.bf16 %v2130, %v2011
      %v2163 = vmul.bf16 %v2130, %v2012
      %v2164 = vmul.bf16 %v2130, %v2013
      %v2165 = vmul.bf16 %v2130, %v2014
      %v2166 = vmul.bf16 %v2130, %v2015
      %v2167 = vmul.bf16 %v2130, %v2016
      %v2168 = vmul.bf16 %v2130, %v2017
      %v2169 = vmul.bf16 %v2130, %v2018
      %v2170 = vmul.bf16 %v2130, %v2019
      %v2171 = vmul.bf16 %v2130, %v2020
      %v2172 = vmul.bf16 %v2130, %v2021
      %v2173 = vmul.bf16 %v2130, %v2022
      %v2174 = vmul.bf16 %v2130, %v2023
      %v2175 = vmul.bf16 %v2130, %v2024
      %v2176 = vmul.bf16 %v2130, %v2025
      %v2177 = vmul.bf16 %v2130, %v2026
      %v2178 = vmul.bf16 %v2130, %v2027
      %v2179 = vmul.bf16 %v2130, %v2028
      %v2180 = vmul.bf16 %v2130, %v2029
      %v2181 = vmul.bf16 %v2130, %v2030
      %v2182 = vmul.bf16 %v2130, %v2031
      %v2183 = vmul.bf16 %v2130, %v2032
      %v2184 = vmul.bf16 %v2130, %v2033
      %v2185 = vmul.bf16 %v2130, %v2034
      %v2186 = vmul.bf16 %v2130, %v2035
      %v2187 = vmul.bf16 %v2130, %v2036
      %v2188 = vmul.bf16 %v2130, %v2037
      %v2189 = vmul.bf16 %v2130, %v2038
      %v2190 = vmul.bf16 %v2130, %v2039
      %v2191 = vmul.bf16 %v2130, %v2040
      %v2192 = vmul.bf16 %v2130, %v2041
      %v2193 = vmul.bf16 %v2130, %v2042
      %v2194 = vmul.bf16 %v2130, %v2043
      %v2195 = vmul.bf16 %v2130, %v2044
      %v2196 = vmul.bf16 %v2130, %v2045
      %v2197 = vmul.bf16 %v2130, %v2046
      %v2198 = vmul.bf16 %v2130, %v2047
      %v2199 = vmul.bf16 %v2130, %v2048
      %v2200 = vmul.bf16 %v2130, %v2049
      %v2201 = vmul.bf16 %v2130, %v2050
      %v2202 = vmul.bf16 %v2130, %v2051
      %v2203 = vmul.bf16 %v2130, %v2052
      %v2204 = vmul.bf16 %v2130, %v2053
      %v2205 = vmul.bf16 %v2130, %v2054
      %v2206 = vmul.bf16 %v2130, %v2055
      %v2207 = vmul.bf16 %v2130, %v2056
      %v2208 = vmul.bf16 %v2130, %v2057
      %v2209 = vmul.bf16 %v2130, %v2058
      %v2210 = vmul.bf16 %v2130, %v2059
      %v2211 = vmul.bf16 %v2130, %v2060
      %v2212 = vmul.bf16 %v2130, %v2061
      %v2213 = vmul.bf16 %v2130, %v2062
      %v2214 = vmul.bf16 %v2130, %v2063
      %v2215 = vmul.bf16 %v2130, %v2064
      %v2216 = vmul.bf16 %v2130, %v2065
      %v2217 = vmul.bf16 %v2130, %v2066
      %v2218 = vmul.bf16 %v2130, %v2067
      %v2219 = vmul.bf16 %v2130, %v2068
      %v2220 = vmul.bf16 %v2130, %v2069
      %v2221 = vmul.bf16 %v2130, %v2070
      %v2222 = vmul.bf16 %v2130, %v2071
      %v2223 = vmul.bf16 %v2130, %v2072
      %v2224 = vmul.bf16 %v2130, %v2073
      %v2225 = vmul.bf16 %v2130, %v2074
      %v2226 = vmul.bf16 %v2130, %v2075
      %v2227 = vmul.bf16 %v2130, %v2076
      %v2228 = vmul.bf16 %v2130, %v2077
      %v2229 = vmul.bf16 %v2130, %v2078
      %v2230 = vmul.bf16 %v2130, %v2079
      %v2231 = vmul.bf16 %v2130, %v2080
      %v2232 = vmul.bf16 %v2130, %v2081
      %v2233 = vmul.bf16 %v2130, %v2082
      %v2234 = vmul.bf16 %v2130, %v2083
      %v2235 = vmul.bf16 %v2130, %v2084
      %v2236 = vmul.bf16 %v2130, %v2085
      %v2237 = vmul.bf16 %v2130, %v2086
      %v2238 = vmul.bf16 %v2130, %v2087
      %v2239 = vmul.bf16 %v2130, %v2088
      %v2240 = vmul.bf16 %v2130, %v2089
      %v2241 = vmul.bf16 %v2130, %v2090
      %v2242 = vmul.bf16 %v2130, %v2091
      %v2243 = vmul.bf16 %v2130, %v2092
      %v2244 = vmul.bf16 %v2130, %v2093
      %v2245 = vmul.bf16 %v2130, %v2094
      %v2246 = vmul.bf16 %v2130, %v2095
      %v2247 = vmul.bf16 %v2130, %v2096
      %v2248 = vmul.bf16 %v2130, %v2097
      %v2249 = vmul.bf16 %v2130, %v2098
      %v2250 = vmul.bf16 %v2130, %v2099
      %v2251 = vmul.bf16 %v2130, %v2100
      %v2252 = vmul.bf16 %v2130, %v2101
      %v2253 = vmul.bf16 %v2130, %v2102
      %v2254 = vmul.bf16 %v2130, %v2103
      %v2255 = vmul.bf16 %v2130, %v2104
      %v2256 = vmul.bf16 %v2130, %v2105
      %v2257 = vmul.bf16 %v2130, %v2106
      %v2258 = vmul.bf16 %v2130, %v2107
      %v2259 = vmul.bf16 %v2130, %v2108
      %v2260 = vmul.bf16 %v2130, %v2109
      %v2261 = vmul.bf16 %v2130, %v2110
      %v2262 = vmul.bf16 %v2130, %v2111
      %v2263 = vmul.bf16 %v2130, %v2112
      %v2264 = vmul.bf16 %v2130, %v2113
      %v2265 = vmul.bf16 %v2130, %v2114
      %v2266 = vmul.bf16 %v2130, %v2115
      %v2267 = vmul.bf16 %v2130, %v2116
      %v2268 = vmul.bf16 %v2130, %v2117
      %v2269 = vmul.bf16 %v2130, %v2118
      %v2270 = vmul.bf16 %v2130, %v2119
      %v2271 = vmul.bf16 %v2130, %v2120
      %v2272 = vmul.bf16 %v2130, %v2121
      %v2273 = vmul.bf16 %v2130, %v2122
      %v2274 = vmul.bf16 %v2130, %v2123
      %v2275 = vmul.bf16 %v2130, %v2124
      %v2276 = vadd.bf16 %v1836, %v2132
      %v2277 = vadd.bf16 %v1837, %v2133
      %v2278 = vadd.bf16 %v1838, %v2134
      %v2279 = vadd.bf16 %v1839, %v2135
      %v2280 = vadd.bf16 %v1840, %v2136
      %v2281 = vadd.bf16 %v1841, %v2137
      %v2282 = vadd.bf16 %v1842, %v2138
      %v2283 = vadd.bf16 %v1843, %v2139
      %v2284 = vadd.bf16 %v1844, %v2140
      %v2285 = vadd.bf16 %v1845, %v2141
      %v2286 = vadd.bf16 %v1846, %v2142
      %v2287 = vadd.bf16 %v1847, %v2143
      %v2288 = vadd.bf16 %v1848, %v2144
      %v2289 = vadd.bf16 %v1849, %v2145
      %v2290 = vadd.bf16 %v1850, %v2146
      %v2291 = vadd.bf16 %v1851, %v2147
      %v2292 = vadd.bf16 %v1852, %v2148
      %v2293 = vadd.bf16 %v1853, %v2149
      %v2294 = vadd.bf16 %v1854, %v2150
      %v2295 = vadd.bf16 %v1855, %v2151
      %v2296 = vadd.bf16 %v1856, %v2152
      %v2297 = vadd.bf16 %v1857, %v2153
      %v2298 = vadd.bf16 %v1858, %v2154
      %v2299 = vadd.bf16 %v1859, %v2155
      %v2300 = vadd.bf16 %v1860, %v2156
      %v2301 = vadd.bf16 %v1861, %v2157
      %v2302 = vadd.bf16 %v1862, %v2158
      %v2303 = vadd.bf16 %v1863, %v2159
      %v2304 = vadd.bf16 %v1864, %v2160
      %v2305 = vadd.bf16 %v1865, %v2161
      %v2306 = vadd.bf16 %v1866, %v2162
      %v2307 = vadd.bf16 %v1867, %v2163
      %v2308 = vadd.bf16 %v1868, %v2164
      %v2309 = vadd.bf16 %v1869, %v2165
      %v2310 = vadd.bf16 %v1870, %v2166
      %v2311 = vadd.bf16 %v1871, %v2167
      %v2312 = vadd.bf16 %v1872, %v2168
      %v2313 = vadd.bf16 %v1873, %v2169
      %v2314 = vadd.bf16 %v1874, %v2170
      %v2315 = vadd.bf16 %v1875, %v2171
      %v2316 = vadd.bf16 %v1876, %v2172
      %v2317 = vadd.bf16 %v1877, %v2173
      %v2318 = vadd.bf16 %v1878, %v2174
      %v2319 = vadd.bf16 %v1879, %v2175
      %v2320 = vadd.bf16 %v1880, %v2176
      %v2321 = vadd.bf16 %v1881, %v2177
      %v2322 = vadd.bf16 %v1882, %v2178
      %v2323 = vadd.bf16 %v1883, %v2179
      %v2324 = vadd.bf16 %v1884, %v2180
      %v2325 = vadd.bf16 %v1885, %v2181
      %v2326 = vadd.bf16 %v1886, %v2182
      %v2327 = vadd.bf16 %v1887, %v2183
      %v2328 = vadd.bf16 %v1888, %v2184
      %v2329 = vadd.bf16 %v1889, %v2185
      %v2330 = vadd.bf16 %v1890, %v2186
      %v2331 = vadd.bf16 %v1891, %v2187
      %v2332 = vadd.bf16 %v1892, %v2188
      %v2333 = vadd.bf16 %v1893, %v2189
      %v2334 = vadd.bf16 %v1894, %v2190
      %v2335 = vadd.bf16 %v1895, %v2191
      %v2336 = vadd.bf16 %v1896, %v2192
      %v2337 = vadd.bf16 %v1897, %v2193
      %v2338 = vadd.bf16 %v1898, %v2194
      %v2339 = vadd.bf16 %v1899, %v2195
      %v2340 = vadd.bf16 %v1900, %v2196
      %v2341 = vadd.bf16 %v1901, %v2197
      %v2342 = vadd.bf16 %v1902, %v2198
      %v2343 = vadd.bf16 %v1903, %v2199
      %v2344 = vadd.bf16 %v1904, %v2200
      %v2345 = vadd.bf16 %v1905, %v2201
      %v2346 = vadd.bf16 %v1906, %v2202
      %v2347 = vadd.bf16 %v1907, %v2203
      %v2348 = vadd.bf16 %v1908, %v2204
      %v2349 = vadd.bf16 %v1909, %v2205
      %v2350 = vadd.bf16 %v1910, %v2206
      %v2351 = vadd.bf16 %v1911, %v2207
      %v2352 = vadd.bf16 %v1912, %v2208
      %v2353 = vadd.bf16 %v1913, %v2209
      %v2354 = vadd.bf16 %v1914, %v2210
      %v2355 = vadd.bf16 %v1915, %v2211
      %v2356 = vadd.bf16 %v1916, %v2212
      %v2357 = vadd.bf16 %v1917, %v2213
      %v2358 = vadd.bf16 %v1918, %v2214
      %v2359 = vadd.bf16 %v1919, %v2215
      %v2360 = vadd.bf16 %v1920, %v2216
      %v2361 = vadd.bf16 %v1921, %v2217
      %v2362 = vadd.bf16 %v1922, %v2218
      %v2363 = vadd.bf16 %v1923, %v2219
      %v2364 = vadd.bf16 %v1924, %v2220
      %v2365 = vadd.bf16 %v1925, %v2221
      %v2366 = vadd.bf16 %v1926, %v2222
      %v2367 = vadd.bf16 %v1927, %v2223
      %v2368 = vadd.bf16 %v1928, %v2224
      %v2369 = vadd.bf16 %v1929, %v2225
      %v2370 = vadd.bf16 %v1930, %v2226
      %v2371 = vadd.bf16 %v1931, %v2227
      %v2372 = vadd.bf16 %v1932, %v2228
      %v2373 = vadd.bf16 %v1933, %v2229
      %v2374 = vadd.bf16 %v1934, %v2230
      %v2375 = vadd.bf16 %v1935, %v2231
      %v2376 = vadd.bf16 %v1936, %v2232
      %v2377 = vadd.bf16 %v1937, %v2233
      %v2378 = vadd.bf16 %v1938, %v2234
      %v2379 = vadd.bf16 %v1939, %v2235
      %v2380 = vadd.bf16 %v1940, %v2236
      %v2381 = vadd.bf16 %v1941, %v2237
      %v2382 = vadd.bf16 %v1942, %v2238
      %v2383 = vadd.bf16 %v1943, %v2239
      %v2384 = vadd.bf16 %v1944, %v2240
      %v2385 = vadd.bf16 %v1945, %v2241
      %v2386 = vadd.bf16 %v1946, %v2242
      %v2387 = vadd.bf16 %v1947, %v2243
      %v2388 = vadd.bf16 %v1948, %v2244
      %v2389 = vadd.bf16 %v1949, %v2245
      %v2390 = vadd.bf16 %v1950, %v2246
      %v2391 = vadd.bf16 %v1951, %v2247
      %v2392 = vadd.bf16 %v1952, %v2248
      %v2393 = vadd.bf16 %v1953, %v2249
      %v2394 = vadd.bf16 %v1954, %v2250
      %v2395 = vadd.bf16 %v1955, %v2251
      %v2396 = vadd.bf16 %v1956, %v2252
      %v2397 = vadd.bf16 %v1957, %v2253
      %v2398 = vadd.bf16 %v1958, %v2254
      %v2399 = vadd.bf16 %v1959, %v2255
      %v2400 = vadd.bf16 %v1960, %v2256
      %v2401 = vadd.bf16 %v1961, %v2257
      %v2402 = vadd.bf16 %v1962, %v2258
      %v2403 = vadd.bf16 %v1963, %v2259
      %v2404 = vadd.bf16 %v1964, %v2260
      %v2405 = vadd.bf16 %v1965, %v2261
      %v2406 = vadd.bf16 %v1966, %v2262
      %v2407 = vadd.bf16 %v1967, %v2263
      %v2408 = vadd.bf16 %v1968, %v2264
      %v2409 = vadd.bf16 %v1969, %v2265
      %v2410 = vadd.bf16 %v1970, %v2266
      %v2411 = vadd.bf16 %v1971, %v2267
      %v2412 = vadd.bf16 %v1972, %v2268
      %v2413 = vadd.bf16 %v1973, %v2269
      %v2414 = vadd.bf16 %v1974, %v2270
      %v2415 = vadd.bf16 %v1975, %v2271
      %v2416 = vadd.bf16 %v1976, %v2272
      %v2417 = vadd.bf16 %v1977, %v2273
      %v2418 = vadd.bf16 %v1978, %v2274
      %v2419 = vadd.bf16 %v1979, %v2275
      %s2420 = scalar_lea.vmem %s5, 1728
      %v2421 = vld [vmem:[%s2420] sm:$0xf]
      %v2422 = vld [vmem:[%s2420 + $0x4] sm:$0xf]
      %v2423 = vld [vmem:[%s2420 + $0x8] sm:$0xf]
      %v2424 = vld [vmem:[%s2420 + $0xc] sm:$0xf]
      %v2425 = vld [vmem:[%s2420 + $0x10] sm:$0xf]
      %v2426 = vld [vmem:[%s2420 + $0x14] sm:$0xf]
      %v2427 = vld [vmem:[%s2420 + $0x18] sm:$0xf]
      %v2428 = vld [vmem:[%s2420 + $0x1c] sm:$0xf]
      %v2429 = vld [vmem:[%s2420 + $0x20] sm:$0xf]
      %v2430 = vld [vmem:[%s2420 + $0x24] sm:$0xf]
      %v2431 = vld [vmem:[%s2420 + $0x28] sm:$0xf]
      %v2432 = vld [vmem:[%s2420 + $0x2c] sm:$0xf]
      %v2433 = vld [vmem:[%s2420 + $0x30] sm:$0xf]
      %v2434 = vld [vmem:[%s2420 + $0x34] sm:$0xf]
      %v2435 = vld [vmem:[%s2420 + $0x38] sm:$0xf]
      %v2436 = vld [vmem:[%s2420 + $0x3c] sm:$0xf]
      %v2437 = vld [vmem:[%s2420 + $0x40] sm:$0xf]
      %v2438 = vld [vmem:[%s2420 + $0x44] sm:$0xf]
      %v2439 = vld [vmem:[%s2420 + $0x48] sm:$0xf]
      %v2440 = vld [vmem:[%s2420 + $0x4c] sm:$0xf]
      %v2441 = vld [vmem:[%s2420 + $0x50] sm:$0xf]
      %v2442 = vld [vmem:[%s2420 + $0x54] sm:$0xf]
      %v2443 = vld [vmem:[%s2420 + $0x58] sm:$0xf]
      %v2444 = vld [vmem:[%s2420 + $0x5c] sm:$0xf]
      %v2445 = vld [vmem:[%s2420 + $0x60] sm:$0xf]
      %v2446 = vld [vmem:[%s2420 + $0x64] sm:$0xf]
      %v2447 = vld [vmem:[%s2420 + $0x68] sm:$0xf]
      %v2448 = vld [vmem:[%s2420 + $0x6c] sm:$0xf]
      %v2449 = vld [vmem:[%s2420 + $0x70] sm:$0xf]
      %v2450 = vld [vmem:[%s2420 + $0x74] sm:$0xf]
      %v2451 = vld [vmem:[%s2420 + $0x78] sm:$0xf]
      %v2452 = vld [vmem:[%s2420 + $0x7c] sm:$0xf]
      %v2453 = vld [vmem:[%s2420 + $0x80] sm:$0xf]
      %v2454 = vld [vmem:[%s2420 + $0x84] sm:$0xf]
      %v2455 = vld [vmem:[%s2420 + $0x88] sm:$0xf]
      %v2456 = vld [vmem:[%s2420 + $0x8c] sm:$0xf]
      %v2457 = vld [vmem:[%s2420 + $0x90] sm:$0xf]
      %v2458 = vld [vmem:[%s2420 + $0x94] sm:$0xf]
      %v2459 = vld [vmem:[%s2420 + $0x98] sm:$0xf]
      %v2460 = vld [vmem:[%s2420 + $0x9c] sm:$0xf]
      %v2461 = vld [vmem:[%s2420 + $0xa0] sm:$0xf]
      %v2462 = vld [vmem:[%s2420 + $0xa4] sm:$0xf]
      %v2463 = vld [vmem:[%s2420 + $0xa8] sm:$0xf]
      %v2464 = vld [vmem:[%s2420 + $0xac] sm:$0xf]
      %v2465 = vld [vmem:[%s2420 + $0xb0] sm:$0xf]
      %v2466 = vld [vmem:[%s2420 + $0xb4] sm:$0xf]
      %v2467 = vld [vmem:[%s2420 + $0xb8] sm:$0xf]
      %v2468 = vld [vmem:[%s2420 + $0xbc] sm:$0xf]
      %v2469 = vld [vmem:[%s2420 + $0xc0] sm:$0xf]
      %v2470 = vld [vmem:[%s2420 + $0xc4] sm:$0xf]
      %v2471 = vld [vmem:[%s2420 + $0xc8] sm:$0xf]
      %v2472 = vld [vmem:[%s2420 + $0xcc] sm:$0xf]
      %v2473 = vld [vmem:[%s2420 + $0xd0] sm:$0xf]
      %v2474 = vld [vmem:[%s2420 + $0xd4] sm:$0xf]
      %v2475 = vld [vmem:[%s2420 + $0xd8] sm:$0xf]
      %v2476 = vld [vmem:[%s2420 + $0xdc] sm:$0xf]
      %v2477 = vld [vmem:[%s2420 + $0xe0] sm:$0xf]
      %v2478 = vld [vmem:[%s2420 + $0xe4] sm:$0xf]
      %v2479 = vld [vmem:[%s2420 + $0xe8] sm:$0xf]
      %v2480 = vld [vmem:[%s2420 + $0xec] sm:$0xf]
      %v2481 = vld [vmem:[%s2420 + $0xf0] sm:$0xf]
      %v2482 = vld [vmem:[%s2420 + $0xf4] sm:$0xf]
      %v2483 = vld [vmem:[%s2420 + $0xf8] sm:$0xf]
      %v2484 = vld [vmem:[%s2420 + $0xfc] sm:$0xf]
      %v2485 = vld [vmem:[%s2420 + $0x100] sm:$0xf]
      %v2486 = vld [vmem:[%s2420 + $0x104] sm:$0xf]
      %v2487 = vld [vmem:[%s2420 + $0x108] sm:$0xf]
      %v2488 = vld [vmem:[%s2420 + $0x10c] sm:$0xf]
      %v2489 = vld [vmem:[%s2420 + $0x110] sm:$0xf]
      %v2490 = vld [vmem:[%s2420 + $0x114] sm:$0xf]
      %v2491 = vld [vmem:[%s2420 + $0x118] sm:$0xf]
      %v2492 = vld [vmem:[%s2420 + $0x11c] sm:$0xf]
      %v2493 = vld [vmem:[%s2420 + $0x120] sm:$0xf]
      %v2494 = vld [vmem:[%s2420 + $0x124] sm:$0xf]
      %v2495 = vld [vmem:[%s2420 + $0x128] sm:$0xf]
      %v2496 = vld [vmem:[%s2420 + $0x12c] sm:$0xf]
      %v2497 = vld [vmem:[%s2420 + $0x130] sm:$0xf]
      %v2498 = vld [vmem:[%s2420 + $0x134] sm:$0xf]
      %v2499 = vld [vmem:[%s2420 + $0x138] sm:$0xf]
      %v2500 = vld [vmem:[%s2420 + $0x13c] sm:$0xf]
      %v2501 = vld [vmem:[%s2420 + $0x140] sm:$0xf]
      %v2502 = vld [vmem:[%s2420 + $0x144] sm:$0xf]
      %v2503 = vld [vmem:[%s2420 + $0x148] sm:$0xf]
      %v2504 = vld [vmem:[%s2420 + $0x14c] sm:$0xf]
      %v2505 = vld [vmem:[%s2420 + $0x150] sm:$0xf]
      %v2506 = vld [vmem:[%s2420 + $0x154] sm:$0xf]
      %v2507 = vld [vmem:[%s2420 + $0x158] sm:$0xf]
      %v2508 = vld [vmem:[%s2420 + $0x15c] sm:$0xf]
      %v2509 = vld [vmem:[%s2420 + $0x160] sm:$0xf]
      %v2510 = vld [vmem:[%s2420 + $0x164] sm:$0xf]
      %v2511 = vld [vmem:[%s2420 + $0x168] sm:$0xf]
      %v2512 = vld [vmem:[%s2420 + $0x16c] sm:$0xf]
      %v2513 = vld [vmem:[%s2420 + $0x170] sm:$0xf]
      %v2514 = vld [vmem:[%s2420 + $0x174] sm:$0xf]
      %v2515 = vld [vmem:[%s2420 + $0x178] sm:$0xf]
      %v2516 = vld [vmem:[%s2420 + $0x17c] sm:$0xf]
      %v2517 = vld [vmem:[%s2420 + $0x180] sm:$0xf]
      %v2518 = vld [vmem:[%s2420 + $0x184] sm:$0xf]
      %v2519 = vld [vmem:[%s2420 + $0x188] sm:$0xf]
      %v2520 = vld [vmem:[%s2420 + $0x18c] sm:$0xf]
      %v2521 = vld [vmem:[%s2420 + $0x190] sm:$0xf]
      %v2522 = vld [vmem:[%s2420 + $0x194] sm:$0xf]
      %v2523 = vld [vmem:[%s2420 + $0x198] sm:$0xf]
      %v2524 = vld [vmem:[%s2420 + $0x19c] sm:$0xf]
      %v2525 = vld [vmem:[%s2420 + $0x1a0] sm:$0xf]
      %v2526 = vld [vmem:[%s2420 + $0x1a4] sm:$0xf]
      %v2527 = vld [vmem:[%s2420 + $0x1a8] sm:$0xf]
      %v2528 = vld [vmem:[%s2420 + $0x1ac] sm:$0xf]
      %v2529 = vld [vmem:[%s2420 + $0x1b0] sm:$0xf]
      %v2530 = vld [vmem:[%s2420 + $0x1b4] sm:$0xf]
      %v2531 = vld [vmem:[%s2420 + $0x1b8] sm:$0xf]
      %v2532 = vld [vmem:[%s2420 + $0x1bc] sm:$0xf]
      %v2533 = vld [vmem:[%s2420 + $0x1c0] sm:$0xf]
      %v2534 = vld [vmem:[%s2420 + $0x1c4] sm:$0xf]
      %v2535 = vld [vmem:[%s2420 + $0x1c8] sm:$0xf]
      %v2536 = vld [vmem:[%s2420 + $0x1cc] sm:$0xf]
      %v2537 = vld [vmem:[%s2420 + $0x1d0] sm:$0xf]
      %v2538 = vld [vmem:[%s2420 + $0x1d4] sm:$0xf]
      %v2539 = vld [vmem:[%s2420 + $0x1d8] sm:$0xf]
      %v2540 = vld [vmem:[%s2420 + $0x1dc] sm:$0xf]
      %v2541 = vld [vmem:[%s2420 + $0x1e0] sm:$0xf]
      %v2542 = vld [vmem:[%s2420 + $0x1e4] sm:$0xf]
      %v2543 = vld [vmem:[%s2420 + $0x1e8] sm:$0xf]
      %v2544 = vld [vmem:[%s2420 + $0x1ec] sm:$0xf]
      %v2545 = vld [vmem:[%s2420 + $0x1f0] sm:$0xf]
      %v2546 = vld [vmem:[%s2420 + $0x1f4] sm:$0xf]
      %v2547 = vld [vmem:[%s2420 + $0x1f8] sm:$0xf]
      %v2548 = vld [vmem:[%s2420 + $0x1fc] sm:$0xf]
      %v2549 = vld [vmem:[%s2420 + $0x200] sm:$0xf]
      %v2550 = vld [vmem:[%s2420 + $0x204] sm:$0xf]
      %v2551 = vld [vmem:[%s2420 + $0x208] sm:$0xf]
      %v2552 = vld [vmem:[%s2420 + $0x20c] sm:$0xf]
      %v2553 = vld [vmem:[%s2420 + $0x210] sm:$0xf]
      %v2554 = vld [vmem:[%s2420 + $0x214] sm:$0xf]
      %v2555 = vld [vmem:[%s2420 + $0x218] sm:$0xf]
      %v2556 = vld [vmem:[%s2420 + $0x21c] sm:$0xf]
      %v2557 = vld [vmem:[%s2420 + $0x220] sm:$0xf]
      %v2558 = vld [vmem:[%s2420 + $0x224] sm:$0xf]
      %v2559 = vld [vmem:[%s2420 + $0x228] sm:$0xf]
      %v2560 = vld [vmem:[%s2420 + $0x22c] sm:$0xf]
      %v2561 = vld [vmem:[%s2420 + $0x230] sm:$0xf]
      %v2562 = vld [vmem:[%s2420 + $0x234] sm:$0xf]
      %v2563 = vld [vmem:[%s2420 + $0x238] sm:$0xf]
      %v2564 = vld [vmem:[%s2420 + $0x23c] sm:$0xf]
      %2565 = vrot.lane.b32.xlu0 %v1245, 125
      %v2566 = vpop.permute.xlu0 %2565
      %s2568 = vtos %v2566
      %v2569 = vstv %s2568
      %v2570 = vpack.i.b16 %v2569, %v2569
      %v2572 = vmul.bf16 %v2570, %v2421
      %v2573 = vmul.bf16 %v2570, %v2422
      %v2574 = vmul.bf16 %v2570, %v2423
      %v2575 = vmul.bf16 %v2570, %v2424
      %v2576 = vmul.bf16 %v2570, %v2425
      %v2577 = vmul.bf16 %v2570, %v2426
      %v2578 = vmul.bf16 %v2570, %v2427
      %v2579 = vmul.bf16 %v2570, %v2428
      %v2580 = vmul.bf16 %v2570, %v2429
      %v2581 = vmul.bf16 %v2570, %v2430
      %v2582 = vmul.bf16 %v2570, %v2431
      %v2583 = vmul.bf16 %v2570, %v2432
      %v2584 = vmul.bf16 %v2570, %v2433
      %v2585 = vmul.bf16 %v2570, %v2434
      %v2586 = vmul.bf16 %v2570, %v2435
      %v2587 = vmul.bf16 %v2570, %v2436
      %v2588 = vmul.bf16 %v2570, %v2437
      %v2589 = vmul.bf16 %v2570, %v2438
      %v2590 = vmul.bf16 %v2570, %v2439
      %v2591 = vmul.bf16 %v2570, %v2440
      %v2592 = vmul.bf16 %v2570, %v2441
      %v2593 = vmul.bf16 %v2570, %v2442
      %v2594 = vmul.bf16 %v2570, %v2443
      %v2595 = vmul.bf16 %v2570, %v2444
      %v2596 = vmul.bf16 %v2570, %v2445
      %v2597 = vmul.bf16 %v2570, %v2446
      %v2598 = vmul.bf16 %v2570, %v2447
      %v2599 = vmul.bf16 %v2570, %v2448
      %v2600 = vmul.bf16 %v2570, %v2449
      %v2601 = vmul.bf16 %v2570, %v2450
      %v2602 = vmul.bf16 %v2570, %v2451
      %v2603 = vmul.bf16 %v2570, %v2452
      %v2604 = vmul.bf16 %v2570, %v2453
      %v2605 = vmul.bf16 %v2570, %v2454
      %v2606 = vmul.bf16 %v2570, %v2455
      %v2607 = vmul.bf16 %v2570, %v2456
      %v2608 = vmul.bf16 %v2570, %v2457
      %v2609 = vmul.bf16 %v2570, %v2458
      %v2610 = vmul.bf16 %v2570, %v2459
      %v2611 = vmul.bf16 %v2570, %v2460
      %v2612 = vmul.bf16 %v2570, %v2461
      %v2613 = vmul.bf16 %v2570, %v2462
      %v2614 = vmul.bf16 %v2570, %v2463
      %v2615 = vmul.bf16 %v2570, %v2464
      %v2616 = vmul.bf16 %v2570, %v2465
      %v2617 = vmul.bf16 %v2570, %v2466
      %v2618 = vmul.bf16 %v2570, %v2467
      %v2619 = vmul.bf16 %v2570, %v2468
      %v2620 = vmul.bf16 %v2570, %v2469
      %v2621 = vmul.bf16 %v2570, %v2470
      %v2622 = vmul.bf16 %v2570, %v2471
      %v2623 = vmul.bf16 %v2570, %v2472
      %v2624 = vmul.bf16 %v2570, %v2473
      %v2625 = vmul.bf16 %v2570, %v2474
      %v2626 = vmul.bf16 %v2570, %v2475
      %v2627 = vmul.bf16 %v2570, %v2476
      %v2628 = vmul.bf16 %v2570, %v2477
      %v2629 = vmul.bf16 %v2570, %v2478
      %v2630 = vmul.bf16 %v2570, %v2479
      %v2631 = vmul.bf16 %v2570, %v2480
      %v2632 = vmul.bf16 %v2570, %v2481
      %v2633 = vmul.bf16 %v2570, %v2482
      %v2634 = vmul.bf16 %v2570, %v2483
      %v2635 = vmul.bf16 %v2570, %v2484
      %v2636 = vmul.bf16 %v2570, %v2485
      %v2637 = vmul.bf16 %v2570, %v2486
      %v2638 = vmul.bf16 %v2570, %v2487
      %v2639 = vmul.bf16 %v2570, %v2488
      %v2640 = vmul.bf16 %v2570, %v2489
      %v2641 = vmul.bf16 %v2570, %v2490
      %v2642 = vmul.bf16 %v2570, %v2491
      %v2643 = vmul.bf16 %v2570, %v2492
      %v2644 = vmul.bf16 %v2570, %v2493
      %v2645 = vmul.bf16 %v2570, %v2494
      %v2646 = vmul.bf16 %v2570, %v2495
      %v2647 = vmul.bf16 %v2570, %v2496
      %v2648 = vmul.bf16 %v2570, %v2497
      %v2649 = vmul.bf16 %v2570, %v2498
      %v2650 = vmul.bf16 %v2570, %v2499
      %v2651 = vmul.bf16 %v2570, %v2500
      %v2652 = vmul.bf16 %v2570, %v2501
      %v2653 = vmul.bf16 %v2570, %v2502
      %v2654 = vmul.bf16 %v2570, %v2503
      %v2655 = vmul.bf16 %v2570, %v2504
      %v2656 = vmul.bf16 %v2570, %v2505
      %v2657 = vmul.bf16 %v2570, %v2506
      %v2658 = vmul.bf16 %v2570, %v2507
      %v2659 = vmul.bf16 %v2570, %v2508
      %v2660 = vmul.bf16 %v2570, %v2509
      %v2661 = vmul.bf16 %v2570, %v2510
      %v2662 = vmul.bf16 %v2570, %v2511
      %v2663 = vmul.bf16 %v2570, %v2512
      %v2664 = vmul.bf16 %v2570, %v2513
      %v2665 = vmul.bf16 %v2570, %v2514
      %v2666 = vmul.bf16 %v2570, %v2515
      %v2667 = vmul.bf16 %v2570, %v2516
      %v2668 = vmul.bf16 %v2570, %v2517
      %v2669 = vmul.bf16 %v2570, %v2518
      %v2670 = vmul.bf16 %v2570, %v2519
      %v2671 = vmul.bf16 %v2570, %v2520
      %v2672 = vmul.bf16 %v2570, %v2521
      %v2673 = vmul.bf16 %v2570, %v2522
      %v2674 = vmul.bf16 %v2570, %v2523
      %v2675 = vmul.bf16 %v2570, %v2524
      %v2676 = vmul.bf16 %v2570, %v2525
      %v2677 = vmul.bf16 %v2570, %v2526
      %v2678 = vmul.bf16 %v2570, %v2527
      %v2679 = vmul.bf16 %v2570, %v2528
      %v2680 = vmul.bf16 %v2570, %v2529
      %v2681 = vmul.bf16 %v2570, %v2530
      %v2682 = vmul.bf16 %v2570, %v2531
      %v2683 = vmul.bf16 %v2570, %v2532
      %v2684 = vmul.bf16 %v2570, %v2533
      %v2685 = vmul.bf16 %v2570, %v2534
      %v2686 = vmul.bf16 %v2570, %v2535
      %v2687 = vmul.bf16 %v2570, %v2536
      %v2688 = vmul.bf16 %v2570, %v2537
      %v2689 = vmul.bf16 %v2570, %v2538
      %v2690 = vmul.bf16 %v2570, %v2539
      %v2691 = vmul.bf16 %v2570, %v2540
      %v2692 = vmul.bf16 %v2570, %v2541
      %v2693 = vmul.bf16 %v2570, %v2542
      %v2694 = vmul.bf16 %v2570, %v2543
      %v2695 = vmul.bf16 %v2570, %v2544
      %v2696 = vmul.bf16 %v2570, %v2545
      %v2697 = vmul.bf16 %v2570, %v2546
      %v2698 = vmul.bf16 %v2570, %v2547
      %v2699 = vmul.bf16 %v2570, %v2548
      %v2700 = vmul.bf16 %v2570, %v2549
      %v2701 = vmul.bf16 %v2570, %v2550
      %v2702 = vmul.bf16 %v2570, %v2551
      %v2703 = vmul.bf16 %v2570, %v2552
      %v2704 = vmul.bf16 %v2570, %v2553
      %v2705 = vmul.bf16 %v2570, %v2554
      %v2706 = vmul.bf16 %v2570, %v2555
      %v2707 = vmul.bf16 %v2570, %v2556
      %v2708 = vmul.bf16 %v2570, %v2557
      %v2709 = vmul.bf16 %v2570, %v2558
      %v2710 = vmul.bf16 %v2570, %v2559
      %v2711 = vmul.bf16 %v2570, %v2560
      %v2712 = vmul.bf16 %v2570, %v2561
      %v2713 = vmul.bf16 %v2570, %v2562
      %v2714 = vmul.bf16 %v2570, %v2563
      %v2715 = vmul.bf16 %v2570, %v2564
      %v2716 = vadd.bf16 %v2276, %v2572
      %v2717 = vadd.bf16 %v2277, %v2573
      %v2718 = vadd.bf16 %v2278, %v2574
      %v2719 = vadd.bf16 %v2279, %v2575
      %v2720 = vadd.bf16 %v2280, %v2576
      %v2721 = vadd.bf16 %v2281, %v2577
      %v2722 = vadd.bf16 %v2282, %v2578
      %v2723 = vadd.bf16 %v2283, %v2579
      %v2724 = vadd.bf16 %v2284, %v2580
      %v2725 = vadd.bf16 %v2285, %v2581
      %v2726 = vadd.bf16 %v2286, %v2582
      %v2727 = vadd.bf16 %v2287, %v2583
      %v2728 = vadd.bf16 %v2288, %v2584
      %v2729 = vadd.bf16 %v2289, %v2585
      %v2730 = vadd.bf16 %v2290, %v2586
      %v2731 = vadd.bf16 %v2291, %v2587
      %v2732 = vadd.bf16 %v2292, %v2588
      %v2733 = vadd.bf16 %v2293, %v2589
      %v2734 = vadd.bf16 %v2294, %v2590
      %v2735 = vadd.bf16 %v2295, %v2591
      %v2736 = vadd.bf16 %v2296, %v2592
      %v2737 = vadd.bf16 %v2297, %v2593
      %v2738 = vadd.bf16 %v2298, %v2594
      %v2739 = vadd.bf16 %v2299, %v2595
      %v2740 = vadd.bf16 %v2300, %v2596
      %v2741 = vadd.bf16 %v2301, %v2597
      %v2742 = vadd.bf16 %v2302, %v2598
      %v2743 = vadd.bf16 %v2303, %v2599
      %v2744 = vadd.bf16 %v2304, %v2600
      %v2745 = vadd.bf16 %v2305, %v2601
      %v2746 = vadd.bf16 %v2306, %v2602
      %v2747 = vadd.bf16 %v2307, %v2603
      %v2748 = vadd.bf16 %v2308, %v2604
      %v2749 = vadd.bf16 %v2309, %v2605
      %v2750 = vadd.bf16 %v2310, %v2606
      %v2751 = vadd.bf16 %v2311, %v2607
      %v2752 = vadd.bf16 %v2312, %v2608
      %v2753 = vadd.bf16 %v2313, %v2609
      %v2754 = vadd.bf16 %v2314, %v2610
      %v2755 = vadd.bf16 %v2315, %v2611
      %v2756 = vadd.bf16 %v2316, %v2612
      %v2757 = vadd.bf16 %v2317, %v2613
      %v2758 = vadd.bf16 %v2318, %v2614
      %v2759 = vadd.bf16 %v2319, %v2615
      %v2760 = vadd.bf16 %v2320, %v2616
      %v2761 = vadd.bf16 %v2321, %v2617
      %v2762 = vadd.bf16 %v2322, %v2618
      %v2763 = vadd.bf16 %v2323, %v2619
      %v2764 = vadd.bf16 %v2324, %v2620
      %v2765 = vadd.bf16 %v2325, %v2621
      %v2766 = vadd.bf16 %v2326, %v2622
      %v2767 = vadd.bf16 %v2327, %v2623
      %v2768 = vadd.bf16 %v2328, %v2624
      %v2769 = vadd.bf16 %v2329, %v2625
      %v2770 = vadd.bf16 %v2330, %v2626
      %v2771 = vadd.bf16 %v2331, %v2627
      %v2772 = vadd.bf16 %v2332, %v2628
      %v2773 = vadd.bf16 %v2333, %v2629
      %v2774 = vadd.bf16 %v2334, %v2630
      %v2775 = vadd.bf16 %v2335, %v2631
      %v2776 = vadd.bf16 %v2336, %v2632
      %v2777 = vadd.bf16 %v2337, %v2633
      %v2778 = vadd.bf16 %v2338, %v2634
      %v2779 = vadd.bf16 %v2339, %v2635
      %v2780 = vadd.bf16 %v2340, %v2636
      %v2781 = vadd.bf16 %v2341, %v2637
      %v2782 = vadd.bf16 %v2342, %v2638
      %v2783 = vadd.bf16 %v2343, %v2639
      %v2784 = vadd.bf16 %v2344, %v2640
      %v2785 = vadd.bf16 %v2345, %v2641
      %v2786 = vadd.bf16 %v2346, %v2642
      %v2787 = vadd.bf16 %v2347, %v2643
      %v2788 = vadd.bf16 %v2348, %v2644
      %v2789 = vadd.bf16 %v2349, %v2645
      %v2790 = vadd.bf16 %v2350, %v2646
      %v2791 = vadd.bf16 %v2351, %v2647
      %v2792 = vadd.bf16 %v2352, %v2648
      %v2793 = vadd.bf16 %v2353, %v2649
      %v2794 = vadd.bf16 %v2354, %v2650
      %v2795 = vadd.bf16 %v2355, %v2651
      %v2796 = vadd.bf16 %v2356, %v2652
      %v2797 = vadd.bf16 %v2357, %v2653
      %v2798 = vadd.bf16 %v2358, %v2654
      %v2799 = vadd.bf16 %v2359, %v2655
      %v2800 = vadd.bf16 %v2360, %v2656
      %v2801 = vadd.bf16 %v2361, %v2657
      %v2802 = vadd.bf16 %v2362, %v2658
      %v2803 = vadd.bf16 %v2363, %v2659
      %v2804 = vadd.bf16 %v2364, %v2660
      %v2805 = vadd.bf16 %v2365, %v2661
      %v2806 = vadd.bf16 %v2366, %v2662
      %v2807 = vadd.bf16 %v2367, %v2663
      %v2808 = vadd.bf16 %v2368, %v2664
      %v2809 = vadd.bf16 %v2369, %v2665
      %v2810 = vadd.bf16 %v2370, %v2666
      %v2811 = vadd.bf16 %v2371, %v2667
      %v2812 = vadd.bf16 %v2372, %v2668
      %v2813 = vadd.bf16 %v2373, %v2669
      %v2814 = vadd.bf16 %v2374, %v2670
      %v2815 = vadd.bf16 %v2375, %v2671
      %v2816 = vadd.bf16 %v2376, %v2672
      %v2817 = vadd.bf16 %v2377, %v2673
      %v2818 = vadd.bf16 %v2378, %v2674
      %v2819 = vadd.bf16 %v2379, %v2675
      %v2820 = vadd.bf16 %v2380, %v2676
      %v2821 = vadd.bf16 %v2381, %v2677
      %v2822 = vadd.bf16 %v2382, %v2678
      %v2823 = vadd.bf16 %v2383, %v2679
      %v2824 = vadd.bf16 %v2384, %v2680
      %v2825 = vadd.bf16 %v2385, %v2681
      %v2826 = vadd.bf16 %v2386, %v2682
      %v2827 = vadd.bf16 %v2387, %v2683
      %v2828 = vadd.bf16 %v2388, %v2684
      %v2829 = vadd.bf16 %v2389, %v2685
      %v2830 = vadd.bf16 %v2390, %v2686
      %v2831 = vadd.bf16 %v2391, %v2687
      %v2832 = vadd.bf16 %v2392, %v2688
      %v2833 = vadd.bf16 %v2393, %v2689
      %v2834 = vadd.bf16 %v2394, %v2690
      %v2835 = vadd.bf16 %v2395, %v2691
      %v2836 = vadd.bf16 %v2396, %v2692
      %v2837 = vadd.bf16 %v2397, %v2693
      %v2838 = vadd.bf16 %v2398, %v2694
      %v2839 = vadd.bf16 %v2399, %v2695
      %v2840 = vadd.bf16 %v2400, %v2696
      %v2841 = vadd.bf16 %v2401, %v2697
      %v2842 = vadd.bf16 %v2402, %v2698
      %v2843 = vadd.bf16 %v2403, %v2699
      %v2844 = vadd.bf16 %v2404, %v2700
      %v2845 = vadd.bf16 %v2405, %v2701
      %v2846 = vadd.bf16 %v2406, %v2702
      %v2847 = vadd.bf16 %v2407, %v2703
      %v2848 = vadd.bf16 %v2408, %v2704
      %v2849 = vadd.bf16 %v2409, %v2705
      %v2850 = vadd.bf16 %v2410, %v2706
      %v2851 = vadd.bf16 %v2411, %v2707
      %v2852 = vadd.bf16 %v2412, %v2708
      %v2853 = vadd.bf16 %v2413, %v2709
      %v2854 = vadd.bf16 %v2414, %v2710
      %v2855 = vadd.bf16 %v2415, %v2711
      %v2856 = vadd.bf16 %v2416, %v2712
      %v2857 = vadd.bf16 %v2417, %v2713
      %v2858 = vadd.bf16 %v2418, %v2714
      %v2859 = vadd.bf16 %v2419, %v2715
      %2860 = vst [vmem:[#allocation3] sm:$0xf] %v2716
      %2861 = vst [vmem:[#allocation3 + $0x4] sm:$0xf] %v2717
      %2862 = vst [vmem:[#allocation3 + $0x8] sm:$0xf] %v2718
      %2863 = vst [vmem:[#allocation3 + $0xc] sm:$0xf] %v2719
      %2864 = vst [vmem:[#allocation3 + $0x10] sm:$0xf] %v2720
      %2865 = vst [vmem:[#allocation3 + $0x14] sm:$0xf] %v2721
      %2866 = vst [vmem:[#allocation3 + $0x18] sm:$0xf] %v2722
      %2867 = vst [vmem:[#allocation3 + $0x1c] sm:$0xf] %v2723
      %2868 = vst [vmem:[#allocation3 + $0x20] sm:$0xf] %v2724
      %2869 = vst [vmem:[#allocation3 + $0x24] sm:$0xf] %v2725
      %2870 = vst [vmem:[#allocation3 + $0x28] sm:$0xf] %v2726
      %2871 = vst [vmem:[#allocation3 + $0x2c] sm:$0xf] %v2727
      %2872 = vst [vmem:[#allocation3 + $0x30] sm:$0xf] %v2728
      %2873 = vst [vmem:[#allocation3 + $0x34] sm:$0xf] %v2729
      %2874 = vst [vmem:[#allocation3 + $0x38] sm:$0xf] %v2730
      %2875 = vst [vmem:[#allocation3 + $0x3c] sm:$0xf] %v2731
      %2876 = vst [vmem:[#allocation3 + $0x40] sm:$0xf] %v2732
      %2877 = vst [vmem:[#allocation3 + $0x44] sm:$0xf] %v2733
      %2878 = vst [vmem:[#allocation3 + $0x48] sm:$0xf] %v2734
      %2879 = vst [vmem:[#allocation3 + $0x4c] sm:$0xf] %v2735
      %2880 = vst [vmem:[#allocation3 + $0x50] sm:$0xf] %v2736
      %2881 = vst [vmem:[#allocation3 + $0x54] sm:$0xf] %v2737
      %2882 = vst [vmem:[#allocation3 + $0x58] sm:$0xf] %v2738
      %2883 = vst [vmem:[#allocation3 + $0x5c] sm:$0xf] %v2739
      %2884 = vst [vmem:[#allocation3 + $0x60] sm:$0xf] %v2740
      %2885 = vst [vmem:[#allocation3 + $0x64] sm:$0xf] %v2741
      %2886 = vst [vmem:[#allocation3 + $0x68] sm:$0xf] %v2742
      %2887 = vst [vmem:[#allocation3 + $0x6c] sm:$0xf] %v2743
      %2888 = vst [vmem:[#allocation3 + $0x70] sm:$0xf] %v2744
      %2889 = vst [vmem:[#allocation3 + $0x74] sm:$0xf] %v2745
      %2890 = vst [vmem:[#allocation3 + $0x78] sm:$0xf] %v2746
      %2891 = vst [vmem:[#allocation3 + $0x7c] sm:$0xf] %v2747
      %2892 = vst [vmem:[#allocation3 + $0x80] sm:$0xf] %v2748
      %2893 = vst [vmem:[#allocation3 + $0x84] sm:$0xf] %v2749
      %2894 = vst [vmem:[#allocation3 + $0x88] sm:$0xf] %v2750
      %2895 = vst [vmem:[#allocation3 + $0x8c] sm:$0xf] %v2751
      %2896 = vst [vmem:[#allocation3 + $0x90] sm:$0xf] %v2752
      %2897 = vst [vmem:[#allocation3 + $0x94] sm:$0xf] %v2753
      %2898 = vst [vmem:[#allocation3 + $0x98] sm:$0xf] %v2754
      %2899 = vst [vmem:[#allocation3 + $0x9c] sm:$0xf] %v2755
      %2900 = vst [vmem:[#allocation3 + $0xa0] sm:$0xf] %v2756
      %2901 = vst [vmem:[#allocation3 + $0xa4] sm:$0xf] %v2757
      %2902 = vst [vmem:[#allocation3 + $0xa8] sm:$0xf] %v2758
      %2903 = vst [vmem:[#allocation3 + $0xac] sm:$0xf] %v2759
      %2904 = vst [vmem:[#allocation3 + $0xb0] sm:$0xf] %v2760
      %2905 = vst [vmem:[#allocation3 + $0xb4] sm:$0xf] %v2761
      %2906 = vst [vmem:[#allocation3 + $0xb8] sm:$0xf] %v2762
      %2907 = vst [vmem:[#allocation3 + $0xbc] sm:$0xf] %v2763
      %2908 = vst [vmem:[#allocation3 + $0xc0] sm:$0xf] %v2764
      %2909 = vst [vmem:[#allocation3 + $0xc4] sm:$0xf] %v2765
      %2910 = vst [vmem:[#allocation3 + $0xc8] sm:$0xf] %v2766
      %2911 = vst [vmem:[#allocation3 + $0xcc] sm:$0xf] %v2767
      %2912 = vst [vmem:[#allocation3 + $0xd0] sm:$0xf] %v2768
      %2913 = vst [vmem:[#allocation3 + $0xd4] sm:$0xf] %v2769
      %2914 = vst [vmem:[#allocation3 + $0xd8] sm:$0xf] %v2770
      %2915 = vst [vmem:[#allocation3 + $0xdc] sm:$0xf] %v2771
      %2916 = vst [vmem:[#allocation3 + $0xe0] sm:$0xf] %v2772
      %2917 = vst [vmem:[#allocation3 + $0xe4] sm:$0xf] %v2773
      %2918 = vst [vmem:[#allocation3 + $0xe8] sm:$0xf] %v2774
      %2919 = vst [vmem:[#allocation3 + $0xec] sm:$0xf] %v2775
      %2920 = vst [vmem:[#allocation3 + $0xf0] sm:$0xf] %v2776
      %2921 = vst [vmem:[#allocation3 + $0xf4] sm:$0xf] %v2777
      %2922 = vst [vmem:[#allocation3 + $0xf8] sm:$0xf] %v2778
      %2923 = vst [vmem:[#allocation3 + $0xfc] sm:$0xf] %v2779
      %2924 = vst [vmem:[#allocation3 + $0x100] sm:$0xf] %v2780
      %2925 = vst [vmem:[#allocation3 + $0x104] sm:$0xf] %v2781
      %2926 = vst [vmem:[#allocation3 + $0x108] sm:$0xf] %v2782
      %2927 = vst [vmem:[#allocation3 + $0x10c] sm:$0xf] %v2783
      %2928 = vst [vmem:[#allocation3 + $0x110] sm:$0xf] %v2784
      %2929 = vst [vmem:[#allocation3 + $0x114] sm:$0xf] %v2785
      %2930 = vst [vmem:[#allocation3 + $0x118] sm:$0xf] %v2786
      %2931 = vst [vmem:[#allocation3 + $0x11c] sm:$0xf] %v2787
      %2932 = vst [vmem:[#allocation3 + $0x120] sm:$0xf] %v2788
      %2933 = vst [vmem:[#allocation3 + $0x124] sm:$0xf] %v2789
      %2934 = vst [vmem:[#allocation3 + $0x128] sm:$0xf] %v2790
      %2935 = vst [vmem:[#allocation3 + $0x12c] sm:$0xf] %v2791
      %2936 = vst [vmem:[#allocation3 + $0x130] sm:$0xf] %v2792
      %2937 = vst [vmem:[#allocation3 + $0x134] sm:$0xf] %v2793
      %2938 = vst [vmem:[#allocation3 + $0x138] sm:$0xf] %v2794
      %2939 = vst [vmem:[#allocation3 + $0x13c] sm:$0xf] %v2795
      %2940 = vst [vmem:[#allocation3 + $0x140] sm:$0xf] %v2796
      %2941 = vst [vmem:[#allocation3 + $0x144] sm:$0xf] %v2797
      %2942 = vst [vmem:[#allocation3 + $0x148] sm:$0xf] %v2798
      %2943 = vst [vmem:[#allocation3 + $0x14c] sm:$0xf] %v2799
      %2944 = vst [vmem:[#allocation3 + $0x150] sm:$0xf] %v2800
      %2945 = vst [vmem:[#allocation3 + $0x154] sm:$0xf] %v2801
      %2946 = vst [vmem:[#allocation3 + $0x158] sm:$0xf] %v2802
      %2947 = vst [vmem:[#allocation3 + $0x15c] sm:$0xf] %v2803
      %2948 = vst [vmem:[#allocation3 + $0x160] sm:$0xf] %v2804
      %2949 = vst [vmem:[#allocation3 + $0x164] sm:$0xf] %v2805
      %2950 = vst [vmem:[#allocation3 + $0x168] sm:$0xf] %v2806
      %2951 = vst [vmem:[#allocation3 + $0x16c] sm:$0xf] %v2807
      %2952 = vst [vmem:[#allocation3 + $0x170] sm:$0xf] %v2808
      %2953 = vst [vmem:[#allocation3 + $0x174] sm:$0xf] %v2809
      %2954 = vst [vmem:[#allocation3 + $0x178] sm:$0xf] %v2810
      %2955 = vst [vmem:[#allocation3 + $0x17c] sm:$0xf] %v2811
      %2956 = vst [vmem:[#allocation3 + $0x180] sm:$0xf] %v2812
      %2957 = vst [vmem:[#allocation3 + $0x184] sm:$0xf] %v2813
      %2958 = vst [vmem:[#allocation3 + $0x188] sm:$0xf] %v2814
      %2959 = vst [vmem:[#allocation3 + $0x18c] sm:$0xf] %v2815
      %2960 = vst [vmem:[#allocation3 + $0x190] sm:$0xf] %v2816
      %2961 = vst [vmem:[#allocation3 + $0x194] sm:$0xf] %v2817
      %2962 = vst [vmem:[#allocation3 + $0x198] sm:$0xf] %v2818
      %2963 = vst [vmem:[#allocation3 + $0x19c] sm:$0xf] %v2819
      %2964 = vst [vmem:[#allocation3 + $0x1a0] sm:$0xf] %v2820
      %2965 = vst [vmem:[#allocation3 + $0x1a4] sm:$0xf] %v2821
      %2966 = vst [vmem:[#allocation3 + $0x1a8] sm:$0xf] %v2822
      %2967 = vst [vmem:[#allocation3 + $0x1ac] sm:$0xf] %v2823
      %2968 = vst [vmem:[#allocation3 + $0x1b0] sm:$0xf] %v2824
      %2969 = vst [vmem:[#allocation3 + $0x1b4] sm:$0xf] %v2825
      %2970 = vst [vmem:[#allocation3 + $0x1b8] sm:$0xf] %v2826
      %2971 = vst [vmem:[#allocation3 + $0x1bc] sm:$0xf] %v2827
      %2972 = vst [vmem:[#allocation3 + $0x1c0] sm:$0xf] %v2828
      %2973 = vst [vmem:[#allocation3 + $0x1c4] sm:$0xf] %v2829
      %2974 = vst [vmem:[#allocation3 + $0x1c8] sm:$0xf] %v2830
      %2975 = vst [vmem:[#allocation3 + $0x1cc] sm:$0xf] %v2831
      %2976 = vst [vmem:[#allocation3 + $0x1d0] sm:$0xf] %v2832
      %2977 = vst [vmem:[#allocation3 + $0x1d4] sm:$0xf] %v2833
      %2978 = vst [vmem:[#allocation3 + $0x1d8] sm:$0xf] %v2834
      %2979 = vst [vmem:[#allocation3 + $0x1dc] sm:$0xf] %v2835
      %2980 = vst [vmem:[#allocation3 + $0x1e0] sm:$0xf] %v2836
      %2981 = vst [vmem:[#allocation3 + $0x1e4] sm:$0xf] %v2837
      %2982 = vst [vmem:[#allocation3 + $0x1e8] sm:$0xf] %v2838
      %2983 = vst [vmem:[#allocation3 + $0x1ec] sm:$0xf] %v2839
      %2984 = vst [vmem:[#allocation3 + $0x1f0] sm:$0xf] %v2840
      %2985 = vst [vmem:[#allocation3 + $0x1f4] sm:$0xf] %v2841
      %2986 = vst [vmem:[#allocation3 + $0x1f8] sm:$0xf] %v2842
      %2987 = vst [vmem:[#allocation3 + $0x1fc] sm:$0xf] %v2843
      %2988 = vst [vmem:[#allocation3 + $0x200] sm:$0xf] %v2844
      %2989 = vst [vmem:[#allocation3 + $0x204] sm:$0xf] %v2845
      %2990 = vst [vmem:[#allocation3 + $0x208] sm:$0xf] %v2846
      %2991 = vst [vmem:[#allocation3 + $0x20c] sm:$0xf] %v2847
      %2992 = vst [vmem:[#allocation3 + $0x210] sm:$0xf] %v2848
      %2993 = vst [vmem:[#allocation3 + $0x214] sm:$0xf] %v2849
      %2994 = vst [vmem:[#allocation3 + $0x218] sm:$0xf] %v2850
      %2995 = vst [vmem:[#allocation3 + $0x21c] sm:$0xf] %v2851
      %2996 = vst [vmem:[#allocation3 + $0x220] sm:$0xf] %v2852
      %2997 = vst [vmem:[#allocation3 + $0x224] sm:$0xf] %v2853
      %2998 = vst [vmem:[#allocation3 + $0x228] sm:$0xf] %v2854
      %2999 = vst [vmem:[#allocation3 + $0x22c] sm:$0xf] %v2855
      %3000 = vst [vmem:[#allocation3 + $0x230] sm:$0xf] %v2856
      %3001 = vst [vmem:[#allocation3 + $0x234] sm:$0xf] %v2857
      %3002 = vst [vmem:[#allocation3 + $0x238] sm:$0xf] %v2858
      %3003 = vst [vmem:[#allocation3 + $0x23c] sm:$0xf] %v2859
      %v3004 = vld [vmem:[#allocation2] ss:$2 sm:$0xff]
      %s3005 = scalar_lea.vmem [#allocation2], 48
      %v3006 = vld [vmem:[%s3005] ss:$2 sm:$0xff]
      %s3007 = scalar_lea.vmem [#allocation2], 96
      %v3008 = vld [vmem:[%s3007] ss:$2 sm:$0xff]
      %s3009 = scalar_lea.vmem [#allocation2], 144
      %v3010 = vld [vmem:[%s3009] ss:$2 sm:$0xff]
      %s3011 = scalar_lea.vmem [#allocation2], 192
      %v3012 = vld [vmem:[%s3011] ss:$2 sm:$0xff]
      %s3013 = scalar_lea.vmem [#allocation2], 240
      %v3014 = vld [vmem:[%s3013] ss:$2 sm:$0xff]
      %s3015 = scalar_lea.vmem [#allocation2], 288
      %v3016 = vld [vmem:[%s3015] ss:$2 sm:$0xff]
      %s3017 = scalar_lea.vmem [#allocation2], 336
      %v3018 = vld [vmem:[%s3017] ss:$2 sm:$0xff]
      %v3019 = vpack.c.bf16 %v3006, %v3004
      %v3020 = vpack.c.bf16 %v3010, %v3008
      %v3021 = vpack.c.bf16 %v3014, %v3012
      %v3022 = vpack.c.bf16 %v3018, %v3016
      %v3023 = vld [vmem:[#allocation3] sm:$0xf]
      %v3024 = vld [vmem:[#allocation3 + $0x4] sm:$0xf]
      %v3025 = vld [vmem:[#allocation3 + $0x8] sm:$0xf]
      %v3026 = vld [vmem:[#allocation3 + $0xc] sm:$0xf]
      %v3027 = vld [vmem:[#allocation3 + $0x10] sm:$0xf]
      %v3028 = vld [vmem:[#allocation3 + $0x14] sm:$0xf]
      %v3029 = vld [vmem:[#allocation3 + $0x18] sm:$0xf]
      %v3030 = vld [vmem:[#allocation3 + $0x1c] sm:$0xf]
      %v3031 = vld [vmem:[#allocation3 + $0x20] sm:$0xf]
      %v3032 = vld [vmem:[#allocation3 + $0x24] sm:$0xf]
      %v3033 = vld [vmem:[#allocation3 + $0x28] sm:$0xf]
      %v3034 = vld [vmem:[#allocation3 + $0x2c] sm:$0xf]
      %v3035 = vld [vmem:[#allocation3 + $0x30] sm:$0xf]
      %v3036 = vld [vmem:[#allocation3 + $0x34] sm:$0xf]
      %v3037 = vld [vmem:[#allocation3 + $0x38] sm:$0xf]
      %v3038 = vld [vmem:[#allocation3 + $0x3c] sm:$0xf]
      %s3039 = scalar_lea.vmem [#allocation2], 1
      %v3040 = vld [vmem:[%s3039] ss:$2 sm:$0xff]
      %s3041 = scalar_lea.vmem [#allocation2], 49
      %v3042 = vld [vmem:[%s3041] ss:$2 sm:$0xff]
      %s3043 = scalar_lea.vmem [#allocation2], 97
      %v3044 = vld [vmem:[%s3043] ss:$2 sm:$0xff]
      %s3045 = scalar_lea.vmem [#allocation2], 145
      %v3046 = vld [vmem:[%s3045] ss:$2 sm:$0xff]
      %s3047 = scalar_lea.vmem [#allocation2], 193
      %v3048 = vld [vmem:[%s3047] ss:$2 sm:$0xff]
      %s3049 = scalar_lea.vmem [#allocation2], 241
      %v3050 = vld [vmem:[%s3049] ss:$2 sm:$0xff]
      %s3051 = scalar_lea.vmem [#allocation2], 289
      %v3052 = vld [vmem:[%s3051] ss:$2 sm:$0xff]
      %s3053 = scalar_lea.vmem [#allocation2], 337
      %v3054 = vld [vmem:[%s3053] ss:$2 sm:$0xff]
      %v3055 = vpack.c.bf16 %v3042, %v3040
      %v3056 = vpack.c.bf16 %v3046, %v3044
      %v3057 = vpack.c.bf16 %v3050, %v3048
      %v3058 = vpack.c.bf16 %v3054, %v3052
      %s3059 = scalar_lea.vmem [#allocation3], 64
      %v3060 = vld [vmem:[%s3059] sm:$0xf]
      %v3061 = vld [vmem:[%s3059 + $0x4] sm:$0xf]
      %v3062 = vld [vmem:[%s3059 + $0x8] sm:$0xf]
      %v3063 = vld [vmem:[%s3059 + $0xc] sm:$0xf]
      %v3064 = vld [vmem:[%s3059 + $0x10] sm:$0xf]
      %v3065 = vld [vmem:[%s3059 + $0x14] sm:$0xf]
      %v3066 = vld [vmem:[%s3059 + $0x18] sm:$0xf]
      %v3067 = vld [vmem:[%s3059 + $0x1c] sm:$0xf]
      %v3068 = vld [vmem:[%s3059 + $0x20] sm:$0xf]
      %v3069 = vld [vmem:[%s3059 + $0x24] sm:$0xf]
      %v3070 = vld [vmem:[%s3059 + $0x28] sm:$0xf]
      %v3071 = vld [vmem:[%s3059 + $0x2c] sm:$0xf]
      %v3072 = vld [vmem:[%s3059 + $0x30] sm:$0xf]
      %v3073 = vld [vmem:[%s3059 + $0x34] sm:$0xf]
      %v3074 = vld [vmem:[%s3059 + $0x38] sm:$0xf]
      %v3075 = vld [vmem:[%s3059 + $0x3c] sm:$0xf]
      %v3092 = vunpack.c.l.b16 %v3060
      %v3093 = vunpack.c.l.b16 %v3061
      %v3094 = vunpack.c.l.b16 %v3062
      %v3095 = vunpack.c.l.b16 %v3063
      %v3096 = vunpack.c.l.b16 %v3064
      %v3097 = vunpack.c.l.b16 %v3065
      %v3098 = vunpack.c.l.b16 %v3066
      %v3099 = vunpack.c.l.b16 %v3067
      %v3100 = vunpack.c.l.b16 %v3068
      %v3101 = vunpack.c.l.b16 %v3069
      %v3102 = vunpack.c.l.b16 %v3070
      %v3103 = vunpack.c.l.b16 %v3071
      %v3104 = vunpack.c.l.b16 %v3072
      %v3105 = vunpack.c.l.b16 %v3073
      %v3106 = vunpack.c.l.b16 %v3074
      %v3107 = vunpack.c.l.b16 %v3075
      %v3108 = vpack.c.b16 %v3093, %v3092
      %v3109 = vpack.c.b16 %v3095, %v3094
      %v3110 = vpack.c.b16 %v3097, %v3096
      %v3111 = vpack.c.b16 %v3099, %v3098
      %v3112 = vpack.c.b16 %v3101, %v3100
      %v3113 = vpack.c.b16 %v3103, %v3102
      %v3114 = vpack.c.b16 %v3105, %v3104
      %v3115 = vpack.c.b16 %v3107, %v3106
      %3124 = vmatprep.subr.bf16.mxu0 0
      %3125 = vmatpush1.bf16.msra.mxu0 %v3115
      %3126 = vmatprep.subr.bf16.mxu0 0
      %3127 = vmatpush1.bf16.msra.mxu0 %v3114
      %3128 = vmatprep.subr.bf16.mxu0 0
      %3129 = vmatpush1.bf16.msra.mxu0 %v3113
      %3130 = vmatprep.subr.bf16.mxu0 0
      %3131 = vmatpush1.bf16.msra.mxu0 %v3112
      %3132 = vmatprep.subr.bf16.mxu0 0
      %3133 = vmatpush1.bf16.msra.mxu0 %v3111
      %3134 = vmatprep.subr.bf16.mxu0 0
      %3135 = vmatpush1.bf16.msra.mxu0 %v3110
      %3136 = vmatprep.subr.bf16.mxu0 0
      %3137 = vmatpush1.bf16.msra.mxu0 %v3109
      %3138 = vmatprep.subr.bf16.mxu0 0
      %3139 = vmatpush1.bf16.msra.mxu0 %v3108
      %3140 = vmatprep.subr.bf16.mxu0 0
      %3141 = vmatpush2.bf16.msra.mxu0 0
      %3142 = vmatprep.subr.bf16.mxu0 0
      %3143 = vmatpush2.bf16.msra.mxu0 0
      %3144 = vmatprep.subr.bf16.mxu0 0
      %3145 = vmatpush2.bf16.msra.mxu0 0
      %3146 = vmatprep.subr.bf16.mxu0 0
      %3147 = vmatpush2.bf16.msra.mxu0 0
      %3148 = vmatprep.subr.bf16.mxu0 0
      %3149 = vmatpush2.bf16.msra.mxu0 0
      %3150 = vmatprep.subr.bf16.mxu0 0
      %3151 = vmatpush2.bf16.msra.mxu0 0
      %3152 = vmatprep.subr.bf16.mxu0 0
      %3153 = vmatpush2.bf16.msra.mxu0 0
      %3154 = vmatprep.subr.bf16.mxu0 0
      %3155 = vmatpush2.bf16.msra.mxu0 0
      %3156 = vmatprep.mubr.bf16.mxu0 0
      %3157 = vmatmul.mubr.bf16.gmra.mxu0 %v3055
      %v3158 = vpop.f32.mrf.mxu0
      %v3159 = vadd.f32 0.0, %v3158
      %v3160 = vpop.f32.mrf.mxu0
      %v3161 = vpop.f32.mrf.mxu0
      %v3162 = vadd.f32 0.0, %v3161
      %v3163 = vpop.f32.mrf.mxu0
      %3164 = vmatprep.mubr.bf16.mxu0 0
      %3165 = vmatmul.mubr.bf16.gmra.mxu0 %v3056
      %v3166 = vpop.f32.mrf.mxu0
      %v3167 = vadd.f32 0.0, %v3166
      %v3168 = vpop.f32.mrf.mxu0
      %v3169 = vpop.f32.mrf.mxu0
      %v3170 = vadd.f32 0.0, %v3169
      %v3171 = vpop.f32.mrf.mxu0
      %3172 = vmatprep.mubr.bf16.mxu0 0
      %3173 = vmatmul.mubr.bf16.gmra.mxu0 %v3057
      %v3174 = vpop.f32.mrf.mxu0
      %v3175 = vadd.f32 0.0, %v3174
      %v3176 = vpop.f32.mrf.mxu0
      %v3177 = vpop.f32.mrf.mxu0
      %v3178 = vadd.f32 0.0, %v3177
      %v3179 = vpop.f32.mrf.mxu0
      %3180 = vmatprep.mubr.bf16.mxu0 0
      %3181 = vmatmul.mubr.bf16.gmra.mxu0 %v3058
      %v3182 = vpop.f32.mrf.mxu0
      %v3183 = vadd.f32 0.0, %v3182
      %v3184 = vpop.f32.mrf.mxu0
      %v3185 = vpop.f32.mrf.mxu0
      %v3186 = vadd.f32 0.0, %v3185
      %v3187 = vpop.f32.mrf.mxu0
      %3188 = vdwg.mxu0
      %v3205 = vunpack.c.l.b16 %v3023
      %v3206 = vunpack.c.l.b16 %v3024
      %v3207 = vunpack.c.l.b16 %v3025
      %v3208 = vunpack.c.l.b16 %v3026
      %v3209 = vunpack.c.l.b16 %v3027
      %v3210 = vunpack.c.l.b16 %v3028
      %v3211 = vunpack.c.l.b16 %v3029
      %v3212 = vunpack.c.l.b16 %v3030
      %v3213 = vunpack.c.l.b16 %v3031
      %v3214 = vunpack.c.l.b16 %v3032
      %v3215 = vunpack.c.l.b16 %v3033
      %v3216 = vunpack.c.l.b16 %v3034
      %v3217 = vunpack.c.l.b16 %v3035
      %v3218 = vunpack.c.l.b16 %v3036
      %v3219 = vunpack.c.l.b16 %v3037
      %v3220 = vunpack.c.l.b16 %v3038
      %v3221 = vpack.c.b16 %v3206, %v3205
      %v3222 = vpack.c.b16 %v3208, %v3207
      %v3223 = vpack.c.b16 %v3210, %v3209
      %v3224 = vpack.c.b16 %v3212, %v3211
      %v3225 = vpack.c.b16 %v3214, %v3213
      %v3226 = vpack.c.b16 %v3216, %v3215
      %v3227 = vpack.c.b16 %v3218, %v3217
      %v3228 = vpack.c.b16 %v3220, %v3219
      %3237 = vmatprep.subr.bf16.mxu0 0
      %3238 = vmatpush1.bf16.msra.mxu0 %v3228
      %3239 = vmatprep.subr.bf16.mxu0 0
      %3240 = vmatpush1.bf16.msra.mxu0 %v3227
      %3241 = vmatprep.subr.bf16.mxu0 0
      %3242 = vmatpush1.bf16.msra.mxu0 %v3226
      %3243 = vmatprep.subr.bf16.mxu0 0
      %3244 = vmatpush1.bf16.msra.mxu0 %v3225
      %3245 = vmatprep.subr.bf16.mxu0 0
      %3246 = vmatpush1.bf16.msra.mxu0 %v3224
      %3247 = vmatprep.subr.bf16.mxu0 0
      %3248 = vmatpush1.bf16.msra.mxu0 %v3223
      %3249 = vmatprep.subr.bf16.mxu0 0
      %3250 = vmatpush1.bf16.msra.mxu0 %v3222
      %3251 = vmatprep.subr.bf16.mxu0 0
      %3252 = vmatpush1.bf16.msra.mxu0 %v3221
      %3253 = vmatprep.subr.bf16.mxu0 0
      %3254 = vmatpush2.bf16.msra.mxu0 0
      %3255 = vmatprep.subr.bf16.mxu0 0
      %3256 = vmatpush2.bf16.msra.mxu0 0
      %3257 = vmatprep.subr.bf16.mxu0 0
      %3258 = vmatpush2.bf16.msra.mxu0 0
      %3259 = vmatprep.subr.bf16.mxu0 0
      %3260 = vmatpush2.bf16.msra.mxu0 0
      %3261 = vmatprep.subr.bf16.mxu0 0
      %3262 = vmatpush2.bf16.msra.mxu0 0
      %3263 = vmatprep.subr.bf16.mxu0 0
      %3264 = vmatpush2.bf16.msra.mxu0 0
      %3265 = vmatprep.subr.bf16.mxu0 0
      %3266 = vmatpush2.bf16.msra.mxu0 0
      %3267 = vmatprep.subr.bf16.mxu0 0
      %3268 = vmatpush2.bf16.msra.mxu0 0
      %3269 = vmatprep.mubr.bf16.mxu0 0
      %3270 = vmatmul.mubr.bf16.gmra.mxu0 %v3019
      %v3271 = vpop.f32.mrf.mxu0
      %v3272 = vadd.f32 %v3159, %v3271
      %v3273 = vpop.f32.mrf.mxu0
      %v3274 = vpop.f32.mrf.mxu0
      %v3275 = vadd.f32 %v3162, %v3274
      %v3276 = vpop.f32.mrf.mxu0
      %3277 = vmatprep.mubr.bf16.mxu0 0
      %3278 = vmatmul.mubr.bf16.gmra.mxu0 %v3020
      %v3279 = vpop.f32.mrf.mxu0
      %v3280 = vadd.f32 %v3167, %v3279
      %v3281 = vpop.f32.mrf.mxu0
      %v3282 = vpop.f32.mrf.mxu0
      %v3283 = vadd.f32 %v3170, %v3282
      %v3284 = vpop.f32.mrf.mxu0
      %3285 = vmatprep.mubr.bf16.mxu0 0
      %3286 = vmatmul.mubr.bf16.gmra.mxu0 %v3021
      %v3287 = vpop.f32.mrf.mxu0
      %v3288 = vadd.f32 %v3175, %v3287
      %v3289 = vpop.f32.mrf.mxu0
      %v3290 = vpop.f32.mrf.mxu0
      %v3291 = vadd.f32 %v3178, %v3290
      %v3292 = vpop.f32.mrf.mxu0
      %3293 = vmatprep.mubr.bf16.mxu0 0
      %3294 = vmatmul.mubr.bf16.gmra.mxu0 %v3022
      %v3295 = vpop.f32.mrf.mxu0
      %v3296 = vadd.f32 %v3183, %v3295
      %v3297 = vpop.f32.mrf.mxu0
      %v3298 = vpop.f32.mrf.mxu0
      %v3299 = vadd.f32 %v3186, %v3298
      %v3300 = vpop.f32.mrf.mxu0
      %3301 = vdwg.mxu0
      %s3302 = scalar_lea.vmem [#allocation2], 2
      %v3303 = vld [vmem:[%s3302] ss:$2 sm:$0xff]
      %s3304 = scalar_lea.vmem [#allocation2], 50
      %v3305 = vld [vmem:[%s3304] ss:$2 sm:$0xff]
      %s3306 = scalar_lea.vmem [#allocation2], 98
      %v3307 = vld [vmem:[%s3306] ss:$2 sm:$0xff]
      %s3308 = scalar_lea.vmem [#allocation2], 146
      %v3309 = vld [vmem:[%s3308] ss:$2 sm:$0xff]
      %s3310 = scalar_lea.vmem [#allocation2], 194
      %v3311 = vld [vmem:[%s3310] ss:$2 sm:$0xff]
      %s3312 = scalar_lea.vmem [#allocation2], 242
      %v3313 = vld [vmem:[%s3312] ss:$2 sm:$0xff]
      %s3314 = scalar_lea.vmem [#allocation2], 290
      %v3315 = vld [vmem:[%s3314] ss:$2 sm:$0xff]
      %s3316 = scalar_lea.vmem [#allocation2], 338
      %v3317 = vld [vmem:[%s3316] ss:$2 sm:$0xff]
      %v3318 = vpack.c.bf16 %v3305, %v3303
      %v3319 = vpack.c.bf16 %v3309, %v3307
      %v3320 = vpack.c.bf16 %v3313, %v3311
      %v3321 = vpack.c.bf16 %v3317, %v3315
      %s3322 = scalar_lea.vmem [#allocation3], 128
      %v3323 = vld [vmem:[%s3322] sm:$0xf]
      %v3324 = vld [vmem:[%s3322 + $0x4] sm:$0xf]
      %v3325 = vld [vmem:[%s3322 + $0x8] sm:$0xf]
      %v3326 = vld [vmem:[%s3322 + $0xc] sm:$0xf]
      %v3327 = vld [vmem:[%s3322 + $0x10] sm:$0xf]
      %v3328 = vld [vmem:[%s3322 + $0x14] sm:$0xf]
      %v3329 = vld [vmem:[%s3322 + $0x18] sm:$0xf]
      %v3330 = vld [vmem:[%s3322 + $0x1c] sm:$0xf]
      %v3331 = vld [vmem:[%s3322 + $0x20] sm:$0xf]
      %v3332 = vld [vmem:[%s3322 + $0x24] sm:$0xf]
      %v3333 = vld [vmem:[%s3322 + $0x28] sm:$0xf]
      %v3334 = vld [vmem:[%s3322 + $0x2c] sm:$0xf]
      %v3335 = vld [vmem:[%s3322 + $0x30] sm:$0xf]
      %v3336 = vld [vmem:[%s3322 + $0x34] sm:$0xf]
      %v3337 = vld [vmem:[%s3322 + $0x38] sm:$0xf]
      %v3338 = vld [vmem:[%s3322 + $0x3c] sm:$0xf]
      %v3355 = vunpack.c.l.b16 %v3323
      %v3356 = vunpack.c.l.b16 %v3324
      %v3357 = vunpack.c.l.b16 %v3325
      %v3358 = vunpack.c.l.b16 %v3326
      %v3359 = vunpack.c.l.b16 %v3327
      %v3360 = vunpack.c.l.b16 %v3328
      %v3361 = vunpack.c.l.b16 %v3329
      %v3362 = vunpack.c.l.b16 %v3330
      %v3363 = vunpack.c.l.b16 %v3331
      %v3364 = vunpack.c.l.b16 %v3332
      %v3365 = vunpack.c.l.b16 %v3333
      %v3366 = vunpack.c.l.b16 %v3334
      %v3367 = vunpack.c.l.b16 %v3335
      %v3368 = vunpack.c.l.b16 %v3336
      %v3369 = vunpack.c.l.b16 %v3337
      %v3370 = vunpack.c.l.b16 %v3338
      %v3371 = vpack.c.b16 %v3356, %v3355
      %v3372 = vpack.c.b16 %v3358, %v3357
      %v3373 = vpack.c.b16 %v3360, %v3359
      %v3374 = vpack.c.b16 %v3362, %v3361
      %v3375 = vpack.c.b16 %v3364, %v3363
      %v3376 = vpack.c.b16 %v3366, %v3365
      %v3377 = vpack.c.b16 %v3368, %v3367
      %v3378 = vpack.c.b16 %v3370, %v3369
      %3387 = vmatprep.subr.bf16.mxu0 0
      %3388 = vmatpush1.bf16.msra.mxu0 %v3378
      %3389 = vmatprep.subr.bf16.mxu0 0
      %3390 = vmatpush1.bf16.msra.mxu0 %v3377
      %3391 = vmatprep.subr.bf16.mxu0 0
      %3392 = vmatpush1.bf16.msra.mxu0 %v3376
      %3393 = vmatprep.subr.bf16.mxu0 0
      %3394 = vmatpush1.bf16.msra.mxu0 %v3375
      %3395 = vmatprep.subr.bf16.mxu0 0
      %3396 = vmatpush1.bf16.msra.mxu0 %v3374
      %3397 = vmatprep.subr.bf16.mxu0 0
      %3398 = vmatpush1.bf16.msra.mxu0 %v3373
      %3399 = vmatprep.subr.bf16.mxu0 0
      %3400 = vmatpush1.bf16.msra.mxu0 %v3372
      %3401 = vmatprep.subr.bf16.mxu0 0
      %3402 = vmatpush1.bf16.msra.mxu0 %v3371
      %3403 = vmatprep.subr.bf16.mxu0 0
      %3404 = vmatpush2.bf16.msra.mxu0 0
      %3405 = vmatprep.subr.bf16.mxu0 0
      %3406 = vmatpush2.bf16.msra.mxu0 0
      %3407 = vmatprep.subr.bf16.mxu0 0
      %3408 = vmatpush2.bf16.msra.mxu0 0
      %3409 = vmatprep.subr.bf16.mxu0 0
      %3410 = vmatpush2.bf16.msra.mxu0 0
      %3411 = vmatprep.subr.bf16.mxu0 0
      %3412 = vmatpush2.bf16.msra.mxu0 0
      %3413 = vmatprep.subr.bf16.mxu0 0
      %3414 = vmatpush2.bf16.msra.mxu0 0
      %3415 = vmatprep.subr.bf16.mxu0 0
      %3416 = vmatpush2.bf16.msra.mxu0 0
      %3417 = vmatprep.subr.bf16.mxu0 0
      %3418 = vmatpush2.bf16.msra.mxu0 0
      %3419 = vmatprep.mubr.bf16.mxu0 0
      %3420 = vmatmul.mubr.bf16.gmra.mxu0 %v3318
      %v3421 = vpop.f32.mrf.mxu0
      %v3422 = vadd.f32 0.0, %v3421
      %v3423 = vpop.f32.mrf.mxu0
      %v3424 = vpop.f32.mrf.mxu0
      %v3425 = vadd.f32 0.0, %v3424
      %v3426 = vpop.f32.mrf.mxu0
      %3427 = vmatprep.mubr.bf16.mxu0 0
      %3428 = vmatmul.mubr.bf16.gmra.mxu0 %v3319
      %v3429 = vpop.f32.mrf.mxu0
      %v3430 = vadd.f32 0.0, %v3429
      %v3431 = vpop.f32.mrf.mxu0
      %v3432 = vpop.f32.mrf.mxu0
      %v3433 = vadd.f32 0.0, %v3432
      %v3434 = vpop.f32.mrf.mxu0
      %3435 = vmatprep.mubr.bf16.mxu0 0
      %3436 = vmatmul.mubr.bf16.gmra.mxu0 %v3320
      %v3437 = vpop.f32.mrf.mxu0
      %v3438 = vadd.f32 0.0, %v3437
      %v3439 = vpop.f32.mrf.mxu0
      %v3440 = vpop.f32.mrf.mxu0
      %v3441 = vadd.f32 0.0, %v3440
      %v3442 = vpop.f32.mrf.mxu0
      %3443 = vmatprep.mubr.bf16.mxu0 0
      %3444 = vmatmul.mubr.bf16.gmra.mxu0 %v3321
      %v3445 = vpop.f32.mrf.mxu0
      %v3446 = vadd.f32 0.0, %v3445
      %v3447 = vpop.f32.mrf.mxu0
      %v3448 = vpop.f32.mrf.mxu0
      %v3449 = vadd.f32 0.0, %v3448
      %v3450 = vpop.f32.mrf.mxu0
      %3451 = vdwg.mxu0
      %v3452 = vadd.f32 %v3272, %v3422
      %v3453 = vadd.f32 %v3275, %v3425
      %v3454 = vadd.f32 %v3280, %v3430
      %v3455 = vadd.f32 %v3283, %v3433
      %v3456 = vadd.f32 %v3288, %v3438
      %v3457 = vadd.f32 %v3291, %v3441
      %v3458 = vadd.f32 %v3296, %v3446
      %v3459 = vadd.f32 %v3299, %v3449
      %s3460 = scalar_lea.vmem [#allocation2], 24
      %v3461 = vld [vmem:[%s3460] ss:$2 sm:$0xff]
      %s3462 = scalar_lea.vmem %s3460, 48 [#allocation2]
      %v3463 = vld [vmem:[%s3462] ss:$2 sm:$0xff]
      %s3464 = scalar_lea.vmem %s3460, 96 [#allocation2]
      %v3465 = vld [vmem:[%s3464] ss:$2 sm:$0xff]
      %s3466 = scalar_lea.vmem %s3460, 144 [#allocation2]
      %v3467 = vld [vmem:[%s3466] ss:$2 sm:$0xff]
      %s3468 = scalar_lea.vmem %s3460, 192 [#allocation2]
      %v3469 = vld [vmem:[%s3468] ss:$2 sm:$0xff]
      %s3470 = scalar_lea.vmem %s3460, 240 [#allocation2]
      %v3471 = vld [vmem:[%s3470] ss:$2 sm:$0xff]
      %s3472 = scalar_lea.vmem %s3460, 288 [#allocation2]
      %v3473 = vld [vmem:[%s3472] ss:$2 sm:$0xff]
      %s3474 = scalar_lea.vmem %s3460, 336 [#allocation2]
      %v3475 = vld [vmem:[%s3474] ss:$2 sm:$0xff]
      %v3476 = vpack.c.bf16 %v3463, %v3461
      %v3477 = vpack.c.bf16 %v3467, %v3465
      %v3478 = vpack.c.bf16 %v3471, %v3469
      %v3479 = vpack.c.bf16 %v3475, %v3473
      %s3480 = scalar_lea.vmem [#allocation3], 192
      %v3481 = vld [vmem:[%s3480] sm:$0xf]
      %v3482 = vld [vmem:[%s3480 + $0x4] sm:$0xf]
      %v3483 = vld [vmem:[%s3480 + $0x8] sm:$0xf]
      %v3484 = vld [vmem:[%s3480 + $0xc] sm:$0xf]
      %v3485 = vld [vmem:[%s3480 + $0x10] sm:$0xf]
      %v3486 = vld [vmem:[%s3480 + $0x14] sm:$0xf]
      %v3487 = vld [vmem:[%s3480 + $0x18] sm:$0xf]
      %v3488 = vld [vmem:[%s3480 + $0x1c] sm:$0xf]
      %v3489 = vld [vmem:[%s3480 + $0x20] sm:$0xf]
      %v3490 = vld [vmem:[%s3480 + $0x24] sm:$0xf]
      %v3491 = vld [vmem:[%s3480 + $0x28] sm:$0xf]
      %v3492 = vld [vmem:[%s3480 + $0x2c] sm:$0xf]
      %v3493 = vld [vmem:[%s3480 + $0x30] sm:$0xf]
      %v3494 = vld [vmem:[%s3480 + $0x34] sm:$0xf]
      %v3495 = vld [vmem:[%s3480 + $0x38] sm:$0xf]
      %v3496 = vld [vmem:[%s3480 + $0x3c] sm:$0xf]
      %v3513 = vunpack.c.l.b16 %v3481
      %v3514 = vunpack.c.l.b16 %v3482
      %v3515 = vunpack.c.l.b16 %v3483
      %v3516 = vunpack.c.l.b16 %v3484
      %v3517 = vunpack.c.l.b16 %v3485
      %v3518 = vunpack.c.l.b16 %v3486
      %v3519 = vunpack.c.l.b16 %v3487
      %v3520 = vunpack.c.l.b16 %v3488
      %v3521 = vunpack.c.l.b16 %v3489
      %v3522 = vunpack.c.l.b16 %v3490
      %v3523 = vunpack.c.l.b16 %v3491
      %v3524 = vunpack.c.l.b16 %v3492
      %v3525 = vunpack.c.l.b16 %v3493
      %v3526 = vunpack.c.l.b16 %v3494
      %v3527 = vunpack.c.l.b16 %v3495
      %v3528 = vunpack.c.l.b16 %v3496
      %v3529 = vpack.c.b16 %v3514, %v3513
      %v3530 = vpack.c.b16 %v3516, %v3515
      %v3531 = vpack.c.b16 %v3518, %v3517
      %v3532 = vpack.c.b16 %v3520, %v3519
      %v3533 = vpack.c.b16 %v3522, %v3521
      %v3534 = vpack.c.b16 %v3524, %v3523
      %v3535 = vpack.c.b16 %v3526, %v3525
      %v3536 = vpack.c.b16 %v3528, %v3527
      %3545 = vmatprep.subr.bf16.mxu0 0
      %3546 = vmatpush1.bf16.msra.mxu0 %v3536
      %3547 = vmatprep.subr.bf16.mxu0 0
      %3548 = vmatpush1.bf16.msra.mxu0 %v3535
      %3549 = vmatprep.subr.bf16.mxu0 0
      %3550 = vmatpush1.bf16.msra.mxu0 %v3534
      %3551 = vmatprep.subr.bf16.mxu0 0
      %3552 = vmatpush1.bf16.msra.mxu0 %v3533
      %3553 = vmatprep.subr.bf16.mxu0 0
      %3554 = vmatpush1.bf16.msra.mxu0 %v3532
      %3555 = vmatprep.subr.bf16.mxu0 0
      %3556 = vmatpush1.bf16.msra.mxu0 %v3531
      %3557 = vmatprep.subr.bf16.mxu0 0
      %3558 = vmatpush1.bf16.msra.mxu0 %v3530
      %3559 = vmatprep.subr.bf16.mxu0 0
      %3560 = vmatpush1.bf16.msra.mxu0 %v3529
      %3561 = vmatprep.subr.bf16.mxu0 0
      %3562 = vmatpush2.bf16.msra.mxu0 0
      %3563 = vmatprep.subr.bf16.mxu0 0
      %3564 = vmatpush2.bf16.msra.mxu0 0
      %3565 = vmatprep.subr.bf16.mxu0 0
      %3566 = vmatpush2.bf16.msra.mxu0 0
      %3567 = vmatprep.subr.bf16.mxu0 0
      %3568 = vmatpush2.bf16.msra.mxu0 0
      %3569 = vmatprep.subr.bf16.mxu0 0
      %3570 = vmatpush2.bf16.msra.mxu0 0
      %3571 = vmatprep.subr.bf16.mxu0 0
      %3572 = vmatpush2.bf16.msra.mxu0 0
      %3573 = vmatprep.subr.bf16.mxu0 0
      %3574 = vmatpush2.bf16.msra.mxu0 0
      %3575 = vmatprep.subr.bf16.mxu0 0
      %3576 = vmatpush2.bf16.msra.mxu0 0
      %3577 = vmatprep.mubr.bf16.mxu0 0
      %3578 = vmatmul.mubr.bf16.gmra.mxu0 %v3476
      %v3579 = vpop.f32.mrf.mxu0
      %v3580 = vadd.f32 0.0, %v3579
      %v3581 = vpop.f32.mrf.mxu0
      %v3582 = vpop.f32.mrf.mxu0
      %v3583 = vadd.f32 0.0, %v3582
      %v3584 = vpop.f32.mrf.mxu0
      %3585 = vmatprep.mubr.bf16.mxu0 0
      %3586 = vmatmul.mubr.bf16.gmra.mxu0 %v3477
      %v3587 = vpop.f32.mrf.mxu0
      %v3588 = vadd.f32 0.0, %v3587
      %v3589 = vpop.f32.mrf.mxu0
      %v3590 = vpop.f32.mrf.mxu0
      %v3591 = vadd.f32 0.0, %v3590
      %v3592 = vpop.f32.mrf.mxu0
      %3593 = vmatprep.mubr.bf16.mxu0 0
      %3594 = vmatmul.mubr.bf16.gmra.mxu0 %v3478
      %v3595 = vpop.f32.mrf.mxu0
      %v3596 = vadd.f32 0.0, %v3595
      %v3597 = vpop.f32.mrf.mxu0
      %v3598 = vpop.f32.mrf.mxu0
      %v3599 = vadd.f32 0.0, %v3598
      %v3600 = vpop.f32.mrf.mxu0
      %3601 = vmatprep.mubr.bf16.mxu0 0
      %3602 = vmatmul.mubr.bf16.gmra.mxu0 %v3479
      %v3603 = vpop.f32.mrf.mxu0
      %v3604 = vadd.f32 0.0, %v3603
      %v3605 = vpop.f32.mrf.mxu0
      %v3606 = vpop.f32.mrf.mxu0
      %v3607 = vadd.f32 0.0, %v3606
      %v3608 = vpop.f32.mrf.mxu0
      %3609 = vdwg.mxu0
      %v3610 = vadd.f32 %v3452, %v3580
      %v3611 = vadd.f32 %v3453, %v3583
      %v3612 = vadd.f32 %v3454, %v3588
      %v3613 = vadd.f32 %v3455, %v3591
      %v3614 = vadd.f32 %v3456, %v3596
      %v3615 = vadd.f32 %v3457, %v3599
      %v3616 = vadd.f32 %v3458, %v3604
      %v3617 = vadd.f32 %v3459, %v3607
      %s3618 = scalar_lea.vmem %s3460, 1 [#allocation2]
      %v3619 = vld [vmem:[%s3618] ss:$2 sm:$0xff]
      %s3620 = scalar_lea.vmem %s3460, 49 [#allocation2]
      %v3621 = vld [vmem:[%s3620] ss:$2 sm:$0xff]
      %s3622 = scalar_lea.vmem %s3460, 97 [#allocation2]
      %v3623 = vld [vmem:[%s3622] ss:$2 sm:$0xff]
      %s3624 = scalar_lea.vmem %s3460, 145 [#allocation2]
      %v3625 = vld [vmem:[%s3624] ss:$2 sm:$0xff]
      %s3626 = scalar_lea.vmem %s3460, 193 [#allocation2]
      %v3627 = vld [vmem:[%s3626] ss:$2 sm:$0xff]
      %s3628 = scalar_lea.vmem %s3460, 241 [#allocation2]
      %v3629 = vld [vmem:[%s3628] ss:$2 sm:$0xff]
      %s3630 = scalar_lea.vmem %s3460, 289 [#allocation2]
      %v3631 = vld [vmem:[%s3630] ss:$2 sm:$0xff]
      %s3632 = scalar_lea.vmem %s3460, 337 [#allocation2]
      %v3633 = vld [vmem:[%s3632] ss:$2 sm:$0xff]
      %v3634 = vpack.c.bf16 %v3621, %v3619
      %v3635 = vpack.c.bf16 %v3625, %v3623
      %v3636 = vpack.c.bf16 %v3629, %v3627
      %v3637 = vpack.c.bf16 %v3633, %v3631
      %s3638 = scalar_lea.vmem [#allocation3], 256
      %v3639 = vld [vmem:[%s3638] sm:$0xf]
      %v3640 = vld [vmem:[%s3638 + $0x4] sm:$0xf]
      %v3641 = vld [vmem:[%s3638 + $0x8] sm:$0xf]
      %v3642 = vld [vmem:[%s3638 + $0xc] sm:$0xf]
      %v3643 = vld [vmem:[%s3638 + $0x10] sm:$0xf]
      %v3644 = vld [vmem:[%s3638 + $0x14] sm:$0xf]
      %v3645 = vld [vmem:[%s3638 + $0x18] sm:$0xf]
      %v3646 = vld [vmem:[%s3638 + $0x1c] sm:$0xf]
      %v3647 = vld [vmem:[%s3638 + $0x20] sm:$0xf]
      %v3648 = vld [vmem:[%s3638 + $0x24] sm:$0xf]
      %v3649 = vld [vmem:[%s3638 + $0x28] sm:$0xf]
      %v3650 = vld [vmem:[%s3638 + $0x2c] sm:$0xf]
      %v3651 = vld [vmem:[%s3638 + $0x30] sm:$0xf]
      %v3652 = vld [vmem:[%s3638 + $0x34] sm:$0xf]
      %v3653 = vld [vmem:[%s3638 + $0x38] sm:$0xf]
      %v3654 = vld [vmem:[%s3638 + $0x3c] sm:$0xf]
      %v3671 = vunpack.c.l.b16 %v3639
      %v3672 = vunpack.c.l.b16 %v3640
      %v3673 = vunpack.c.l.b16 %v3641
      %v3674 = vunpack.c.l.b16 %v3642
      %v3675 = vunpack.c.l.b16 %v3643
      %v3676 = vunpack.c.l.b16 %v3644
      %v3677 = vunpack.c.l.b16 %v3645
      %v3678 = vunpack.c.l.b16 %v3646
      %v3679 = vunpack.c.l.b16 %v3647
      %v3680 = vunpack.c.l.b16 %v3648
      %v3681 = vunpack.c.l.b16 %v3649
      %v3682 = vunpack.c.l.b16 %v3650
      %v3683 = vunpack.c.l.b16 %v3651
      %v3684 = vunpack.c.l.b16 %v3652
      %v3685 = vunpack.c.l.b16 %v3653
      %v3686 = vunpack.c.l.b16 %v3654
      %v3687 = vpack.c.b16 %v3672, %v3671
      %v3688 = vpack.c.b16 %v3674, %v3673
      %v3689 = vpack.c.b16 %v3676, %v3675
      %v3690 = vpack.c.b16 %v3678, %v3677
      %v3691 = vpack.c.b16 %v3680, %v3679
      %v3692 = vpack.c.b16 %v3682, %v3681
      %v3693 = vpack.c.b16 %v3684, %v3683
      %v3694 = vpack.c.b16 %v3686, %v3685
      %3703 = vmatprep.subr.bf16.mxu0 0
      %3704 = vmatpush1.bf16.msra.mxu0 %v3694
      %3705 = vmatprep.subr.bf16.mxu0 0
      %3706 = vmatpush1.bf16.msra.mxu0 %v3693
      %3707 = vmatprep.subr.bf16.mxu0 0
      %3708 = vmatpush1.bf16.msra.mxu0 %v3692
      %3709 = vmatprep.subr.bf16.mxu0 0
      %3710 = vmatpush1.bf16.msra.mxu0 %v3691
      %3711 = vmatprep.subr.bf16.mxu0 0
      %3712 = vmatpush1.bf16.msra.mxu0 %v3690
      %3713 = vmatprep.subr.bf16.mxu0 0
      %3714 = vmatpush1.bf16.msra.mxu0 %v3689
      %3715 = vmatprep.subr.bf16.mxu0 0
      %3716 = vmatpush1.bf16.msra.mxu0 %v3688
      %3717 = vmatprep.subr.bf16.mxu0 0
      %3718 = vmatpush1.bf16.msra.mxu0 %v3687
      %3719 = vmatprep.subr.bf16.mxu0 0
      %3720 = vmatpush2.bf16.msra.mxu0 0
      %3721 = vmatprep.subr.bf16.mxu0 0
      %3722 = vmatpush2.bf16.msra.mxu0 0
      %3723 = vmatprep.subr.bf16.mxu0 0
      %3724 = vmatpush2.bf16.msra.mxu0 0
      %3725 = vmatprep.subr.bf16.mxu0 0
      %3726 = vmatpush2.bf16.msra.mxu0 0
      %3727 = vmatprep.subr.bf16.mxu0 0
      %3728 = vmatpush2.bf16.msra.mxu0 0
      %3729 = vmatprep.subr.bf16.mxu0 0
      %3730 = vmatpush2.bf16.msra.mxu0 0
      %3731 = vmatprep.subr.bf16.mxu0 0
      %3732 = vmatpush2.bf16.msra.mxu0 0
      %3733 = vmatprep.subr.bf16.mxu0 0
      %3734 = vmatpush2.bf16.msra.mxu0 0
      %3735 = vmatprep.mubr.bf16.mxu0 0
      %3736 = vmatmul.mubr.bf16.gmra.mxu0 %v3634
      %v3737 = vpop.f32.mrf.mxu0
      %v3738 = vadd.f32 0.0, %v3737
      %v3739 = vpop.f32.mrf.mxu0
      %v3740 = vpop.f32.mrf.mxu0
      %v3741 = vadd.f32 0.0, %v3740
      %v3742 = vpop.f32.mrf.mxu0
      %3743 = vmatprep.mubr.bf16.mxu0 0
      %3744 = vmatmul.mubr.bf16.gmra.mxu0 %v3635
      %v3745 = vpop.f32.mrf.mxu0
      %v3746 = vadd.f32 0.0, %v3745
      %v3747 = vpop.f32.mrf.mxu0
      %v3748 = vpop.f32.mrf.mxu0
      %v3749 = vadd.f32 0.0, %v3748
      %v3750 = vpop.f32.mrf.mxu0
      %3751 = vmatprep.mubr.bf16.mxu0 0
      %3752 = vmatmul.mubr.bf16.gmra.mxu0 %v3636
      %v3753 = vpop.f32.mrf.mxu0
      %v3754 = vadd.f32 0.0, %v3753
      %v3755 = vpop.f32.mrf.mxu0
      %v3756 = vpop.f32.mrf.mxu0
      %v3757 = vadd.f32 0.0, %v3756
      %v3758 = vpop.f32.mrf.mxu0
      %3759 = vmatprep.mubr.bf16.mxu0 0
      %3760 = vmatmul.mubr.bf16.gmra.mxu0 %v3637
      %v3761 = vpop.f32.mrf.mxu0
      %v3762 = vadd.f32 0.0, %v3761
      %v3763 = vpop.f32.mrf.mxu0
      %v3764 = vpop.f32.mrf.mxu0
      %v3765 = vadd.f32 0.0, %v3764
      %v3766 = vpop.f32.mrf.mxu0
      %3767 = vdwg.mxu0
      %v3768 = vadd.f32 %v3610, %v3738
      %v3769 = vadd.f32 %v3611, %v3741
      %v3770 = vadd.f32 %v3612, %v3746
      %v3771 = vadd.f32 %v3613, %v3749
      %v3772 = vadd.f32 %v3614, %v3754
      %v3773 = vadd.f32 %v3615, %v3757
      %v3774 = vadd.f32 %v3616, %v3762
      %v3775 = vadd.f32 %v3617, %v3765
      %s3776 = scalar_lea.vmem %s3460, 2 [#allocation2]
      %v3777 = vld [vmem:[%s3776] ss:$2 sm:$0xff]
      %s3778 = scalar_lea.vmem %s3460, 50 [#allocation2]
      %v3779 = vld [vmem:[%s3778] ss:$2 sm:$0xff]
      %s3780 = scalar_lea.vmem %s3460, 98 [#allocation2]
      %v3781 = vld [vmem:[%s3780] ss:$2 sm:$0xff]
      %s3782 = scalar_lea.vmem %s3460, 146 [#allocation2]
      %v3783 = vld [vmem:[%s3782] ss:$2 sm:$0xff]
      %s3784 = scalar_lea.vmem %s3460, 194 [#allocation2]
      %v3785 = vld [vmem:[%s3784] ss:$2 sm:$0xff]
      %s3786 = scalar_lea.vmem %s3460, 242 [#allocation2]
      %v3787 = vld [vmem:[%s3786] ss:$2 sm:$0xff]
      %s3788 = scalar_lea.vmem %s3460, 290 [#allocation2]
      %v3789 = vld [vmem:[%s3788] ss:$2 sm:$0xff]
      %s3790 = scalar_lea.vmem %s3460, 338 [#allocation2]
      %v3791 = vld [vmem:[%s3790] ss:$2 sm:$0xff]
      %v3792 = vpack.c.bf16 %v3779, %v3777
      %v3793 = vpack.c.bf16 %v3783, %v3781
      %v3794 = vpack.c.bf16 %v3787, %v3785
      %v3795 = vpack.c.bf16 %v3791, %v3789
      %s3796 = scalar_lea.vmem [#allocation3], 320
      %v3797 = vld [vmem:[%s3796] sm:$0xf]
      %v3798 = vld [vmem:[%s3796 + $0x4] sm:$0xf]
      %v3799 = vld [vmem:[%s3796 + $0x8] sm:$0xf]
      %v3800 = vld [vmem:[%s3796 + $0xc] sm:$0xf]
      %v3801 = vld [vmem:[%s3796 + $0x10] sm:$0xf]
      %v3802 = vld [vmem:[%s3796 + $0x14] sm:$0xf]
      %v3803 = vld [vmem:[%s3796 + $0x18] sm:$0xf]
      %v3804 = vld [vmem:[%s3796 + $0x1c] sm:$0xf]
      %v3805 = vld [vmem:[%s3796 + $0x20] sm:$0xf]
      %v3806 = vld [vmem:[%s3796 + $0x24] sm:$0xf]
      %v3807 = vld [vmem:[%s3796 + $0x28] sm:$0xf]
      %v3808 = vld [vmem:[%s3796 + $0x2c] sm:$0xf]
      %v3809 = vld [vmem:[%s3796 + $0x30] sm:$0xf]
      %v3810 = vld [vmem:[%s3796 + $0x34] sm:$0xf]
      %v3811 = vld [vmem:[%s3796 + $0x38] sm:$0xf]
      %v3812 = vld [vmem:[%s3796 + $0x3c] sm:$0xf]
      %v3829 = vunpack.c.l.b16 %v3797
      %v3830 = vunpack.c.l.b16 %v3798
      %v3831 = vunpack.c.l.b16 %v3799
      %v3832 = vunpack.c.l.b16 %v3800
      %v3833 = vunpack.c.l.b16 %v3801
      %v3834 = vunpack.c.l.b16 %v3802
      %v3835 = vunpack.c.l.b16 %v3803
      %v3836 = vunpack.c.l.b16 %v3804
      %v3837 = vunpack.c.l.b16 %v3805
      %v3838 = vunpack.c.l.b16 %v3806
      %v3839 = vunpack.c.l.b16 %v3807
      %v3840 = vunpack.c.l.b16 %v3808
      %v3841 = vunpack.c.l.b16 %v3809
      %v3842 = vunpack.c.l.b16 %v3810
      %v3843 = vunpack.c.l.b16 %v3811
      %v3844 = vunpack.c.l.b16 %v3812
      %v3845 = vpack.c.b16 %v3830, %v3829
      %v3846 = vpack.c.b16 %v3832, %v3831
      %v3847 = vpack.c.b16 %v3834, %v3833
      %v3848 = vpack.c.b16 %v3836, %v3835
      %v3849 = vpack.c.b16 %v3838, %v3837
      %v3850 = vpack.c.b16 %v3840, %v3839
      %v3851 = vpack.c.b16 %v3842, %v3841
      %v3852 = vpack.c.b16 %v3844, %v3843
      %3861 = vmatprep.subr.bf16.mxu0 0
      %3862 = vmatpush1.bf16.msra.mxu0 %v3852
      %3863 = vmatprep.subr.bf16.mxu0 0
      %3864 = vmatpush1.bf16.msra.mxu0 %v3851
      %3865 = vmatprep.subr.bf16.mxu0 0
      %3866 = vmatpush1.bf16.msra.mxu0 %v3850
      %3867 = vmatprep.subr.bf16.mxu0 0
      %3868 = vmatpush1.bf16.msra.mxu0 %v3849
      %3869 = vmatprep.subr.bf16.mxu0 0
      %3870 = vmatpush1.bf16.msra.mxu0 %v3848
      %3871 = vmatprep.subr.bf16.mxu0 0
      %3872 = vmatpush1.bf16.msra.mxu0 %v3847
      %3873 = vmatprep.subr.bf16.mxu0 0
      %3874 = vmatpush1.bf16.msra.mxu0 %v3846
      %3875 = vmatprep.subr.bf16.mxu0 0
      %3876 = vmatpush1.bf16.msra.mxu0 %v3845
      %3877 = vmatprep.subr.bf16.mxu0 0
      %3878 = vmatpush2.bf16.msra.mxu0 0
      %3879 = vmatprep.subr.bf16.mxu0 0
      %3880 = vmatpush2.bf16.msra.mxu0 0
      %3881 = vmatprep.subr.bf16.mxu0 0
      %3882 = vmatpush2.bf16.msra.mxu0 0
      %3883 = vmatprep.subr.bf16.mxu0 0
      %3884 = vmatpush2.bf16.msra.mxu0 0
      %3885 = vmatprep.subr.bf16.mxu0 0
      %3886 = vmatpush2.bf16.msra.mxu0 0
      %3887 = vmatprep.subr.bf16.mxu0 0
      %3888 = vmatpush2.bf16.msra.mxu0 0
      %3889 = vmatprep.subr.bf16.mxu0 0
      %3890 = vmatpush2.bf16.msra.mxu0 0
      %3891 = vmatprep.subr.bf16.mxu0 0
      %3892 = vmatpush2.bf16.msra.mxu0 0
      %3893 = vmatprep.mubr.bf16.mxu0 0
      %3894 = vmatmul.mubr.bf16.gmra.mxu0 %v3792
      %v3895 = vpop.f32.mrf.mxu0
      %v3896 = vadd.f32 0.0, %v3895
      %v3897 = vpop.f32.mrf.mxu0
      %v3898 = vpop.f32.mrf.mxu0
      %v3899 = vadd.f32 0.0, %v3898
      %v3900 = vpop.f32.mrf.mxu0
      %3901 = vmatprep.mubr.bf16.mxu0 0
      %3902 = vmatmul.mubr.bf16.gmra.mxu0 %v3793
      %v3903 = vpop.f32.mrf.mxu0
      %v3904 = vadd.f32 0.0, %v3903
      %v3905 = vpop.f32.mrf.mxu0
      %v3906 = vpop.f32.mrf.mxu0
      %v3907 = vadd.f32 0.0, %v3906
      %v3908 = vpop.f32.mrf.mxu0
      %3909 = vmatprep.mubr.bf16.mxu0 0
      %3910 = vmatmul.mubr.bf16.gmra.mxu0 %v3794
      %v3911 = vpop.f32.mrf.mxu0
      %v3912 = vadd.f32 0.0, %v3911
      %v3913 = vpop.f32.mrf.mxu0
      %v3914 = vpop.f32.mrf.mxu0
      %v3915 = vadd.f32 0.0, %v3914
      %v3916 = vpop.f32.mrf.mxu0
      %3917 = vmatprep.mubr.bf16.mxu0 0
      %3918 = vmatmul.mubr.bf16.gmra.mxu0 %v3795
      %v3919 = vpop.f32.mrf.mxu0
      %v3920 = vadd.f32 0.0, %v3919
      %v3921 = vpop.f32.mrf.mxu0
      %v3922 = vpop.f32.mrf.mxu0
      %v3923 = vadd.f32 0.0, %v3922
      %v3924 = vpop.f32.mrf.mxu0
      %3925 = vdwg.mxu0
      %v3926 = vadd.f32 %v3768, %v3896
      %v3927 = vadd.f32 %v3769, %v3899
      %v3928 = vadd.f32 %v3770, %v3904
      %v3929 = vadd.f32 %v3771, %v3907
      %v3930 = vadd.f32 %v3772, %v3912
      %v3931 = vadd.f32 %v3773, %v3915
      %v3932 = vadd.f32 %v3774, %v3920
      %v3933 = vadd.f32 %v3775, %v3923
      %s3934 = scalar_lea.vmem [#allocation2], 48
      %v3935 = vld [vmem:[%s3934] ss:$2 sm:$0xff]
      %s3936 = scalar_lea.vmem %s3934, 48 [#allocation2]
      %v3937 = vld [vmem:[%s3936] ss:$2 sm:$0xff]
      %s3938 = scalar_lea.vmem %s3934, 96 [#allocation2]
      %v3939 = vld [vmem:[%s3938] ss:$2 sm:$0xff]
      %s3940 = scalar_lea.vmem %s3934, 144 [#allocation2]
      %v3941 = vld [vmem:[%s3940] ss:$2 sm:$0xff]
      %s3942 = scalar_lea.vmem %s3934, 192 [#allocation2]
      %v3943 = vld [vmem:[%s3942] ss:$2 sm:$0xff]
      %s3944 = scalar_lea.vmem %s3934, 240 [#allocation2]
      %v3945 = vld [vmem:[%s3944] ss:$2 sm:$0xff]
      %s3946 = scalar_lea.vmem %s3934, 288 [#allocation2]
      %v3947 = vld [vmem:[%s3946] ss:$2 sm:$0xff]
      %s3948 = scalar_lea.vmem %s3934, 336 [#allocation2]
      %v3949 = vld [vmem:[%s3948] ss:$2 sm:$0xff]
      %v3950 = vpack.c.bf16 %v3937, %v3935
      %v3951 = vpack.c.bf16 %v3941, %v3939
      %v3952 = vpack.c.bf16 %v3945, %v3943
      %v3953 = vpack.c.bf16 %v3949, %v3947
      %s3954 = scalar_lea.vmem [#allocation3], 384
      %v3955 = vld [vmem:[%s3954] sm:$0xf]
      %v3956 = vld [vmem:[%s3954 + $0x4] sm:$0xf]
      %v3957 = vld [vmem:[%s3954 + $0x8] sm:$0xf]
      %v3958 = vld [vmem:[%s3954 + $0xc] sm:$0xf]
      %v3959 = vld [vmem:[%s3954 + $0x10] sm:$0xf]
      %v3960 = vld [vmem:[%s3954 + $0x14] sm:$0xf]
      %v3961 = vld [vmem:[%s3954 + $0x18] sm:$0xf]
      %v3962 = vld [vmem:[%s3954 + $0x1c] sm:$0xf]
      %v3963 = vld [vmem:[%s3954 + $0x20] sm:$0xf]
      %v3964 = vld [vmem:[%s3954 + $0x24] sm:$0xf]
      %v3965 = vld [vmem:[%s3954 + $0x28] sm:$0xf]
      %v3966 = vld [vmem:[%s3954 + $0x2c] sm:$0xf]
      %v3967 = vld [vmem:[%s3954 + $0x30] sm:$0xf]
      %v3968 = vld [vmem:[%s3954 + $0x34] sm:$0xf]
      %v3969 = vld [vmem:[%s3954 + $0x38] sm:$0xf]
      %v3970 = vld [vmem:[%s3954 + $0x3c] sm:$0xf]
      %v3987 = vunpack.c.l.b16 %v3955
      %v3988 = vunpack.c.l.b16 %v3956
      %v3989 = vunpack.c.l.b16 %v3957
      %v3990 = vunpack.c.l.b16 %v3958
      %v3991 = vunpack.c.l.b16 %v3959
      %v3992 = vunpack.c.l.b16 %v3960
      %v3993 = vunpack.c.l.b16 %v3961
      %v3994 = vunpack.c.l.b16 %v3962
      %v3995 = vunpack.c.l.b16 %v3963
      %v3996 = vunpack.c.l.b16 %v3964
      %v3997 = vunpack.c.l.b16 %v3965
      %v3998 = vunpack.c.l.b16 %v3966
      %v3999 = vunpack.c.l.b16 %v3967
      %v4000 = vunpack.c.l.b16 %v3968
      %v4001 = vunpack.c.l.b16 %v3969
      %v4002 = vunpack.c.l.b16 %v3970
      %v4003 = vpack.c.b16 %v3988, %v3987
      %v4004 = vpack.c.b16 %v3990, %v3989
      %v4005 = vpack.c.b16 %v3992, %v3991
      %v4006 = vpack.c.b16 %v3994, %v3993
      %v4007 = vpack.c.b16 %v3996, %v3995
      %v4008 = vpack.c.b16 %v3998, %v3997
      %v4009 = vpack.c.b16 %v4000, %v3999
      %v4010 = vpack.c.b16 %v4002, %v4001
      %4019 = vmatprep.subr.bf16.mxu0 0
      %4020 = vmatpush1.bf16.msra.mxu0 %v4010
      %4021 = vmatprep.subr.bf16.mxu0 0
      %4022 = vmatpush1.bf16.msra.mxu0 %v4009
      %4023 = vmatprep.subr.bf16.mxu0 0
      %4024 = vmatpush1.bf16.msra.mxu0 %v4008
      %4025 = vmatprep.subr.bf16.mxu0 0
      %4026 = vmatpush1.bf16.msra.mxu0 %v4007
      %4027 = vmatprep.subr.bf16.mxu0 0
      %4028 = vmatpush1.bf16.msra.mxu0 %v4006
      %4029 = vmatprep.subr.bf16.mxu0 0
      %4030 = vmatpush1.bf16.msra.mxu0 %v4005
      %4031 = vmatprep.subr.bf16.mxu0 0
      %4032 = vmatpush1.bf16.msra.mxu0 %v4004
      %4033 = vmatprep.subr.bf16.mxu0 0
      %4034 = vmatpush1.bf16.msra.mxu0 %v4003
      %4035 = vmatprep.subr.bf16.mxu0 0
      %4036 = vmatpush2.bf16.msra.mxu0 0
      %4037 = vmatprep.subr.bf16.mxu0 0
      %4038 = vmatpush2.bf16.msra.mxu0 0
      %4039 = vmatprep.subr.bf16.mxu0 0
      %4040 = vmatpush2.bf16.msra.mxu0 0
      %4041 = vmatprep.subr.bf16.mxu0 0
      %4042 = vmatpush2.bf16.msra.mxu0 0
      %4043 = vmatprep.subr.bf16.mxu0 0
      %4044 = vmatpush2.bf16.msra.mxu0 0
      %4045 = vmatprep.subr.bf16.mxu0 0
      %4046 = vmatpush2.bf16.msra.mxu0 0
      %4047 = vmatprep.subr.bf16.mxu0 0
      %4048 = vmatpush2.bf16.msra.mxu0 0
      %4049 = vmatprep.subr.bf16.mxu0 0
      %4050 = vmatpush2.bf16.msra.mxu0 0
      %4051 = vmatprep.mubr.bf16.mxu0 0
      %4052 = vmatmul.mubr.bf16.gmra.mxu0 %v3950
      %v4053 = vpop.f32.mrf.mxu0
      %v4054 = vadd.f32 0.0, %v4053
      %v4055 = vpop.f32.mrf.mxu0
      %v4056 = vpop.f32.mrf.mxu0
      %v4057 = vadd.f32 0.0, %v4056
      %v4058 = vpop.f32.mrf.mxu0
      %4059 = vmatprep.mubr.bf16.mxu0 0
      %4060 = vmatmul.mubr.bf16.gmra.mxu0 %v3951
      %v4061 = vpop.f32.mrf.mxu0
      %v4062 = vadd.f32 0.0, %v4061
      %v4063 = vpop.f32.mrf.mxu0
      %v4064 = vpop.f32.mrf.mxu0
      %v4065 = vadd.f32 0.0, %v4064
      %v4066 = vpop.f32.mrf.mxu0
      %4067 = vmatprep.mubr.bf16.mxu0 0
      %4068 = vmatmul.mubr.bf16.gmra.mxu0 %v3952
      %v4069 = vpop.f32.mrf.mxu0
      %v4070 = vadd.f32 0.0, %v4069
      %v4071 = vpop.f32.mrf.mxu0
      %v4072 = vpop.f32.mrf.mxu0
      %v4073 = vadd.f32 0.0, %v4072
      %v4074 = vpop.f32.mrf.mxu0
      %4075 = vmatprep.mubr.bf16.mxu0 0
      %4076 = vmatmul.mubr.bf16.gmra.mxu0 %v3953
      %v4077 = vpop.f32.mrf.mxu0
      %v4078 = vadd.f32 0.0, %v4077
      %v4079 = vpop.f32.mrf.mxu0
      %v4080 = vpop.f32.mrf.mxu0
      %v4081 = vadd.f32 0.0, %v4080
      %v4082 = vpop.f32.mrf.mxu0
      %4083 = vdwg.mxu0
      %v4084 = vadd.f32 %v3926, %v4054
      %v4085 = vadd.f32 %v3927, %v4057
      %v4086 = vadd.f32 %v3928, %v4062
      %v4087 = vadd.f32 %v3929, %v4065
      %v4088 = vadd.f32 %v3930, %v4070
      %v4089 = vadd.f32 %v3931, %v4073
      %v4090 = vadd.f32 %v3932, %v4078
      %v4091 = vadd.f32 %v3933, %v4081
      %s4092 = scalar_lea.vmem %s3934, 1 [#allocation2]
      %v4093 = vld [vmem:[%s4092] ss:$2 sm:$0xff]
      %s4094 = scalar_lea.vmem %s3934, 49 [#allocation2]
      %v4095 = vld [vmem:[%s4094] ss:$2 sm:$0xff]
      %s4096 = scalar_lea.vmem %s3934, 97 [#allocation2]
      %v4097 = vld [vmem:[%s4096] ss:$2 sm:$0xff]
      %s4098 = scalar_lea.vmem %s3934, 145 [#allocation2]
      %v4099 = vld [vmem:[%s4098] ss:$2 sm:$0xff]
      %s4100 = scalar_lea.vmem %s3934, 193 [#allocation2]
      %v4101 = vld [vmem:[%s4100] ss:$2 sm:$0xff]
      %s4102 = scalar_lea.vmem %s3934, 241 [#allocation2]
      %v4103 = vld [vmem:[%s4102] ss:$2 sm:$0xff]
      %s4104 = scalar_lea.vmem %s3934, 289 [#allocation2]
      %v4105 = vld [vmem:[%s4104] ss:$2 sm:$0xff]
      %s4106 = scalar_lea.vmem %s3934, 337 [#allocation2]
      %v4107 = vld [vmem:[%s4106] ss:$2 sm:$0xff]
      %v4108 = vpack.c.bf16 %v4095, %v4093
      %v4109 = vpack.c.bf16 %v4099, %v4097
      %v4110 = vpack.c.bf16 %v4103, %v4101
      %v4111 = vpack.c.bf16 %v4107, %v4105
      %s4112 = scalar_lea.vmem [#allocation3], 448
      %v4113 = vld [vmem:[%s4112] sm:$0xf]
      %v4114 = vld [vmem:[%s4112 + $0x4] sm:$0xf]
      %v4115 = vld [vmem:[%s4112 + $0x8] sm:$0xf]
      %v4116 = vld [vmem:[%s4112 + $0xc] sm:$0xf]
      %v4117 = vld [vmem:[%s4112 + $0x10] sm:$0xf]
      %v4118 = vld [vmem:[%s4112 + $0x14] sm:$0xf]
      %v4119 = vld [vmem:[%s4112 + $0x18] sm:$0xf]
      %v4120 = vld [vmem:[%s4112 + $0x1c] sm:$0xf]
      %v4121 = vld [vmem:[%s4112 + $0x20] sm:$0xf]
      %v4122 = vld [vmem:[%s4112 + $0x24] sm:$0xf]
      %v4123 = vld [vmem:[%s4112 + $0x28] sm:$0xf]
      %v4124 = vld [vmem:[%s4112 + $0x2c] sm:$0xf]
      %v4125 = vld [vmem:[%s4112 + $0x30] sm:$0xf]
      %v4126 = vld [vmem:[%s4112 + $0x34] sm:$0xf]
      %v4127 = vld [vmem:[%s4112 + $0x38] sm:$0xf]
      %v4128 = vld [vmem:[%s4112 + $0x3c] sm:$0xf]
      %v4145 = vunpack.c.l.b16 %v4113
      %v4146 = vunpack.c.l.b16 %v4114
      %v4147 = vunpack.c.l.b16 %v4115
      %v4148 = vunpack.c.l.b16 %v4116
      %v4149 = vunpack.c.l.b16 %v4117
      %v4150 = vunpack.c.l.b16 %v4118
      %v4151 = vunpack.c.l.b16 %v4119
      %v4152 = vunpack.c.l.b16 %v4120
      %v4153 = vunpack.c.l.b16 %v4121
      %v4154 = vunpack.c.l.b16 %v4122
      %v4155 = vunpack.c.l.b16 %v4123
      %v4156 = vunpack.c.l.b16 %v4124
      %v4157 = vunpack.c.l.b16 %v4125
      %v4158 = vunpack.c.l.b16 %v4126
      %v4159 = vunpack.c.l.b16 %v4127
      %v4160 = vunpack.c.l.b16 %v4128
      %v4161 = vpack.c.b16 %v4146, %v4145
      %v4162 = vpack.c.b16 %v4148, %v4147
      %v4163 = vpack.c.b16 %v4150, %v4149
      %v4164 = vpack.c.b16 %v4152, %v4151
      %v4165 = vpack.c.b16 %v4154, %v4153
      %v4166 = vpack.c.b16 %v4156, %v4155
      %v4167 = vpack.c.b16 %v4158, %v4157
      %v4168 = vpack.c.b16 %v4160, %v4159
      %4177 = vmatprep.subr.bf16.mxu0 0
      %4178 = vmatpush1.bf16.msra.mxu0 %v4168
      %4179 = vmatprep.subr.bf16.mxu0 0
      %4180 = vmatpush1.bf16.msra.mxu0 %v4167
      %4181 = vmatprep.subr.bf16.mxu0 0
      %4182 = vmatpush1.bf16.msra.mxu0 %v4166
      %4183 = vmatprep.subr.bf16.mxu0 0
      %4184 = vmatpush1.bf16.msra.mxu0 %v4165
      %4185 = vmatprep.subr.bf16.mxu0 0
      %4186 = vmatpush1.bf16.msra.mxu0 %v4164
      %4187 = vmatprep.subr.bf16.mxu0 0
      %4188 = vmatpush1.bf16.msra.mxu0 %v4163
      %4189 = vmatprep.subr.bf16.mxu0 0
      %4190 = vmatpush1.bf16.msra.mxu0 %v4162
      %4191 = vmatprep.subr.bf16.mxu0 0
      %4192 = vmatpush1.bf16.msra.mxu0 %v4161
      %4193 = vmatprep.subr.bf16.mxu0 0
      %4194 = vmatpush2.bf16.msra.mxu0 0
      %4195 = vmatprep.subr.bf16.mxu0 0
      %4196 = vmatpush2.bf16.msra.mxu0 0
      %4197 = vmatprep.subr.bf16.mxu0 0
      %4198 = vmatpush2.bf16.msra.mxu0 0
      %4199 = vmatprep.subr.bf16.mxu0 0
      %4200 = vmatpush2.bf16.msra.mxu0 0
      %4201 = vmatprep.subr.bf16.mxu0 0
      %4202 = vmatpush2.bf16.msra.mxu0 0
      %4203 = vmatprep.subr.bf16.mxu0 0
      %4204 = vmatpush2.bf16.msra.mxu0 0
      %4205 = vmatprep.subr.bf16.mxu0 0
      %4206 = vmatpush2.bf16.msra.mxu0 0
      %4207 = vmatprep.subr.bf16.mxu0 0
      %4208 = vmatpush2.bf16.msra.mxu0 0
      %4209 = vmatprep.mubr.bf16.mxu0 0
      %4210 = vmatmul.mubr.bf16.gmra.mxu0 %v4108
      %v4211 = vpop.f32.mrf.mxu0
      %v4212 = vadd.f32 0.0, %v4211
      %v4213 = vpop.f32.mrf.mxu0
      %v4214 = vpop.f32.mrf.mxu0
      %v4215 = vadd.f32 0.0, %v4214
      %v4216 = vpop.f32.mrf.mxu0
      %4217 = vmatprep.mubr.bf16.mxu0 0
      %4218 = vmatmul.mubr.bf16.gmra.mxu0 %v4109
      %v4219 = vpop.f32.mrf.mxu0
      %v4220 = vadd.f32 0.0, %v4219
      %v4221 = vpop.f32.mrf.mxu0
      %v4222 = vpop.f32.mrf.mxu0
      %v4223 = vadd.f32 0.0, %v4222
      %v4224 = vpop.f32.mrf.mxu0
      %4225 = vmatprep.mubr.bf16.mxu0 0
      %4226 = vmatmul.mubr.bf16.gmra.mxu0 %v4110
      %v4227 = vpop.f32.mrf.mxu0
      %v4228 = vadd.f32 0.0, %v4227
      %v4229 = vpop.f32.mrf.mxu0
      %v4230 = vpop.f32.mrf.mxu0
      %v4231 = vadd.f32 0.0, %v4230
      %v4232 = vpop.f32.mrf.mxu0
      %4233 = vmatprep.mubr.bf16.mxu0 0
      %4234 = vmatmul.mubr.bf16.gmra.mxu0 %v4111
      %v4235 = vpop.f32.mrf.mxu0
      %v4236 = vadd.f32 0.0, %v4235
      %v4237 = vpop.f32.mrf.mxu0
      %v4238 = vpop.f32.mrf.mxu0
      %v4239 = vadd.f32 0.0, %v4238
      %v4240 = vpop.f32.mrf.mxu0
      %4241 = vdwg.mxu0
      %v4242 = vadd.f32 %v4084, %v4212
      %v4243 = vadd.f32 %v4085, %v4215
      %v4244 = vadd.f32 %v4086, %v4220
      %v4245 = vadd.f32 %v4087, %v4223
      %v4246 = vadd.f32 %v4088, %v4228
      %v4247 = vadd.f32 %v4089, %v4231
      %v4248 = vadd.f32 %v4090, %v4236
      %v4249 = vadd.f32 %v4091, %v4239
      %s4250 = scalar_lea.vmem %s3934, 2 [#allocation2]
      %v4251 = vld [vmem:[%s4250] ss:$2 sm:$0xff]
      %s4252 = scalar_lea.vmem %s3934, 50 [#allocation2]
      %v4253 = vld [vmem:[%s4252] ss:$2 sm:$0xff]
      %s4254 = scalar_lea.vmem %s3934, 98 [#allocation2]
      %v4255 = vld [vmem:[%s4254] ss:$2 sm:$0xff]
      %s4256 = scalar_lea.vmem %s3934, 146 [#allocation2]
      %v4257 = vld [vmem:[%s4256] ss:$2 sm:$0xff]
      %s4258 = scalar_lea.vmem %s3934, 194 [#allocation2]
      %v4259 = vld [vmem:[%s4258] ss:$2 sm:$0xff]
      %s4260 = scalar_lea.vmem %s3934, 242 [#allocation2]
      %v4261 = vld [vmem:[%s4260] ss:$2 sm:$0xff]
      %s4262 = scalar_lea.vmem %s3934, 290 [#allocation2]
      %v4263 = vld [vmem:[%s4262] ss:$2 sm:$0xff]
      %s4264 = scalar_lea.vmem %s3934, 338 [#allocation2]
      %v4265 = vld [vmem:[%s4264] ss:$2 sm:$0xff]
      %v4266 = vpack.c.bf16 %v4253, %v4251
      %v4267 = vpack.c.bf16 %v4257, %v4255
      %v4268 = vpack.c.bf16 %v4261, %v4259
      %v4269 = vpack.c.bf16 %v4265, %v4263
      %s4270 = scalar_lea.vmem [#allocation3], 512
      %v4271 = vld [vmem:[%s4270] sm:$0xf]
      %v4272 = vld [vmem:[%s4270 + $0x4] sm:$0xf]
      %v4273 = vld [vmem:[%s4270 + $0x8] sm:$0xf]
      %v4274 = vld [vmem:[%s4270 + $0xc] sm:$0xf]
      %v4275 = vld [vmem:[%s4270 + $0x10] sm:$0xf]
      %v4276 = vld [vmem:[%s4270 + $0x14] sm:$0xf]
      %v4277 = vld [vmem:[%s4270 + $0x18] sm:$0xf]
      %v4278 = vld [vmem:[%s4270 + $0x1c] sm:$0xf]
      %v4279 = vld [vmem:[%s4270 + $0x20] sm:$0xf]
      %v4280 = vld [vmem:[%s4270 + $0x24] sm:$0xf]
      %v4281 = vld [vmem:[%s4270 + $0x28] sm:$0xf]
      %v4282 = vld [vmem:[%s4270 + $0x2c] sm:$0xf]
      %v4283 = vld [vmem:[%s4270 + $0x30] sm:$0xf]
      %v4284 = vld [vmem:[%s4270 + $0x34] sm:$0xf]
      %v4285 = vld [vmem:[%s4270 + $0x38] sm:$0xf]
      %v4286 = vld [vmem:[%s4270 + $0x3c] sm:$0xf]
      %v4303 = vunpack.c.l.b16 %v4271
      %v4304 = vunpack.c.l.b16 %v4272
      %v4305 = vunpack.c.l.b16 %v4273
      %v4306 = vunpack.c.l.b16 %v4274
      %v4307 = vunpack.c.l.b16 %v4275
      %v4308 = vunpack.c.l.b16 %v4276
      %v4309 = vunpack.c.l.b16 %v4277
      %v4310 = vunpack.c.l.b16 %v4278
      %v4311 = vunpack.c.l.b16 %v4279
      %v4312 = vunpack.c.l.b16 %v4280
      %v4313 = vunpack.c.l.b16 %v4281
      %v4314 = vunpack.c.l.b16 %v4282
      %v4315 = vunpack.c.l.b16 %v4283
      %v4316 = vunpack.c.l.b16 %v4284
      %v4317 = vunpack.c.l.b16 %v4285
      %v4318 = vunpack.c.l.b16 %v4286
      %v4319 = vpack.c.b16 %v4304, %v4303
      %v4320 = vpack.c.b16 %v4306, %v4305
      %v4321 = vpack.c.b16 %v4308, %v4307
      %v4322 = vpack.c.b16 %v4310, %v4309
      %v4323 = vpack.c.b16 %v4312, %v4311
      %v4324 = vpack.c.b16 %v4314, %v4313
      %v4325 = vpack.c.b16 %v4316, %v4315
      %v4326 = vpack.c.b16 %v4318, %v4317
      %4335 = vmatprep.subr.bf16.mxu0 0
      %4336 = vmatpush1.bf16.msra.mxu0 %v4326
      %4337 = vmatprep.subr.bf16.mxu0 0
      %4338 = vmatpush1.bf16.msra.mxu0 %v4325
      %4339 = vmatprep.subr.bf16.mxu0 0
      %4340 = vmatpush1.bf16.msra.mxu0 %v4324
      %4341 = vmatprep.subr.bf16.mxu0 0
      %4342 = vmatpush1.bf16.msra.mxu0 %v4323
      %4343 = vmatprep.subr.bf16.mxu0 0
      %4344 = vmatpush1.bf16.msra.mxu0 %v4322
      %4345 = vmatprep.subr.bf16.mxu0 0
      %4346 = vmatpush1.bf16.msra.mxu0 %v4321
      %4347 = vmatprep.subr.bf16.mxu0 0
      %4348 = vmatpush1.bf16.msra.mxu0 %v4320
      %4349 = vmatprep.subr.bf16.mxu0 0
      %4350 = vmatpush1.bf16.msra.mxu0 %v4319
      %4351 = vmatprep.subr.bf16.mxu0 0
      %4352 = vmatpush2.bf16.msra.mxu0 0
      %4353 = vmatprep.subr.bf16.mxu0 0
      %4354 = vmatpush2.bf16.msra.mxu0 0
      %4355 = vmatprep.subr.bf16.mxu0 0
      %4356 = vmatpush2.bf16.msra.mxu0 0
      %4357 = vmatprep.subr.bf16.mxu0 0
      %4358 = vmatpush2.bf16.msra.mxu0 0
      %4359 = vmatprep.subr.bf16.mxu0 0
      %4360 = vmatpush2.bf16.msra.mxu0 0
      %4361 = vmatprep.subr.bf16.mxu0 0
      %4362 = vmatpush2.bf16.msra.mxu0 0
      %4363 = vmatprep.subr.bf16.mxu0 0
      %4364 = vmatpush2.bf16.msra.mxu0 0
      %4365 = vmatprep.subr.bf16.mxu0 0
      %4366 = vmatpush2.bf16.msra.mxu0 0
      %4367 = vmatprep.mubr.bf16.mxu0 0
      %4368 = vmatmul.mubr.bf16.gmra.mxu0 %v4266
      %v4369 = vpop.f32.mrf.mxu0
      %v4370 = vadd.f32 0.0, %v4369
      %v4371 = vpop.f32.mrf.mxu0
      %v4372 = vpop.f32.mrf.mxu0
      %v4373 = vadd.f32 0.0, %v4372
      %v4374 = vpop.f32.mrf.mxu0
      %4375 = vmatprep.mubr.bf16.mxu0 0
      %4376 = vmatmul.mubr.bf16.gmra.mxu0 %v4267
      %v4377 = vpop.f32.mrf.mxu0
      %v4378 = vadd.f32 0.0, %v4377
      %v4379 = vpop.f32.mrf.mxu0
      %v4380 = vpop.f32.mrf.mxu0
      %v4381 = vadd.f32 0.0, %v4380
      %v4382 = vpop.f32.mrf.mxu0
      %4383 = vmatprep.mubr.bf16.mxu0 0
      %4384 = vmatmul.mubr.bf16.gmra.mxu0 %v4268
      %v4385 = vpop.f32.mrf.mxu0
      %v4386 = vadd.f32 0.0, %v4385
      %v4387 = vpop.f32.mrf.mxu0
      %v4388 = vpop.f32.mrf.mxu0
      %v4389 = vadd.f32 0.0, %v4388
      %v4390 = vpop.f32.mrf.mxu0
      %4391 = vmatprep.mubr.bf16.mxu0 0
      %4392 = vmatmul.mubr.bf16.gmra.mxu0 %v4269
      %v4393 = vpop.f32.mrf.mxu0
      %v4394 = vadd.f32 0.0, %v4393
      %v4395 = vpop.f32.mrf.mxu0
      %v4396 = vpop.f32.mrf.mxu0
      %v4397 = vadd.f32 0.0, %v4396
      %v4398 = vpop.f32.mrf.mxu0
      %4399 = vdwg.mxu0
      %v4400 = vadd.f32 %v4242, %v4370
      %v4401 = vadd.f32 %v4243, %v4373
      %v4402 = vadd.f32 %v4244, %v4378
      %v4403 = vadd.f32 %v4245, %v4381
      %v4404 = vadd.f32 %v4246, %v4386
      %v4405 = vadd.f32 %v4247, %v4389
      %v4406 = vadd.f32 %v4248, %v4394
      %v4407 = vadd.f32 %v4249, %v4397
      %v4408 = vld [vmem:[%s6] sm:$0x1]
      %v4410 = vlaneseq
      %v4411 = vshrl.u32 %v4410, 7
      %v4412 = vsub.s32 0, %v4411
      %v4413 = vrot.slane %v4408, %v4412
      %v4415 = vadd.f32 %v4400, %v4413
      %v4416 = vadd.f32 %v4401, %v4413
      %v4417 = vadd.f32 %v4402, %v4413
      %v4418 = vadd.f32 %v4403, %v4413
      %v4419 = vadd.f32 %v4404, %v4413
      %v4420 = vadd.f32 %v4405, %v4413
      %v4421 = vadd.f32 %v4406, %v4413
      %v4422 = vadd.f32 %v4407, %v4413
      %v4423 = vmax.f32 %v4415, 0.0
      %v4424 = vmax.f32 %v4416, 0.0
      %v4425 = vmax.f32 %v4417, 0.0
      %v4426 = vmax.f32 %v4418, 0.0
      %v4427 = vmax.f32 %v4419, 0.0
      %v4428 = vmax.f32 %v4420, 0.0
      %v4429 = vmax.f32 %v4421, 0.0
      %v4430 = vmax.f32 %v4422, 0.0
      %v4431 = vpack.c.bf16 %v4424, %v4423
      %v4432 = vpack.c.bf16 %v4426, %v4425
      %v4433 = vpack.c.bf16 %v4428, %v4427
      %v4434 = vpack.c.bf16 %v4430, %v4429
      %v4435 = vld [vmem:[%s347] sm:$0xf]
      %v4436 = vld [vmem:[%s347 + $0x4] sm:$0xf]
      %v4437 = vld [vmem:[%s347 + $0x8] sm:$0xf]
      %v4438 = vld [vmem:[%s347 + $0xc] sm:$0xf]
      %v4439 = vld [vmem:[%s347 + $0x10] sm:$0xf]
      %v4440 = vld [vmem:[%s347 + $0x14] sm:$0xf]
      %v4441 = vld [vmem:[%s347 + $0x18] sm:$0xf]
      %v4442 = vld [vmem:[%s347 + $0x1c] sm:$0xf]
      %v4451 = vunpack.c.l.b16 %v4435
      %v4452 = vunpack.c.l.b16 %v4436
      %v4453 = vunpack.c.l.b16 %v4437
      %v4454 = vunpack.c.l.b16 %v4438
      %v4455 = vunpack.c.l.b16 %v4439
      %v4456 = vunpack.c.l.b16 %v4440
      %v4457 = vunpack.c.l.b16 %v4441
      %v4458 = vunpack.c.l.b16 %v4442
      %v4459 = vpack.c.b16 %v4452, %v4451
      %v4460 = vpack.c.b16 %v4454, %v4453
      %v4461 = vpack.c.b16 %v4456, %v4455
      %v4462 = vpack.c.b16 %v4458, %v4457
      %v4467 = vld [vmem:[%s7] sm:$0xf]
      %v4468 = vld [vmem:[%s7 + $0x4] sm:$0xf]
      %v4469 = vld [vmem:[%s7 + $0x8] sm:$0xf]
      %v4470 = vld [vmem:[%s7 + $0xc] sm:$0xf]
      %v4471 = vld [vmem:[%s7 + $0x10] sm:$0xf]
      %v4472 = vld [vmem:[%s7 + $0x14] sm:$0xf]
      %v4473 = vld [vmem:[%s7 + $0x18] sm:$0xf]
      %v4474 = vld [vmem:[%s7 + $0x1c] sm:$0xf]
      %v4475 = vld [vmem:[%s7 + $0x20] sm:$0xf]
      %v4476 = vld [vmem:[%s7 + $0x24] sm:$0xf]
      %v4477 = vld [vmem:[%s7 + $0x28] sm:$0xf]
      %v4478 = vld [vmem:[%s7 + $0x2c] sm:$0xf]
      %v4479 = vld [vmem:[%s7 + $0x30] sm:$0xf]
      %v4480 = vld [vmem:[%s7 + $0x34] sm:$0xf]
      %v4481 = vld [vmem:[%s7 + $0x38] sm:$0xf]
      %v4482 = vld [vmem:[%s7 + $0x3c] sm:$0xf]
      %v4483 = vld [vmem:[%s7 + $0x40] sm:$0xf]
      %v4484 = vld [vmem:[%s7 + $0x44] sm:$0xf]
      %v4485 = vld [vmem:[%s7 + $0x48] sm:$0xf]
      %v4486 = vld [vmem:[%s7 + $0x4c] sm:$0xf]
      %v4487 = vld [vmem:[%s7 + $0x50] sm:$0xf]
      %v4488 = vld [vmem:[%s7 + $0x54] sm:$0xf]
      %v4489 = vld [vmem:[%s7 + $0x58] sm:$0xf]
      %v4490 = vld [vmem:[%s7 + $0x5c] sm:$0xf]
      %v4491 = vld [vmem:[%s7 + $0x60] sm:$0xf]
      %v4492 = vld [vmem:[%s7 + $0x64] sm:$0xf]
      %v4493 = vld [vmem:[%s7 + $0x68] sm:$0xf]
      %v4494 = vld [vmem:[%s7 + $0x6c] sm:$0xf]
      %v4495 = vld [vmem:[%s7 + $0x70] sm:$0xf]
      %v4496 = vld [vmem:[%s7 + $0x74] sm:$0xf]
      %v4497 = vld [vmem:[%s7 + $0x78] sm:$0xf]
      %v4498 = vld [vmem:[%s7 + $0x7c] sm:$0xf]
      %v4499 = vld [vmem:[%s8] sm:$0x1]
      %v4501 = vlaneseq
      %v4502 = vshrl.u32 %v4501, 7
      %v4503 = vsub.s32 0, %v4502
      %v4504 = vrot.slane %v4499, %v4503
      %v4538 = vunpack.c.l.b16 %v4467
      %v4539 = vunpack.c.l.b16 %v4468
      %v4540 = vunpack.c.l.b16 %v4469
      %v4541 = vunpack.c.l.b16 %v4470
      %v4542 = vunpack.c.l.b16 %v4471
      %v4543 = vunpack.c.l.b16 %v4472
      %v4544 = vunpack.c.l.b16 %v4473
      %v4545 = vunpack.c.l.b16 %v4474
      %v4546 = vunpack.c.l.b16 %v4475
      %v4547 = vunpack.c.l.b16 %v4476
      %v4548 = vunpack.c.l.b16 %v4477
      %v4549 = vunpack.c.l.b16 %v4478
      %v4550 = vunpack.c.l.b16 %v4479
      %v4551 = vunpack.c.l.b16 %v4480
      %v4552 = vunpack.c.l.b16 %v4481
      %v4553 = vunpack.c.l.b16 %v4482
      %v4554 = vunpack.c.l.b16 %v4483
      %v4555 = vunpack.c.l.b16 %v4484
      %v4556 = vunpack.c.l.b16 %v4485
      %v4557 = vunpack.c.l.b16 %v4486
      %v4558 = vunpack.c.l.b16 %v4487
      %v4559 = vunpack.c.l.b16 %v4488
      %v4560 = vunpack.c.l.b16 %v4489
      %v4561 = vunpack.c.l.b16 %v4490
      %v4562 = vunpack.c.l.b16 %v4491
      %v4563 = vunpack.c.l.b16 %v4492
      %v4564 = vunpack.c.l.b16 %v4493
      %v4565 = vunpack.c.l.b16 %v4494
      %v4566 = vunpack.c.l.b16 %v4495
      %v4567 = vunpack.c.l.b16 %v4496
      %v4568 = vunpack.c.l.b16 %v4497
      %v4569 = vunpack.c.l.b16 %v4498
      %v4570 = vpack.c.b16 %v4539, %v4538
      %v4571 = vpack.c.b16 %v4541, %v4540
      %v4572 = vpack.c.b16 %v4543, %v4542
      %v4573 = vpack.c.b16 %v4545, %v4544
      %v4574 = vpack.c.b16 %v4547, %v4546
      %v4575 = vpack.c.b16 %v4549, %v4548
      %v4576 = vpack.c.b16 %v4551, %v4550
      %v4577 = vpack.c.b16 %v4553, %v4552
      %v4578 = vpack.c.b16 %v4555, %v4554
      %v4579 = vpack.c.b16 %v4557, %v4556
      %v4580 = vpack.c.b16 %v4559, %v4558
      %v4581 = vpack.c.b16 %v4561, %v4560
      %v4582 = vpack.c.b16 %v4563, %v4562
      %v4583 = vpack.c.b16 %v4565, %v4564
      %v4584 = vpack.c.b16 %v4567, %v4566
      %v4585 = vpack.c.b16 %v4569, %v4568
      %4602 = vmatprep.subr.bf16.mxu0 0
      %4603 = vmatpush1.bf16.msra.mxu0 %v4577
      %4604 = vmatprep.subr.bf16.mxu0 0
      %4605 = vmatpush1.bf16.msra.mxu0 %v4576
      %4606 = vmatprep.subr.bf16.mxu0 0
      %4607 = vmatpush1.bf16.msra.mxu0 %v4575
      %4608 = vmatprep.subr.bf16.mxu0 0
      %4609 = vmatpush1.bf16.msra.mxu0 %v4574
      %4610 = vmatprep.subr.bf16.mxu0 0
      %4611 = vmatpush1.bf16.msra.mxu0 %v4573
      %4612 = vmatprep.subr.bf16.mxu0 0
      %4613 = vmatpush1.bf16.msra.mxu0 %v4572
      %4614 = vmatprep.subr.bf16.mxu0 0
      %4615 = vmatpush1.bf16.msra.mxu0 %v4571
      %4616 = vmatprep.subr.bf16.mxu0 0
      %4617 = vmatpush1.bf16.msra.mxu0 %v4570
      %4618 = vmatprep.subr.bf16.mxu0 0
      %4619 = vmatpush2.bf16.msra.mxu0 %v4585
      %4620 = vmatprep.subr.bf16.mxu0 0
      %4621 = vmatpush2.bf16.msra.mxu0 %v4584
      %4622 = vmatprep.subr.bf16.mxu0 0
      %4623 = vmatpush2.bf16.msra.mxu0 %v4583
      %4624 = vmatprep.subr.bf16.mxu0 0
      %4625 = vmatpush2.bf16.msra.mxu0 %v4582
      %4626 = vmatprep.subr.bf16.mxu0 0
      %4627 = vmatpush2.bf16.msra.mxu0 %v4581
      %4628 = vmatprep.subr.bf16.mxu0 0
      %4629 = vmatpush2.bf16.msra.mxu0 %v4580
      %4630 = vmatprep.subr.bf16.mxu0 0
      %4631 = vmatpush2.bf16.msra.mxu0 %v4579
      %4632 = vmatprep.subr.bf16.mxu0 0
      %4633 = vmatpush2.bf16.msra.mxu0 %v4578
      %4634 = vmatprep.mubr.bf16.mxu0 %v4459
      %4635 = vmatmul.mubr.bf16.gmra.mxu0 %v4431
      %v4636 = vpop.f32.mrf.mxu0
      %v4637 = vadd.f32 %v4504, %v4636
      %v4638 = vpop.f32.mrf.mxu0
      %v4639 = vpop.f32.mrf.mxu0
      %v4640 = vadd.f32 %v4504, %v4639
      %v4641 = vpop.f32.mrf.mxu0
      %4642 = vmatprep.mubr.bf16.mxu0 %v4460
      %4643 = vmatmul.mubr.bf16.gmra.mxu0 %v4432
      %v4644 = vpop.f32.mrf.mxu0
      %v4645 = vadd.f32 %v4504, %v4644
      %v4646 = vpop.f32.mrf.mxu0
      %v4647 = vpop.f32.mrf.mxu0
      %v4648 = vadd.f32 %v4504, %v4647
      %v4649 = vpop.f32.mrf.mxu0
      %4650 = vmatprep.mubr.bf16.mxu0 %v4461
      %4651 = vmatmul.mubr.bf16.gmra.mxu0 %v4433
      %v4652 = vpop.f32.mrf.mxu0
      %v4653 = vadd.f32 %v4504, %v4652
      %v4654 = vpop.f32.mrf.mxu0
      %v4655 = vpop.f32.mrf.mxu0
      %v4656 = vadd.f32 %v4504, %v4655
      %v4657 = vpop.f32.mrf.mxu0
      %4658 = vmatprep.mubr.bf16.mxu0 %v4462
      %4659 = vmatmul.mubr.bf16.gmra.mxu0 %v4434
      %v4660 = vpop.f32.mrf.mxu0
      %v4661 = vadd.f32 %v4504, %v4660
      %v4662 = vpop.f32.mrf.mxu0
      %v4663 = vpop.f32.mrf.mxu0
      %v4664 = vadd.f32 %v4504, %v4663
      %v4665 = vpop.f32.mrf.mxu0
      %4666 = vdwg.mxu0
      %v4667 = vmax.f32 %v4637, 0.0
      %v4668 = vmax.f32 %v4640, 0.0
      %v4669 = vmax.f32 %v4645, 0.0
      %v4670 = vmax.f32 %v4648, 0.0
      %v4671 = vmax.f32 %v4653, 0.0
      %v4672 = vmax.f32 %v4656, 0.0
      %v4673 = vmax.f32 %v4661, 0.0
      %v4674 = vmax.f32 %v4664, 0.0
      %4675 = vst [vmem:[%s352] sm:$0xff] %v4667
      %4676 = vst [vmem:[%s352 + $0x8] sm:$0xff] %v4668
      %4677 = vst [vmem:[%s352 + $0x10] sm:$0xff] %v4669
      %4678 = vst [vmem:[%s352 + $0x18] sm:$0xff] %v4670
      %4679 = vst [vmem:[%s352 + $0x20] sm:$0xff] %v4671
      %4680 = vst [vmem:[%s352 + $0x28] sm:$0xff] %v4672
      %4681 = vst [vmem:[%s352 + $0x30] sm:$0xff] %v4673
      %4682 = vst [vmem:[%s352 + $0x38] sm:$0xff] %v4674
      %p4683 = scmp.lt.s32.totalorder %s20, 1
      %s4684 = scalar_select %p4683, %s20, 1
      %s4685 = smul.addr %s4684, 8
      %s4686 = smul.addr %s4685, 8
      %s4687 = scalar_lea.vmem %s9, %s4686
      // Predicated region
      $region57: #{bottleneck_forward.1} parent=55 // pred_check
        %p4688 = pneg %p237
      $region58: #{bottleneck_forward.1} parent=55 // pred_check_branch
        %4690 = sbr.rel (%p4688) target = $region60
      $region59: #{bottleneck_forward.1} parent=55 // pred_region
        _
      $region60: #{bottleneck_forward.1} parent=55 // pred_fallthru
        _
    $region56: #{bottleneck_forward.1} parent=5 // pred_fallthru
      _
    %p4691 = scmp.le.s32.totalorder 2, %s15
    // Predicated region
    $region61: #{bottleneck_forward.1} parent=5 // pred_check
      %p4692 = pneg %p4691
    $region62: #{bottleneck_forward.1} parent=5 // pred_check_branch
      %4694 = sbr.rel (%p4692) target = $region64
    $region63: #{bottleneck_forward.1} parent=5 // pred_region
      %s4695 = ssub.s32 %s15, 2
      // Predicated region
      $region65: #{bottleneck_forward.1} parent=63 // pred_check
        %p4696 = pneg %p243
      $region66: #{bottleneck_forward.1} parent=63 // pred_check_branch
        %4698 = sbr.rel (%p4696) target = $region68
      $region67: #{bottleneck_forward.1} parent=63 // pred_region
        %p4699 = scmp.lt.s32.totalorder %s21, 1
        %s4700 = scalar_select %p4699, %s21, 1
        %s4701 = smul.addr %s4700, 8
        %s4702 = smul.addr %s4701, 8
        %s4703 = scalar_lea.vmem %s9, %s4702
      $region68: #{bottleneck_forward.1} parent=63 // pred_fallthru
        _
    $region64: #{bottleneck_forward.1} parent=5 // pred_fallthru
      _
  $region6: #{bottleneck_forward.1} parent=0 // loop_footer
    %s19 = sadd.s32 1, %s15
  $region7: #{bottleneck_forward.1} parent=0 // loop_footer_branch
    %14 = sbr.rel target = $region3
  $region8: #{bottleneck_forward.1} parent=0 // loop_exit
    _

</llo_original>
